<compile_context>
chip_gen: v7x
topology: tpu7x:2x2x1
jax: 0.10.0
libtpu: 0.0.40
codegen_flags: <defaults>
</compile_context>

<pallas_src>
import math

import numpy as np
import jax
import jax.numpy as jnp
from jax import lax
from jax.experimental import pallas as pl
from jax.experimental.pallas import tpu as pltpu


# ---------------------------------------------------------------------------
# Pallas kernels
# ---------------------------------------------------------------------------
def _encoder_kernel(x_ref, wa1_ref, ta_ref, wa2_ref, ba2_ref,
                    wb1t_ref, wb1b_ref, tb_ref, wb2_ref, bb2_ref, o_ref):
    """Fused point-wise encoder for one batch element (points=rows, channels=lanes).

    x:(1,N,6) -> MLP(6->H1 [BN folded] ->H2) -> global max -> (split-Wb1 "concat")
    -> MLP(->HB [BN folded] ->lat) -> global max -> o:(1,1,lat).
    """
    x = x_ref[0]                                                           # (N, 6)
    h = jnp.dot(x, wa1_ref[...], preferred_element_type=jnp.float32) + ta_ref[...]
    h = jnp.maximum(h, 0.0)                                                # (N, H1)
    feats = jnp.dot(h, wa2_ref[...], preferred_element_type=jnp.float32) + ba2_ref[...]
    fglob = jnp.max(feats, axis=0, keepdims=True)                          # (1, H2)
    # concat([feats, broadcast(fglob)]) @ Wb1  ==  feats @ Wb1_top + fglob @ Wb1_bot
    h2 = (jnp.dot(feats, wb1t_ref[...], preferred_element_type=jnp.float32)
          + jnp.dot(fglob, wb1b_ref[...], preferred_element_type=jnp.float32)
          + tb_ref[...])
    h2 = jnp.maximum(h2, 0.0)                                              # (N, HB)
    latf = jnp.dot(h2, wb2_ref[...], preferred_element_type=jnp.float32) + bb2_ref[...]
    o_ref[0] = jnp.max(latf, axis=0, keepdims=True).astype(o_ref.dtype)


def encoder_features(x, dp):
    """x:(B, N, 6) -> global latent features (B, latent_dim)."""
    B, N, _ = x.shape
    lat = dp["Wb2"].shape[1]
    wlist = [dp["Wa1f"], dp["ta"], dp["Wa2"], dp["ba2"],
             dp["Wb1t"], dp["Wb1b"], dp["tb"], dp["Wb2"], dp["bb2"]]
    # TODO(synk): at production N (~2048+) tile the point axis (two passes, running
    # max in VMEM scratch) instead of one full-N block per batch element.
    out = pl.pallas_call(
        _encoder_kernel,
        out_shape=jax.ShapeDtypeStruct((B, 1, lat), jnp.float32),
        grid=(B,),
        in_specs=[pl.BlockSpec((1, N, 6), lambda b: (b, 0, 0))]
                + [pl.BlockSpec(w.shape, lambda b: (0, 0)) for w in wlist],
        out_specs=pl.BlockSpec((1, 1, lat), lambda b: (b, 0, 0)),
        compiler_params=pltpu.CompilerParams(dimension_semantics=("parallel",)),
    )(x, *wlist)
    return out[:, 0, :]


def _decoder_kernel(x_ref, bdec_ref,
                    wd1_ref, wd2_ref, bd2_ref,
                    wc1_ref, bc1_ref, we_ref, be_ref, wc2_ref, bc2_ref,
                    wf1_ref, tf1_ref, wf2_ref, tf2_ref, wf3_ref, bf3_ref,
                    o_ref):
    """Fused refinement chain, channels-first (channels=sublanes, points=lanes).

    x:(1,8,T) holds only [grid(2), point_feat(6)]; the broadcast global/mean input
    channels of mlp_conv128_64 are pre-contracted into the per-batch bias bdec:(1,D1,1).
    Chain: Wd1(BN folded) -> Wd2 -> contract1 -> expand -> contract2 -> residual add
    -> final_conv (2x BN-folded + output).  o:(1,6,T) is torch's channels-first `fine`.
    """
    x = x_ref[0]                                                           # (8, T)
    h = jnp.dot(wd1_ref[...], x, preferred_element_type=jnp.float32) + bdec_ref[0]
    h = jnp.maximum(h, 0.0)                                                # (D1, T)
    feat1 = jnp.dot(wd2_ref[...], h, preferred_element_type=jnp.float32) + bd2_ref[...]
    f2 = jnp.maximum(jnp.dot(wc1_ref[...], feat1, preferred_element_type=jnp.float32)
                     + bc1_ref[...], 0.0)
    f2 = jnp.maximum(jnp.dot(we_ref[...], f2, preferred_element_type=jnp.float32)
                     + be_ref[...], 0.0)
    f2 = jnp.maximum(jnp.dot(wc2_ref[...], f2, preferred_element_type=jnp.float32)
                     + bc2_ref[...], 0.0)
    fsum = feat1 + f2                                                      # (DF, T)
    g = jnp.maximum(jnp.dot(wf1_ref[...], fsum, preferred_element_type=jnp.float32)
                    + tf1_ref[...], 0.0)
    g = jnp.maximum(jnp.dot(wf2_ref[...], g, preferred_element_type=jnp.float32)
                    + tf2_ref[...], 0.0)
    o_ref[0] = (jnp.dot(wf3_ref[...], g, preferred_element_type=jnp.float32)
                + bf3_ref[...]).astype(o_ref.dtype)


def decoder_chain(x_cf, bias_dec, dp):
    """x_cf:(B, 8, NF) channels-first, bias_dec:(B, D1, 1) -> fine:(B, 6, NF)."""
    B, cin, NF = x_cf.shape
    D1 = dp["Wd1gpT"].shape[0]
    # Tile the point (lane) axis only when large; sub-full tiles must be multiples of 128.
    tn = NF if (NF <= 2048 or NF % 1024 != 0) else 1024
    wlist = [dp["Wd1gpT"], dp["Wd2T"], dp["bd2c"],
             dp["Wc1T"], dp["bc1c"], dp["WeT"], dp["bec"], dp["Wc2T"], dp["bc2c"],
             dp["Wf1T"], dp["tf1c"], dp["Wf2T"], dp["tf2c"], dp["Wf3T"], dp["bf3c"]]
    return pl.pallas_call(
        _decoder_kernel,
        out_shape=jax.ShapeDtypeStruct((B, 6, NF), jnp.float32),
        grid=(B, NF // tn),
        in_specs=[pl.BlockSpec((1, cin, tn), lambda b, t: (b, 0, t)),
                  pl.BlockSpec((1, D1, 1), lambda b, t: (b, 0, 0))]
                + [pl.BlockSpec(w.shape, lambda b, t: (0, 0)) for w in wlist],
        out_specs=pl.BlockSpec((1, 6, tn), lambda b, t: (b, 0, t)),
        compiler_params=pltpu.CompilerParams(
            dimension_semantics=("parallel", "parallel")),
    )(x_cf, bias_dec, *wlist)


# ---------------------------------------------------------------------------
# Plain-JAX glue
# ---------------------------------------------------------------------------
def bn_fold(gamma, beta, mean, var, eps=1e-5):
    scale = gamma / jnp.sqrt(var + eps)
    shift = beta - mean * scale
    return scale, shift


def farthest_point_sampling(points, k):
    # pytorch3d.sample_farthest_points (random_start_point=False): start at index 0,
    # then iteratively pick the point farthest (sq. L2 over all 6 dims) from the set.
    # TODO(synk): FPS is a sequential, data-dependent gather; kept in plain JAX.
    def single(pts):
        def body(j, carry):
            sel, dists = carry
            idx = jnp.argmax(dists).astype(jnp.int32)
            sel = sel.at[j].set(idx)
            d_new = jnp.sum((pts - pts[idx]) ** 2, axis=-1)
            return sel, jnp.minimum(dists, d_new)

        sel0 = jnp.zeros((k,), jnp.int32)
        d0 = jnp.sum((pts - pts[0]) ** 2, axis=-1)
        sel, _ = lax.fori_loop(1, k, body, (sel0, d0))
        return jnp.take(pts, sel, axis=0)

    return jax.vmap(single)(points)


def generate_grid(ratio):
    # Faithful reproduction of the (buggy) torch generate_grid, including `ratio // 1`.
    sqrted = int(math.sqrt(ratio)) + 1
    num_x, num_y = 1, ratio
    for i in reversed(range(1, sqrted + 1)):
        if ratio % i == 0:
            num_x = i
            num_y = ratio // 1
            break
    gx = np.linspace(-0.2, 0.2, num_x, dtype=np.float32)
    gy = np.linspace(-0.2, 0.2, num_y, dtype=np.float32)
    x, y = np.meshgrid(gx, gy, indexing="ij")
    grid = np.stack([x, y], axis=-1).reshape(-1, 2)
    return jnp.asarray(grid)


# ---------------------------------------------------------------------------
# Parameters (deterministic; replaces torch checkpoint / default inits)
# ---------------------------------------------------------------------------
def init_params(key, cfg):
    keys = iter(jax.random.split(key, 64))

    def w(cin, cout):
        return jax.random.normal(next(keys), (cin, cout), jnp.float32) * (0.4 / math.sqrt(cin))

    def b(n):
        return jax.random.normal(next(keys), (n,), jnp.float32) * 0.02

    def bn(n):
        gamma = 1.0 + 0.05 * jax.random.normal(next(keys), (n,), jnp.float32)
        beta = 0.05 * jax.random.normal(next(keys), (n,), jnp.float32)
        mean = 0.05 * jax.random.normal(next(keys), (n,), jnp.float32)
        var = 1.0 + 0.1 * jnp.abs(jax.random.normal(next(keys), (n,), jnp.float32))
        return (gamma, beta, mean, var)

    H1, H2, HB = cfg["H1"], cfg["H2"], cfg["HB"]
    lat, HM, NC = cfg["latent_dim"], cfg["HM"], cfg["num_coarse"]
    FIN, FM = cfg["FMEAN_IN"], cfg["FMEAN"]
    CD, D1, DF, EXP, F1 = cfg["CD_IN"], cfg["D1"], cfg["DF"], cfg["EXP"], cfg["F1"]

    p = {}
    # mlp_conv128_256 (encoder stage 1)
    p["Wa1"], p["bn_a"] = w(6, H1), bn(H1)
    p["Wa2"], p["ba2"] = w(H1, H2), b(H2)
    # mlp_conv512_lat (encoder stage 2)
    p["Wb1"], p["bn_b"] = w(2 * H2, HB), bn(HB)
    p["Wb2"], p["bb2"] = w(HB, lat), b(lat)
    # coarse mlp
    p["Wm1"], p["bm1"] = w(lat, HM), b(HM)
    p["Wm2"], p["bm2"] = w(HM, HM), b(HM)
    p["Wm3"], p["bm3"] = w(HM, NC * 6), b(NC * 6)
    # mean-feature branch.
    # TODO(synk): 'checkpoint/PointAutoEncoder/mean_features.pt' unavailable; synthesized.
    p["feature_size"] = jax.random.normal(next(keys), (1, FIN), jnp.float32)
    p["Wf"], p["bf"], p["bn_feat"] = w(FIN, FM), b(FM), bn(FM)
    # mlp_conv128_64 (decoder stage 1)
    p["Wd1"], p["bn_d"] = w(CD, D1), bn(D1)
    p["Wd2"], p["bd2"] = w(D1, DF), b(DF)
    # contract1 / expand / contract2 (1x1 Conv2d)
    p["Wc1"], p["bc1"] = w(DF, DF), b(DF)
    p["We"], p["be"] = w(DF, EXP), b(EXP)
    p["Wc2"], p["bc2"] = w(EXP, DF), b(DF)
    # final_conv
    p["Wfc1"], p["bn_f1"] = w(DF, F1), bn(F1)
    p["Wfc2"], p["bn_f2"] = w(F1, F1), bn(F1)
    p["Wfc3"], p["bfc3"] = w(F1, 6), b(6)
    return p


def prepare_params(p, cfg):
    """Fold eval-mode BatchNorms into weights/biases and pre-transpose/split weights
    for the two fused kernels.  Done once, outside the forward hot path."""
    lat, H2 = cfg["latent_dim"], cfg["H2"]
    d = {}

    # ---- encoder stage 1: Conv(6->H1, no bias) + BN + ReLU + Conv(H1->H2, bias) ----
    s_a, t_a = bn_fold(*p["bn_a"])
    d["Wa1f"] = p["Wa1"] * s_a[None, :]
    d["ta"] = t_a.reshape(1, -1)
    d["Wa2"], d["ba2"] = p["Wa2"], p["ba2"].reshape(1, -1)

    # ---- encoder stage 2: concat([feats, fglob]) -> Conv(2H2->HB, no bias)+BN+ReLU+Conv ----
    s_b, t_b = bn_fold(*p["bn_b"])
    Wb1f = p["Wb1"] * s_b[None, :]
    d["Wb1t"], d["Wb1b"] = Wb1f[:H2], Wb1f[H2:]          # rows: per-point / global channels
    d["tb"] = t_b.reshape(1, -1)
    d["Wb2"], d["bb2"] = p["Wb2"], p["bb2"].reshape(1, -1)

    # ---- coarse mlp (plain jnp; Dropout = identity in eval mode) ----
    for k in ("Wm1", "bm1", "Wm2", "bm2", "Wm3", "bm3"):
        d[k] = p[k]

    # ---- mean-feature branch: Linear + BN + Dropout + ReLU ----
    sF, tF = bn_fold(*p["bn_feat"])
    d["feature_size"] = p["feature_size"]
    d["Wff"] = p["Wf"] * sF[None, :]
    d["bff"] = p["bf"] * sF + tF

    # ---- decoder Wd1 (Conv 56->D1, no bias) + BN: split rows by input-channel group ----
    s_d, t_d = bn_fold(*p["bn_d"])
    Wd1f = p["Wd1"] * s_d[None, :]
    d["Wd1gpT"] = Wd1f[:8].T                              # (D1, 8) grid+point channels (in-kernel)
    d["Wd1glob"] = Wd1f[8:8 + lat]                        # (lat, D1) broadcast channels -> bias
    d["Wd1mean"] = Wd1f[8 + lat:]                         # (FM, D1)  broadcast channels -> bias
    d["td"] = t_d                                         # (D1,) BN shift goes into the bias

    # ---- rest of the chain, transposed for channels-first matmuls ----
    d["Wd2T"], d["bd2c"] = p["Wd2"].T, p["bd2"].reshape(-1, 1)
    d["Wc1T"], d["bc1c"] = p["Wc1"].T, p["bc1"].reshape(-1, 1)
    d["WeT"], d["bec"] = p["We"].T, p["be"].reshape(-1, 1)
    d["Wc2T"], d["bc2c"] = p["Wc2"].T, p["bc2"].reshape(-1, 1)
    s1, t1 = bn_fold(*p["bn_f1"])
    s2, t2 = bn_fold(*p["bn_f2"])
    d["Wf1T"], d["tf1c"] = (p["Wfc1"] * s1[None, :]).T, t1.reshape(-1, 1)
    d["Wf2T"], d["tf2c"] = (p["Wfc2"] * s2[None, :]).T, t2.reshape(-1, 1)
    d["Wf3T"], d["bf3c"] = p["Wfc3"].T, p["bfc3"].reshape(-1, 1)
    return d


# ---------------------------------------------------------------------------
# Forward pass
# ---------------------------------------------------------------------------
def make_forward(dp, cfg):
    NC = cfg["num_coarse"]
    ratio = cfg["num_dense"] / NC / 2
    n_iters = int(math.log2(ratio))

    @jax.jit
    def fwd(xyz):
        B, N, _ = xyz.shape
        x32 = xyz.astype(jnp.float32)

        # ---- fused encoder (both MLP stages + both global max reductions) ----
        features = encoder_features(x32, dp)                          # (B, latent)

        # ---- coarse mlp (tiny B-row matmuls; Dropout = identity) ----
        h = jnp.maximum(features @ dp["Wm1"] + dp["bm1"], 0.0)
        h = jnp.maximum(h @ dp["Wm2"] + dp["bm2"], 0.0)
        coarse = jnp.tanh(h @ dp["Wm3"] + dp["bm3"]).reshape(B, NC, 6)

        # ---- FPS + z-flip mirror ----
        fps = farthest_point_sampling(x32, NC // 2)                   # (B, NC/2, 6)
        flip = fps * jnp.array([1.0, 1.0, -1.0, 1.0, 1.0, 1.0], jnp.float32)
        coarse2 = jnp.concatenate(
            [jnp.concatenate([fps, flip], axis=1), coarse], axis=1)   # (B, 2NC, 6)

        # ---- mean feature (loop-invariant 1-row linear + folded BN + ReLU) ----
        mf = jnp.maximum(dp["feature_size"] @ dp["Wff"] + dp["bff"], 0.0)   # (1, FM)
        mean_feat = jnp.broadcast_to(mf, (B, cfg["FMEAN"]))

        # ---- loop-invariant per-batch decoder bias: replaces the 48 broadcast
        #      columns (global_feat + mean_feature) of mlp_conv128_64's first conv ----
        bias_dec = features @ dp["Wd1glob"] + mean_feat @ dp["Wd1mean"] + dp["td"]
        bias_dec = bias_dec[:, :, None]                               # (B, D1, 1)

        # ---- refinement loop (one fused kernel per iteration) ----
        fine_cf = None
        for i in range(n_iters):
            num_fine = (2 ** (i + 2)) * NC
            grid = generate_grid(2 ** (i + 1))                        # (G, 2)
            grid_feat = jnp.tile(grid[None], (B, NC, 1))              # (B, num_fine, 2)
            # Exact reproduction of torch: unsqueeze(2), tile(1,1,2,1), reshape(-1,num_fine,6)
            # (iterations >= 1 consume the channels-first `fine` tensor, as in torch).
            point_feat = jnp.tile(coarse2[:, :, None, :], (1, 1, 2, 1)).reshape(B, num_fine, 6)
            x_cf = jnp.transpose(
                jnp.concatenate([grid_feat, point_feat], axis=2), (0, 2, 1))   # (B, 8, num_fine)
            fine_cf = decoder_chain(x_cf, bias_dec, dp)               # (B, 6, num_fine)
            coarse2 = fine_cf                                         # torch: coarse2 = fine

        # returns: coarse (B, NC, 6), fine.transpose(2,1) (B, num_dense, 6)
        fine_pts = jnp.transpose(fine_cf, (0, 2, 1))
        return coarse, fine_pts

    return fwd


# ---------------------------------------------------------------------------
if __name__ == "__main__":
    cfg = dict(num_dense=64, num_coarse=8, latent_dim=32,
               H1=16, H2=32, HB=64, HM=32,
               FMEAN_IN=32, FMEAN=16,
               D1=32, DF=16, EXP=32, F1=32)
    cfg["CD_IN"] = 2 + 6 + cfg["latent_dim"] + cfg["FMEAN"]   # 56

    key = jax.random.PRNGKey(0)
    pkey, xkey = jax.random.split(key)
    params = init_params(pkey, cfg)
    dparams = prepare_params(params, cfg)                     # BN folding, done once

    B, N = 2, 64
    xyz = jax.random.normal(xkey, (B, N, 6), jnp.float32)     # (B, N, 6) point cloud

    fwd = make_forward(dparams, cfg)
    coarse, fine = fwd(xyz)
    jax.block_until_ready((coarse, fine))

    assert coarse.shape == (B, cfg["num_coarse"], 6), coarse.shape
    assert fine.shape == (B, cfg["num_dense"], 6), fine.shape
    assert bool(jnp.all(jnp.isfinite(coarse))) and bool(jnp.all(jnp.isfinite(fine)))
    print("KERNEL_OK")
</pallas_src>

<mosaic_0001>
module attributes {stable_mosaic.version = 11 : i64} {
  func.func @_encoder_kernel(%arg0: i32, %arg1: memref<1x64x6xf32, #tpu.memory_space<vmem>>, %arg2: memref<6x16xf32, #tpu.memory_space<vmem>>, %arg3: memref<1x16xf32, #tpu.memory_space<vmem>>, %arg4: memref<16x32xf32, #tpu.memory_space<vmem>>, %arg5: memref<1x32xf32, #tpu.memory_space<vmem>>, %arg6: memref<32x64xf32, #tpu.memory_space<vmem>>, %arg7: memref<32x64xf32, #tpu.memory_space<vmem>>, %arg8: memref<1x64xf32, #tpu.memory_space<vmem>>, %arg9: memref<64x32xf32, #tpu.memory_space<vmem>>, %arg10: memref<1x32xf32, #tpu.memory_space<vmem>>, %arg11: memref<1x1x32xf32, #tpu.memory_space<vmem>>) attributes {dimension_semantics = [#tpu.dimension_semantics<parallel>], iteration_bounds = array<i64: 2>, scalar_prefetch = 0 : i64, scratch_operands = 0 : i64, tpu.core_type = #tpu.core_type<tc>, window_params = [{transform_indices = @transform_0, window_bounds = array<i64: 1, 64, 6>}, {pipeline_mode = #tpu.pipeline_mode<synchronous>, transform_indices = @transform_1, window_bounds = array<i64: 6, 16>}, {pipeline_mode = #tpu.pipeline_mode<synchronous>, transform_indices = @transform_2, window_bounds = array<i64: 1, 16>}, {pipeline_mode = #tpu.pipeline_mode<synchronous>, transform_indices = @transform_3, window_bounds = array<i64: 16, 32>}, {pipeline_mode = #tpu.pipeline_mode<synchronous>, transform_indices = @transform_4, window_bounds = array<i64: 1, 32>}, {pipeline_mode = #tpu.pipeline_mode<synchronous>, transform_indices = @transform_5, window_bounds = array<i64: 32, 64>}, {pipeline_mode = #tpu.pipeline_mode<synchronous>, transform_indices = @transform_6, window_bounds = array<i64: 32, 64>}, {pipeline_mode = #tpu.pipeline_mode<synchronous>, transform_indices = @transform_7, window_bounds = array<i64: 1, 64>}, {pipeline_mode = #tpu.pipeline_mode<synchronous>, transform_indices = @transform_8, window_bounds = array<i64: 64, 32>}, {pipeline_mode = #tpu.pipeline_mode<synchronous>, transform_indices = @transform_9, window_bounds = array<i64: 1, 32>}, {transform_indices = @transform_10, window_bounds = array<i64: 1, 1, 32>}]} {
    %c0 = arith.constant 0 : index
    %c0_0 = arith.constant 0 : index
    %c0_1 = arith.constant 0 : index
    %0 = vector.load %arg1[%c0, %c0_0, %c0_1] : memref<1x64x6xf32, #tpu.memory_space<vmem>>, vector<1x64x6xf32>
    %1 = vector.shape_cast %0 : vector<1x64x6xf32> to vector<64x6xf32>
    %c0_2 = arith.constant 0 : index
    %c0_3 = arith.constant 0 : index
    %2 = vector.load %arg2[%c0_2, %c0_3] : memref<6x16xf32, #tpu.memory_space<vmem>>, vector<6x16xf32>
    %cst = arith.constant dense<0.000000e+00> : vector<64x16xf32>
    %3 = tpu.matmul %1, %2, %cst {dimension_numbers = #tpu.dot_dimension_numbers<[1], [0], [0], [1], [0, 0, 1, 1], [], []>} : vector<64x6xf32>, vector<6x16xf32>, vector<64x16xf32> -> vector<64x16xf32>
    %c0_4 = arith.constant 0 : index
    %c0_5 = arith.constant 0 : index
    %4 = vector.load %arg3[%c0_4, %c0_5] : memref<1x16xf32, #tpu.memory_space<vmem>>, vector<1x16xf32>
    %5 = vector.broadcast %4 : vector<1x16xf32> to vector<64x16xf32>
    %6 = arith.addf %3, %5 : vector<64x16xf32>
    %cst_6 = arith.constant 0.000000e+00 : f32
    %7 = vector.broadcast %cst_6 : f32 to vector<64x16xf32>
    %8 = arith.maximumf %6, %7 : vector<64x16xf32>
    %c0_7 = arith.constant 0 : index
    %c0_8 = arith.constant 0 : index
    %9 = vector.load %arg4[%c0_7, %c0_8] : memref<16x32xf32, #tpu.memory_space<vmem>>, vector<16x32xf32>
    %cst_9 = arith.constant dense<0.000000e+00> : vector<64x32xf32>
    %10 = tpu.matmul %8, %9, %cst_9 {dimension_numbers = #tpu.dot_dimension_numbers<[1], [0], [0], [1], [0, 0, 1, 1], [], []>} : vector<64x16xf32>, vector<16x32xf32>, vector<64x32xf32> -> vector<64x32xf32>
    %c0_10 = arith.constant 0 : index
    %c0_11 = arith.constant 0 : index
    %11 = vector.load %arg5[%c0_10, %c0_11] : memref<1x32xf32, #tpu.memory_space<vmem>>, vector<1x32xf32>
    %12 = vector.broadcast %11 : vector<1x32xf32> to vector<64x32xf32>
    %13 = arith.addf %10, %12 : vector<64x32xf32>
    %cst_12 = arith.constant dense<0xFF800000> : vector<32xf32>
    %14 = vector.multi_reduction <maximumf>, %13, %cst_12 [0] : vector<64x32xf32> to vector<32xf32>
    %15 = vector.shape_cast %14 : vector<32xf32> to vector<1x32xf32>
    %c0_13 = arith.constant 0 : index
    %c0_14 = arith.constant 0 : index
    %16 = vector.load %arg6[%c0_13, %c0_14] : memref<32x64xf32, #tpu.memory_space<vmem>>, vector<32x64xf32>
    %cst_15 = arith.constant dense<0.000000e+00> : vector<64x64xf32>
    %17 = tpu.matmul %13, %16, %cst_15 {dimension_numbers = #tpu.dot_dimension_numbers<[1], [0], [0], [1], [0, 0, 1, 1], [], []>} : vector<64x32xf32>, vector<32x64xf32>, vector<64x64xf32> -> vector<64x64xf32>
    %c0_16 = arith.constant 0 : index
    %c0_17 = arith.constant 0 : index
    %18 = vector.load %arg7[%c0_16, %c0_17] : memref<32x64xf32, #tpu.memory_space<vmem>>, vector<32x64xf32>
    %cst_18 = arith.constant dense<0.000000e+00> : vector<1x64xf32>
    %19 = tpu.matmul %15, %18, %cst_18 {dimension_numbers = #tpu.dot_dimension_numbers<[1], [0], [0], [1], [0, 0, 1, 1], [], []>} : vector<1x32xf32>, vector<32x64xf32>, vector<1x64xf32> -> vector<1x64xf32>
    %20 = vector.broadcast %19 : vector<1x64xf32> to vector<64x64xf32>
    %21 = arith.addf %17, %20 : vector<64x64xf32>
    %c0_19 = arith.constant 0 : index
    %c0_20 = arith.constant 0 : index
    %22 = vector.load %arg8[%c0_19, %c0_20] : memref<1x64xf32, #tpu.memory_space<vmem>>, vector<1x64xf32>
    %23 = vector.broadcast %22 : vector<1x64xf32> to vector<64x64xf32>
    %24 = arith.addf %21, %23 : vector<64x64xf32>
    %cst_21 = arith.constant 0.000000e+00 : f32
    %25 = vector.broadcast %cst_21 : f32 to vector<64x64xf32>
    %26 = arith.maximumf %24, %25 : vector<64x64xf32>
    %c0_22 = arith.constant 0 : index
    %c0_23 = arith.constant 0 : index
    %27 = vector.load %arg9[%c0_22, %c0_23] : memref<64x32xf32, #tpu.memory_space<vmem>>, vector<64x32xf32>
    %cst_24 = arith.constant dense<0.000000e+00> : vector<64x32xf32>
    %28 = tpu.matmul %26, %27, %cst_24 {dimension_numbers = #tpu.dot_dimension_numbers<[1], [0], [0], [1], [0, 0, 1, 1], [], []>} : vector<64x64xf32>, vector<64x32xf32>, vector<64x32xf32> -> vector<64x32xf32>
    %c0_25 = arith.constant 0 : index
    %c0_26 = arith.constant 0 : index
    %29 = vector.load %arg10[%c0_25, %c0_26] : memref<1x32xf32, #tpu.memory_space<vmem>>, vector<1x32xf32>
    %30 = vector.broadcast %29 : vector<1x32xf32> to vector<64x32xf32>
    %31 = arith.addf %28, %30 : vector<64x32xf32>
    %cst_27 = arith.constant dense<0xFF800000> : vector<32xf32>
    %32 = vector.multi_reduction <maximumf>, %31, %cst_27 [0] : vector<64x32xf32> to vector<32xf32>
    %33 = vector.shape_cast %32 : vector<32xf32> to vector<1x32xf32>
    %c0_28 = arith.constant 0 : index
    %c0_29 = arith.constant 0 : index
    %c0_30 = arith.constant 0 : index
    %34 = vector.load %arg11[%c0_28, %c0_29, %c0_30] : memref<1x1x32xf32, #tpu.memory_space<vmem>>, vector<1x1x32xf32>
    %35 = vector.shape_cast %34 : vector<1x1x32xf32> to vector<1x32xf32>
    %36 = vector.shape_cast %33 : vector<1x32xf32> to vector<1x1x32xf32>
    tpu.vector_store %arg11[%c0_28, %c0_29, %c0_30], %36 {strides = array<i32>} : memref<1x1x32xf32, #tpu.memory_space<vmem>>, vector<1x1x32xf32>,
    return
  }
  func.func @transform_0(%arg0: i32) -> (i32, i32, i32) {
    %c0_i32 = arith.constant 0 : i32
    %c0_i32_0 = arith.constant 0 : i32
    %c0_i32_1 = arith.constant 0 : i32
    return %arg0, %c0_i32, %c0_i32_0 : i32, i32, i32
  }
  func.func @transform_1(%arg0: i32) -> (i32, i32) {
    %c0_i32 = arith.constant 0 : i32
    %c0_i32_0 = arith.constant 0 : i32
    %c0_i32_1 = arith.constant 0 : i32
    return %c0_i32, %c0_i32_0 : i32, i32
  }
  func.func @transform_2(%arg0: i32) -> (i32, i32) {
    %c0_i32 = arith.constant 0 : i32
    %c0_i32_0 = arith.constant 0 : i32
    %c0_i32_1 = arith.constant 0 : i32
    return %c0_i32, %c0_i32_0 : i32, i32
  }
  func.func @transform_3(%arg0: i32) -> (i32, i32) {
    %c0_i32 = arith.constant 0 : i32
    %c0_i32_0 = arith.constant 0 : i32
    %c0_i32_1 = arith.constant 0 : i32
    return %c0_i32, %c0_i32_0 : i32, i32
  }
  func.func @transform_4(%arg0: i32) -> (i32, i32) {
    %c0_i32 = arith.constant 0 : i32
    %c0_i32_0 = arith.constant 0 : i32
    %c0_i32_1 = arith.constant 0 : i32
    return %c0_i32, %c0_i32_0 : i32, i32
  }
  func.func @transform_5(%arg0: i32) -> (i32, i32) {
    %c0_i32 = arith.constant 0 : i32
    %c0_i32_0 = arith.constant 0 : i32
    %c0_i32_1 = arith.constant 0 : i32
    return %c0_i32, %c0_i32_0 : i32, i32
  }
  func.func @transform_6(%arg0: i32) -> (i32, i32) {
    %c0_i32 = arith.constant 0 : i32
    %c0_i32_0 = arith.constant 0 : i32
    %c0_i32_1 = arith.constant 0 : i32
    return %c0_i32, %c0_i32_0 : i32, i32
  }
  func.func @transform_7(%arg0: i32) -> (i32, i32) {
    %c0_i32 = arith.constant 0 : i32
    %c0_i32_0 = arith.constant 0 : i32
    %c0_i32_1 = arith.constant 0 : i32
    return %c0_i32, %c0_i32_0 : i32, i32
  }
  func.func @transform_8(%arg0: i32) -> (i32, i32) {
    %c0_i32 = arith.constant 0 : i32
    %c0_i32_0 = arith.constant 0 : i32
    %c0_i32_1 = arith.constant 0 : i32
    return %c0_i32, %c0_i32_0 : i32, i32
  }
  func.func @transform_9(%arg0: i32) -> (i32, i32) {
    %c0_i32 = arith.constant 0 : i32
    %c0_i32_0 = arith.constant 0 : i32
    %c0_i32_1 = arith.constant 0 : i32
    return %c0_i32, %c0_i32_0 : i32, i32
  }
  func.func @transform_10(%arg0: i32) -> (i32, i32, i32) {
    %c0_i32 = arith.constant 0 : i32
    %c0_i32_0 = arith.constant 0 : i32
    %c0_i32_1 = arith.constant 0 : i32
    return %arg0, %c0_i32, %c0_i32_0 : i32, i32, i32
  }
}

module attributes {stable_mosaic.version = 11 : i64} {
  func.func @_decoder_kernel(%arg0: i32, %arg1: i32, %arg2: memref<1x8x64xf32, #tpu.memory_space<vmem>>, %arg3: memref<1x32x1xf32, #tpu.memory_space<vmem>>, %arg4: memref<32x8xf32, #tpu.memory_space<vmem>>, %arg5: memref<16x32xf32, #tpu.memory_space<vmem>>, %arg6: memref<16x1xf32, #tpu.memory_space<vmem>>, %arg7: memref<16x16xf32, #tpu.memory_space<vmem>>, %arg8: memref<16x1xf32, #tpu.memory_space<vmem>>, %arg9: memref<32x16xf32, #tpu.memory_space<vmem>>, %arg10: memref<32x1xf32, #tpu.memory_space<vmem>>, %arg11: memref<16x32xf32, #tpu.memory_space<vmem>>, %arg12: memref<16x1xf32, #tpu.memory_space<vmem>>, %arg13: memref<32x16xf32, #tpu.memory_space<vmem>>, %arg14: memref<32x1xf32, #tpu.memory_space<vmem>>, %arg15: memref<32x32xf32, #tpu.memory_space<vmem>>, %arg16: memref<32x1xf32, #tpu.memory_space<vmem>>, %arg17: memref<6x32xf32, #tpu.memory_space<vmem>>, %arg18: memref<6x1xf32, #tpu.memory_space<vmem>>, %arg19: memref<1x6x64xf32, #tpu.memory_space<vmem>>) attributes {dimension_semantics = [#tpu.dimension_semantics<parallel>, #tpu.dimension_semantics<parallel>], iteration_bounds = array<i64: 2, 1>, scalar_prefetch = 0 : i64, scratch_operands = 0 : i64, tpu.core_type = #tpu.core_type<tc>, window_params = [{transform_indices = @transform_0, window_bounds = array<i64: 1, 8, 64>}, {transform_indices = @transform_1, window_bounds = array<i64: 1, 32, 1>}, {pipeline_mode = #tpu.pipeline_mode<synchronous>, transform_indices = @transform_2, window_bounds = array<i64: 32, 8>}, {pipeline_mode = #tpu.pipeline_mode<synchronous>, transform_indices = @transform_3, window_bounds = array<i64: 16, 32>}, {pipeline_mode = #tpu.pipeline_mode<synchronous>, transform_indices = @transform_4, window_bounds = array<i64: 16, 1>}, {pipeline_mode = #tpu.pipeline_mode<synchronous>, transform_indices = @transform_5, window_bounds = array<i64: 16, 16>}, {pipeline_mode = #tpu.pipeline_mode<synchronous>, transform_indices = @transform_6, window_bounds = array<i64: 16, 1>}, {pipeline_mode = #tpu.pipeline_mode<synchronous>, transform_indices = @transform_7, window_bounds = array<i64: 32, 16>}, {pipeline_mode = #tpu.pipeline_mode<synchronous>, transform_indices = @transform_8, window_bounds = array<i64: 32, 1>}, {pipeline_mode = #tpu.pipeline_mode<synchronous>, transform_indices = @transform_9, window_bounds = array<i64: 16, 32>}, {pipeline_mode = #tpu.pipeline_mode<synchronous>, transform_indices = @transform_10, window_bounds = array<i64: 16, 1>}, {pipeline_mode = #tpu.pipeline_mode<synchronous>, transform_indices = @transform_11, window_bounds = array<i64: 32, 16>}, {pipeline_mode = #tpu.pipeline_mode<synchronous>, transform_indices = @transform_12, window_bounds = array<i64: 32, 1>}, {pipeline_mode = #tpu.pipeline_mode<synchronous>, transform_indices = @transform_13, window_bounds = array<i64: 32, 32>}, {pipeline_mode = #tpu.pipeline_mode<synchronous>, transform_indices = @transform_14, window_bounds = array<i64: 32, 1>}, {pipeline_mode = #tpu.pipeline_mode<synchronous>, transform_indices = @transform_15, window_bounds = array<i64: 6, 32>}, {pipeline_mode = #tpu.pipeline_mode<synchronous>, transform_indices = @transform_16, window_bounds = array<i64: 6, 1>}, {transform_indices = @transform_17, window_bounds = array<i64: 1, 6, 64>}]} {
    %c0 = arith.constant 0 : index
    %c0_0 = arith.constant 0 : index
    %c0_1 = arith.constant 0 : index
    %0 = vector.load %arg2[%c0, %c0_0, %c0_1] : memref<1x8x64xf32, #tpu.memory_space<vmem>>, vector<1x8x64xf32>
    %1 = vector.shape_cast %0 : vector<1x8x64xf32> to vector<8x64xf32>
    %c0_2 = arith.constant 0 : index
    %c0_3 = arith.constant 0 : index
    %2 = vector.load %arg4[%c0_2, %c0_3] : memref<32x8xf32, #tpu.memory_space<vmem>>, vector<32x8xf32>
    %cst = arith.constant dense<0.000000e+00> : vector<32x64xf32>
    %3 = tpu.matmul %2, %1, %cst {dimension_numbers = #tpu.dot_dimension_numbers<[1], [0], [0], [1], [0, 0, 1, 1], [], []>} : vector<32x8xf32>, vector<8x64xf32>, vector<32x64xf32> -> vector<32x64xf32>
    %c0_4 = arith.constant 0 : index
    %c0_5 = arith.constant 0 : index
    %c0_6 = arith.constant 0 : index
    %4 = vector.load %arg3[%c0_4, %c0_5, %c0_6] : memref<1x32x1xf32, #tpu.memory_space<vmem>>, vector<1x32x1xf32>
    %5 = vector.shape_cast %4 : vector<1x32x1xf32> to vector<32x1xf32>
    %6 = vector.broadcast %5 : vector<32x1xf32> to vector<32x64xf32>
    %7 = arith.addf %3, %6 : vector<32x64xf32>
    %cst_7 = arith.constant 0.000000e+00 : f32
    %8 = vector.broadcast %cst_7 : f32 to vector<32x64xf32>
    %9 = arith.maximumf %7, %8 : vector<32x64xf32>
    %c0_8 = arith.constant 0 : index
    %c0_9 = arith.constant 0 : index
    %10 = vector.load %arg5[%c0_8, %c0_9] : memref<16x32xf32, #tpu.memory_space<vmem>>, vector<16x32xf32>
    %cst_10 = arith.constant dense<0.000000e+00> : vector<16x64xf32>
    %11 = tpu.matmul %10, %9, %cst_10 {dimension_numbers = #tpu.dot_dimension_numbers<[1], [0], [0], [1], [0, 0, 1, 1], [], []>} : vector<16x32xf32>, vector<32x64xf32>, vector<16x64xf32> -> vector<16x64xf32>
    %c0_11 = arith.constant 0 : index
    %c0_12 = arith.constant 0 : index
    %12 = vector.load %arg6[%c0_11, %c0_12] : memref<16x1xf32, #tpu.memory_space<vmem>>, vector<16x1xf32>
    %13 = vector.broadcast %12 : vector<16x1xf32> to vector<16x64xf32>
    %14 = arith.addf %11, %13 : vector<16x64xf32>
    %c0_13 = arith.constant 0 : index
    %c0_14 = arith.constant 0 : index
    %15 = vector.load %arg7[%c0_13, %c0_14] : memref<16x16xf32, #tpu.memory_space<vmem>>, vector<16x16xf32>
    %cst_15 = arith.constant dense<0.000000e+00> : vector<16x64xf32>
    %16 = tpu.matmul %15, %14, %cst_15 {dimension_numbers = #tpu.dot_dimension_numbers<[1], [0], [0], [1], [0, 0, 1, 1], [], []>} : vector<16x16xf32>, vector<16x64xf32>, vector<16x64xf32> -> vector<16x64xf32>
    %c0_16 = arith.constant 0 : index
    %c0_17 = arith.constant 0 : index
    %17 = vector.load %arg8[%c0_16, %c0_17] : memref<16x1xf32, #tpu.memory_space<vmem>>, vector<16x1xf32>
    %18 = vector.broadcast %17 : vector<16x1xf32> to vector<16x64xf32>
    %19 = arith.addf %16, %18 : vector<16x64xf32>
    %cst_18 = arith.constant 0.000000e+00 : f32
    %20 = vector.broadcast %cst_18 : f32 to vector<16x64xf32>
    %21 = arith.maximumf %19, %20 : vector<16x64xf32>
    %c0_19 = arith.constant 0 : index
    %c0_20 = arith.constant 0 : index
    %22 = vector.load %arg9[%c0_19, %c0_20] : memref<32x16xf32, #tpu.memory_space<vmem>>, vector<32x16xf32>
    %cst_21 = arith.constant dense<0.000000e+00> : vector<32x64xf32>
    %23 = tpu.matmul %22, %21, %cst_21 {dimension_numbers = #tpu.dot_dimension_numbers<[1], [0], [0], [1], [0, 0, 1, 1], [], []>} : vector<32x16xf32>, vector<16x64xf32>, vector<32x64xf32> -> vector<32x64xf32>
    %c0_22 = arith.constant 0 : index
    %c0_23 = arith.constant 0 : index
    %24 = vector.load %arg10[%c0_22, %c0_23] : memref<32x1xf32, #tpu.memory_space<vmem>>, vector<32x1xf32>
    %25 = vector.broadcast %24 : vector<32x1xf32> to vector<32x64xf32>
    %26 = arith.addf %23, %25 : vector<32x64xf32>
    %cst_24 = arith.constant 0.000000e+00 : f32
    %27 = vector.broadcast %cst_24 : f32 to vector<32x64xf32>
    %28 = arith.maximumf %26, %27 : vector<32x64xf32>
    %c0_25 = arith.constant 0 : index
    %c0_26 = arith.constant 0 : index
    %29 = vector.load %arg11[%c0_25, %c0_26] : memref<16x32xf32, #tpu.memory_space<vmem>>, vector<16x32xf32>
    %cst_27 = arith.constant dense<0.000000e+00> : vector<16x64xf32>
    %30 = tpu.matmul %29, %28, %cst_27 {dimension_numbers = #tpu.dot_dimension_numbers<[1], [0], [0], [1], [0, 0, 1, 1], [], []>} : vector<16x32xf32>, vector<32x64xf32>, vector<16x64xf32> -> vector<16x64xf32>
    %c0_28 = arith.constant 0 : index
    %c0_29 = arith.constant 0 : index
    %31 = vector.load %arg12[%c0_28, %c0_29] : memref<16x1xf32, #tpu.memory_space<vmem>>, vector<16x1xf32>
    %32 = vector.broadcast %31 : vector<16x1xf32> to vector<16x64xf32>
    %33 = arith.addf %30, %32 : vector<16x64xf32>
    %cst_30 = arith.constant 0.000000e+00 : f32
    %34 = vector.broadcast %cst_30 : f32 to vector<16x64xf32>
    %35 = arith.maximumf %33, %34 : vector<16x64xf32>
    %36 = arith.addf %14, %35 : vector<16x64xf32>
    %c0_31 = arith.constant 0 : index
    %c0_32 = arith.constant 0 : index
    %37 = vector.load %arg13[%c0_31, %c0_32] : memref<32x16xf32, #tpu.memory_space<vmem>>, vector<32x16xf32>
    %cst_33 = arith.constant dense<0.000000e+00> : vector<32x64xf32>
    %38 = tpu.matmul %37, %36, %cst_33 {dimension_numbers = #tpu.dot_dimension_numbers<[1], [0], [0], [1], [0, 0, 1, 1], [], []>} : vector<32x16xf32>, vector<16x64xf32>, vector<32x64xf32> -> vector<32x64xf32>
    %c0_34 = arith.constant 0 : index
    %c0_35 = arith.constant 0 : index
    %39 = vector.load %arg14[%c0_34, %c0_35] : memref<32x1xf32, #tpu.memory_space<vmem>>, vector<32x1xf32>
    %40 = vector.broadcast %39 : vector<32x1xf32> to vector<32x64xf32>
    %41 = arith.addf %38, %40 : vector<32x64xf32>
    %cst_36 = arith.constant 0.000000e+00 : f32
    %42 = vector.broadcast %cst_36 : f32 to vector<32x64xf32>
    %43 = arith.maximumf %41, %42 : vector<32x64xf32>
    %c0_37 = arith.constant 0 : index
    %c0_38 = arith.constant 0 : index
    %44 = vector.load %arg15[%c0_37, %c0_38] : memref<32x32xf32, #tpu.memory_space<vmem>>, vector<32x32xf32>
    %cst_39 = arith.constant dense<0.000000e+00> : vector<32x64xf32>
    %45 = tpu.matmul %44, %43, %cst_39 {dimension_numbers = #tpu.dot_dimension_numbers<[1], [0], [0], [1], [0, 0, 1, 1], [], []>} : vector<32x32xf32>, vector<32x64xf32>, vector<32x64xf32> -> vector<32x64xf32>
    %c0_40 = arith.constant 0 : index
    %c0_41 = arith.constant 0 : index
    %46 = vector.load %arg16[%c0_40, %c0_41] : memref<32x1xf32, #tpu.memory_space<vmem>>, vector<32x1xf32>
    %47 = vector.broadcast %46 : vector<32x1xf32> to vector<32x64xf32>
    %48 = arith.addf %45, %47 : vector<32x64xf32>
    %cst_42 = arith.constant 0.000000e+00 : f32
    %49 = vector.broadcast %cst_42 : f32 to vector<32x64xf32>
    %50 = arith.maximumf %48, %49 : vector<32x64xf32>
    %c0_43 = arith.constant 0 : index
    %c0_44 = arith.constant 0 : index
    %51 = vector.load %arg17[%c0_43, %c0_44] : memref<6x32xf32, #tpu.memory_space<vmem>>, vector<6x32xf32>
    %cst_45 = arith.constant dense<0.000000e+00> : vector<6x64xf32>
    %52 = tpu.matmul %51, %50, %cst_45 {dimension_numbers = #tpu.dot_dimension_numbers<[1], [0], [0], [1], [0, 0, 1, 1], [], []>} : vector<6x32xf32>, vector<32x64xf32>, vector<6x64xf32> -> vector<6x64xf32>
    %c0_46 = arith.constant 0 : index
    %c0_47 = arith.constant 0 : index
    %53 = vector.load %arg18[%c0_46, %c0_47] : memref<6x1xf32, #tpu.memory_space<vmem>>, vector<6x1xf32>
    %54 = vector.broadcast %53 : vector<6x1xf32> to vector<6x64xf32>
    %55 = arith.addf %52, %54 : vector<6x64xf32>
    %c0_48 = arith.constant 0 : index
    %c0_49 = arith.constant 0 : index
    %c0_50 = arith.constant 0 : index
    %56 = vector.load %arg19[%c0_48, %c0_49, %c0_50] : memref<1x6x64xf32, #tpu.memory_space<vmem>>, vector<1x6x64xf32>
    %57 = vector.shape_cast %56 : vector<1x6x64xf32> to vector<6x64xf32>
    %58 = vector.shape_cast %55 : vector<6x64xf32> to vector<1x6x64xf32>
    tpu.vector_store %arg19[%c0_48, %c0_49, %c0_50], %58 {strides = array<i32>} : memref<1x6x64xf32, #tpu.memory_space<vmem>>, vector<1x6x64xf32>,
    return
  }
  func.func @transform_0(%arg0: i32, %arg1: i32) -> (i32, i32, i32) {
    %c0_i32 = arith.constant 0 : i32
    %c0_i32_0 = arith.constant 0 : i32
    return %arg0, %c0_i32, %arg1 : i32, i32, i32
  }
  func.func @transform_1(%arg0: i32, %arg1: i32) -> (i32, i32, i32) {
    %c0_i32 = arith.constant 0 : i32
    %c0_i32_0 = arith.constant 0 : i32
    %c0_i32_1 = arith.constant 0 : i32
    return %arg0, %c0_i32, %c0_i32_0 : i32, i32, i32
  }
  func.func @transform_2(%arg0: i32, %arg1: i32) -> (i32, i32) {
    %c0_i32 = arith.constant 0 : i32
    %c0_i32_0 = arith.constant 0 : i32
    %c0_i32_1 = arith.constant 0 : i32
    return %c0_i32, %c0_i32_0 : i32, i32
  }
  func.func @transform_3(%arg0: i32, %arg1: i32) -> (i32, i32) {
    %c0_i32 = arith.constant 0 : i32
    %c0_i32_0 = arith.constant 0 : i32
    %c0_i32_1 = arith.constant 0 : i32
    return %c0_i32, %c0_i32_0 : i32, i32
  }
  func.func @transform_4(%arg0: i32, %arg1: i32) -> (i32, i32) {
    %c0_i32 = arith.constant 0 : i32
    %c0_i32_0 = arith.constant 0 : i32
    %c0_i32_1 = arith.constant 0 : i32
    return %c0_i32, %c0_i32_0 : i32, i32
  }
  func.func @transform_5(%arg0: i32, %arg1: i32) -> (i32, i32) {
    %c0_i32 = arith.constant 0 : i32
    %c0_i32_0 = arith.constant 0 : i32
    %c0_i32_1 = arith.constant 0 : i32
    return %c0_i32, %c0_i32_0 : i32, i32
  }
  func.func @transform_6(%arg0: i32, %arg1: i32) -> (i32, i32) {
    %c0_i32 = arith.constant 0 : i32
    %c0_i32_0 = arith.constant 0 : i32
    %c0_i32_1 = arith.constant 0 : i32
    return %c0_i32, %c0_i32_0 : i32, i32
  }
  func.func @transform_7(%arg0: i32, %arg1: i32) -> (i32, i32) {
    %c0_i32 = arith.constant 0 : i32
    %c0_i32_0 = arith.constant 0 : i32
    %c0_i32_1 = arith.constant 0 : i32
    return %c0_i32, %c0_i32_0 : i32, i32
  }
  func.func @transform_8(%arg0: i32, %arg1: i32) -> (i32, i32) {
    %c0_i32 = arith.constant 0 : i32
    %c0_i32_0 = arith.constant 0 : i32
    %c0_i32_1 = arith.constant 0 : i32
    return %c0_i32, %c0_i32_0 : i32, i32
  }
  func.func @transform_9(%arg0: i32, %arg1: i32) -> (i32, i32) {
    %c0_i32 = arith.constant 0 : i32
    %c0_i32_0 = arith.constant 0 : i32
    %c0_i32_1 = arith.constant 0 : i32
    return %c0_i32, %c0_i32_0 : i32, i32
  }
  func.func @transform_10(%arg0: i32, %arg1: i32) -> (i32, i32) {
    %c0_i32 = arith.constant 0 : i32
    %c0_i32_0 = arith.constant 0 : i32
    %c0_i32_1 = arith.constant 0 : i32
    return %c0_i32, %c0_i32_0 : i32, i32
  }
  func.func @transform_11(%arg0: i32, %arg1: i32) -> (i32, i32) {
    %c0_i32 = arith.constant 0 : i32
    %c0_i32_0 = arith.constant 0 : i32
    %c0_i32_1 = arith.constant 0 : i32
    return %c0_i32, %c0_i32_0 : i32, i32
  }
  func.func @transform_12(%arg0: i32, %arg1: i32) -> (i32, i32) {
    %c0_i32 = arith.constant 0 : i32
    %c0_i32_0 = arith.constant 0 : i32
    %c0_i32_1 = arith.constant 0 : i32
    return %c0_i32, %c0_i32_0 : i32, i32
  }
  func.func @transform_13(%arg0: i32, %arg1: i32) -> (i32, i32) {
    %c0_i32 = arith.constant 0 : i32
    %c0_i32_0 = arith.constant 0 : i32
    %c0_i32_1 = arith.constant 0 : i32
    return %c0_i32, %c0_i32_0 : i32, i32
  }
  func.func @transform_14(%arg0: i32, %arg1: i32) -> (i32, i32) {
    %c0_i32 = arith.constant 0 : i32
    %c0_i32_0 = arith.constant 0 : i32
    %c0_i32_1 = arith.constant 0 : i32
    return %c0_i32, %c0_i32_0 : i32, i32
  }
  func.func @transform_15(%arg0: i32, %arg1: i32) -> (i32, i32) {
    %c0_i32 = arith.constant 0 : i32
    %c0_i32_0 = arith.constant 0 : i32
    %c0_i32_1 = arith.constant 0 : i32
    return %c0_i32, %c0_i32_0 : i32, i32
  }
  func.func @transform_16(%arg0: i32, %arg1: i32) -> (i32, i32) {
    %c0_i32 = arith.constant 0 : i32
    %c0_i32_0 = arith.constant 0 : i32
    %c0_i32_1 = arith.constant 0 : i32
    return %c0_i32, %c0_i32_0 : i32, i32
  }
  func.func @transform_17(%arg0: i32, %arg1: i32) -> (i32, i32, i32) {
    %c0_i32 = arith.constant 0 : i32
    %c0_i32_0 = arith.constant 0 : i32
    return %arg0, %c0_i32, %arg1 : i32, i32, i32
  }
}

module attributes {stable_mosaic.version = 11 : i64} {
  func.func @_decoder_kernel(%arg0: i32, %arg1: i32, %arg2: memref<1x8x32xf32, #tpu.memory_space<vmem>>, %arg3: memref<1x32x1xf32, #tpu.memory_space<vmem>>, %arg4: memref<32x8xf32, #tpu.memory_space<vmem>>, %arg5: memref<16x32xf32, #tpu.memory_space<vmem>>, %arg6: memref<16x1xf32, #tpu.memory_space<vmem>>, %arg7: memref<16x16xf32, #tpu.memory_space<vmem>>, %arg8: memref<16x1xf32, #tpu.memory_space<vmem>>, %arg9: memref<32x16xf32, #tpu.memory_space<vmem>>, %arg10: memref<32x1xf32, #tpu.memory_space<vmem>>, %arg11: memref<16x32xf32, #tpu.memory_space<vmem>>, %arg12: memref<16x1xf32, #tpu.memory_space<vmem>>, %arg13: memref<32x16xf32, #tpu.memory_space<vmem>>, %arg14: memref<32x1xf32, #tpu.memory_space<vmem>>, %arg15: memref<32x32xf32, #tpu.memory_space<vmem>>, %arg16: memref<32x1xf32, #tpu.memory_space<vmem>>, %arg17: memref<6x32xf32, #tpu.memory_space<vmem>>, %arg18: memref<6x1xf32, #tpu.memory_space<vmem>>, %arg19: memref<1x6x32xf32, #tpu.memory_space<vmem>>) attributes {dimension_semantics = [#tpu.dimension_semantics<parallel>, #tpu.dimension_semantics<parallel>], iteration_bounds = array<i64: 2, 1>, scalar_prefetch = 0 : i64, scratch_operands = 0 : i64, tpu.core_type = #tpu.core_type<tc>, window_params = [{transform_indices = @transform_0, window_bounds = array<i64: 1, 8, 32>}, {transform_indices = @transform_1, window_bounds = array<i64: 1, 32, 1>}, {pipeline_mode = #tpu.pipeline_mode<synchronous>, transform_indices = @transform_2, window_bounds = array<i64: 32, 8>}, {pipeline_mode = #tpu.pipeline_mode<synchronous>, transform_indices = @transform_3, window_bounds = array<i64: 16, 32>}, {pipeline_mode = #tpu.pipeline_mode<synchronous>, transform_indices = @transform_4, window_bounds = array<i64: 16, 1>}, {pipeline_mode = #tpu.pipeline_mode<synchronous>, transform_indices = @transform_5, window_bounds = array<i64: 16, 16>}, {pipeline_mode = #tpu.pipeline_mode<synchronous>, transform_indices = @transform_6, window_bounds = array<i64: 16, 1>}, {pipeline_mode = #tpu.pipeline_mode<synchronous>, transform_indices = @transform_7, window_bounds = array<i64: 32, 16>}, {pipeline_mode = #tpu.pipeline_mode<synchronous>, transform_indices = @transform_8, window_bounds = array<i64: 32, 1>}, {pipeline_mode = #tpu.pipeline_mode<synchronous>, transform_indices = @transform_9, window_bounds = array<i64: 16, 32>}, {pipeline_mode = #tpu.pipeline_mode<synchronous>, transform_indices = @transform_10, window_bounds = array<i64: 16, 1>}, {pipeline_mode = #tpu.pipeline_mode<synchronous>, transform_indices = @transform_11, window_bounds = array<i64: 32, 16>}, {pipeline_mode = #tpu.pipeline_mode<synchronous>, transform_indices = @transform_12, window_bounds = array<i64: 32, 1>}, {pipeline_mode = #tpu.pipeline_mode<synchronous>, transform_indices = @transform_13, window_bounds = array<i64: 32, 32>}, {pipeline_mode = #tpu.pipeline_mode<synchronous>, transform_indices = @transform_14, window_bounds = array<i64: 32, 1>}, {pipeline_mode = #tpu.pipeline_mode<synchronous>, transform_indices = @transform_15, window_bounds = array<i64: 6, 32>}, {pipeline_mode = #tpu.pipeline_mode<synchronous>, transform_indices = @transform_16, window_bounds = array<i64: 6, 1>}, {transform_indices = @transform_17, window_bounds = array<i64: 1, 6, 32>}]} {
    %c0 = arith.constant 0 : index
    %c0_0 = arith.constant 0 : index
    %c0_1 = arith.constant 0 : index
    %0 = vector.load %arg2[%c0, %c0_0, %c0_1] : memref<1x8x32xf32, #tpu.memory_space<vmem>>, vector<1x8x32xf32>
    %1 = vector.shape_cast %0 : vector<1x8x32xf32> to vector<8x32xf32>
    %c0_2 = arith.constant 0 : index
    %c0_3 = arith.constant 0 : index
    %2 = vector.load %arg4[%c0_2, %c0_3] : memref<32x8xf32, #tpu.memory_space<vmem>>, vector<32x8xf32>
    %cst = arith.constant dense<0.000000e+00> : vector<32x32xf32>
    %3 = tpu.matmul %2, %1, %cst {dimension_numbers = #tpu.dot_dimension_numbers<[1], [0], [0], [1], [0, 0, 1, 1], [], []>} : vector<32x8xf32>, vector<8x32xf32>, vector<32x32xf32> -> vector<32x32xf32>
    %c0_4 = arith.constant 0 : index
    %c0_5 = arith.constant 0 : index
    %c0_6 = arith.constant 0 : index
    %4 = vector.load %arg3[%c0_4, %c0_5, %c0_6] : memref<1x32x1xf32, #tpu.memory_space<vmem>>, vector<1x32x1xf32>
    %5 = vector.shape_cast %4 : vector<1x32x1xf32> to vector<32x1xf32>
    %6 = vector.broadcast %5 : vector<32x1xf32> to vector<32x32xf32>
    %7 = arith.addf %3, %6 : vector<32x32xf32>
    %cst_7 = arith.constant 0.000000e+00 : f32
    %8 = vector.broadcast %cst_7 : f32 to vector<32x32xf32>
    %9 = arith.maximumf %7, %8 : vector<32x32xf32>
    %c0_8 = arith.constant 0 : index
    %c0_9 = arith.constant 0 : index
    %10 = vector.load %arg5[%c0_8, %c0_9] : memref<16x32xf32, #tpu.memory_space<vmem>>, vector<16x32xf32>
    %cst_10 = arith.constant dense<0.000000e+00> : vector<16x32xf32>
    %11 = tpu.matmul %10, %9, %cst_10 {dimension_numbers = #tpu.dot_dimension_numbers<[1], [0], [0], [1], [0, 0, 1, 1], [], []>} : vector<16x32xf32>, vector<32x32xf32>, vector<16x32xf32> -> vector<16x32xf32>
    %c0_11 = arith.constant 0 : index
    %c0_12 = arith.constant 0 : index
    %12 = vector.load %arg6[%c0_11, %c0_12] : memref<16x1xf32, #tpu.memory_space<vmem>>, vector<16x1xf32>
    %13 = vector.broadcast %12 : vector<16x1xf32> to vector<16x32xf32>
    %14 = arith.addf %11, %13 : vector<16x32xf32>
    %c0_13 = arith.constant 0 : index
    %c0_14 = arith.constant 0 : index
    %15 = vector.load %arg7[%c0_13, %c0_14] : memref<16x16xf32, #tpu.memory_space<vmem>>, vector<16x16xf32>
    %cst_15 = arith.constant dense<0.000000e+00> : vector<16x32xf32>
    %16 = tpu.matmul %15, %14, %cst_15 {dimension_numbers = #tpu.dot_dimension_numbers<[1], [0], [0], [1], [0, 0, 1, 1], [], []>} : vector<16x16xf32>, vector<16x32xf32>, vector<16x32xf32> -> vector<16x32xf32>
    %c0_16 = arith.constant 0 : index
    %c0_17 = arith.constant 0 : index
    %17 = vector.load %arg8[%c0_16, %c0_17] : memref<16x1xf32, #tpu.memory_space<vmem>>, vector<16x1xf32>
    %18 = vector.broadcast %17 : vector<16x1xf32> to vector<16x32xf32>
    %19 = arith.addf %16, %18 : vector<16x32xf32>
    %cst_18 = arith.constant 0.000000e+00 : f32
    %20 = vector.broadcast %cst_18 : f32 to vector<16x32xf32>
    %21 = arith.maximumf %19, %20 : vector<16x32xf32>
    %c0_19 = arith.constant 0 : index
    %c0_20 = arith.constant 0 : index
    %22 = vector.load %arg9[%c0_19, %c0_20] : memref<32x16xf32, #tpu.memory_space<vmem>>, vector<32x16xf32>
    %cst_21 = arith.constant dense<0.000000e+00> : vector<32x32xf32>
    %23 = tpu.matmul %22, %21, %cst_21 {dimension_numbers = #tpu.dot_dimension_numbers<[1], [0], [0], [1], [0, 0, 1, 1], [], []>} : vector<32x16xf32>, vector<16x32xf32>, vector<32x32xf32> -> vector<32x32xf32>
    %c0_22 = arith.constant 0 : index
    %c0_23 = arith.constant 0 : index
    %24 = vector.load %arg10[%c0_22, %c0_23] : memref<32x1xf32, #tpu.memory_space<vmem>>, vector<32x1xf32>
    %25 = vector.broadcast %24 : vector<32x1xf32> to vector<32x32xf32>
    %26 = arith.addf %23, %25 : vector<32x32xf32>
    %cst_24 = arith.constant 0.000000e+00 : f32
    %27 = vector.broadcast %cst_24 : f32 to vector<32x32xf32>
    %28 = arith.maximumf %26, %27 : vector<32x32xf32>
    %c0_25 = arith.constant 0 : index
    %c0_26 = arith.constant 0 : index
    %29 = vector.load %arg11[%c0_25, %c0_26] : memref<16x32xf32, #tpu.memory_space<vmem>>, vector<16x32xf32>
    %cst_27 = arith.constant dense<0.000000e+00> : vector<16x32xf32>
    %30 = tpu.matmul %29, %28, %cst_27 {dimension_numbers = #tpu.dot_dimension_numbers<[1], [0], [0], [1], [0, 0, 1, 1], [], []>} : vector<16x32xf32>, vector<32x32xf32>, vector<16x32xf32> -> vector<16x32xf32>
    %c0_28 = arith.constant 0 : index
    %c0_29 = arith.constant 0 : index
    %31 = vector.load %arg12[%c0_28, %c0_29] : memref<16x1xf32, #tpu.memory_space<vmem>>, vector<16x1xf32>
    %32 = vector.broadcast %31 : vector<16x1xf32> to vector<16x32xf32>
    %33 = arith.addf %30, %32 : vector<16x32xf32>
    %cst_30 = arith.constant 0.000000e+00 : f32
    %34 = vector.broadcast %cst_30 : f32 to vector<16x32xf32>
    %35 = arith.maximumf %33, %34 : vector<16x32xf32>
    %36 = arith.addf %14, %35 : vector<16x32xf32>
    %c0_31 = arith.constant 0 : index
    %c0_32 = arith.constant 0 : index
    %37 = vector.load %arg13[%c0_31, %c0_32] : memref<32x16xf32, #tpu.memory_space<vmem>>, vector<32x16xf32>
    %cst_33 = arith.constant dense<0.000000e+00> : vector<32x32xf32>
    %38 = tpu.matmul %37, %36, %cst_33 {dimension_numbers = #tpu.dot_dimension_numbers<[1], [0], [0], [1], [0, 0, 1, 1], [], []>} : vector<32x16xf32>, vector<16x32xf32>, vector<32x32xf32> -> vector<32x32xf32>
    %c0_34 = arith.constant 0 : index
    %c0_35 = arith.constant 0 : index
    %39 = vector.load %arg14[%c0_34, %c0_35] : memref<32x1xf32, #tpu.memory_space<vmem>>, vector<32x1xf32>
    %40 = vector.broadcast %39 : vector<32x1xf32> to vector<32x32xf32>
    %41 = arith.addf %38, %40 : vector<32x32xf32>
    %cst_36 = arith.constant 0.000000e+00 : f32
    %42 = vector.broadcast %cst_36 : f32 to vector<32x32xf32>
    %43 = arith.maximumf %41, %42 : vector<32x32xf32>
    %c0_37 = arith.constant 0 : index
    %c0_38 = arith.constant 0 : index
    %44 = vector.load %arg15[%c0_37, %c0_38] : memref<32x32xf32, #tpu.memory_space<vmem>>, vector<32x32xf32>
    %cst_39 = arith.constant dense<0.000000e+00> : vector<32x32xf32>
    %45 = tpu.matmul %44, %43, %cst_39 {dimension_numbers = #tpu.dot_dimension_numbers<[1], [0], [0], [1], [0, 0, 1, 1], [], []>} : vector<32x32xf32>, vector<32x32xf32>, vector<32x32xf32> -> vector<32x32xf32>
    %c0_40 = arith.constant 0 : index
    %c0_41 = arith.constant 0 : index
    %46 = vector.load %arg16[%c0_40, %c0_41] : memref<32x1xf32, #tpu.memory_space<vmem>>, vector<32x1xf32>
    %47 = vector.broadcast %46 : vector<32x1xf32> to vector<32x32xf32>
    %48 = arith.addf %45, %47 : vector<32x32xf32>
    %cst_42 = arith.constant 0.000000e+00 : f32
    %49 = vector.broadcast %cst_42 : f32 to vector<32x32xf32>
    %50 = arith.maximumf %48, %49 : vector<32x32xf32>
    %c0_43 = arith.constant 0 : index
    %c0_44 = arith.constant 0 : index
    %51 = vector.load %arg17[%c0_43, %c0_44] : memref<6x32xf32, #tpu.memory_space<vmem>>, vector<6x32xf32>
    %cst_45 = arith.constant dense<0.000000e+00> : vector<6x32xf32>
    %52 = tpu.matmul %51, %50, %cst_45 {dimension_numbers = #tpu.dot_dimension_numbers<[1], [0], [0], [1], [0, 0, 1, 1], [], []>} : vector<6x32xf32>, vector<32x32xf32>, vector<6x32xf32> -> vector<6x32xf32>
    %c0_46 = arith.constant 0 : index
    %c0_47 = arith.constant 0 : index
    %53 = vector.load %arg18[%c0_46, %c0_47] : memref<6x1xf32, #tpu.memory_space<vmem>>, vector<6x1xf32>
    %54 = vector.broadcast %53 : vector<6x1xf32> to vector<6x32xf32>
    %55 = arith.addf %52, %54 : vector<6x32xf32>
    %c0_48 = arith.constant 0 : index
    %c0_49 = arith.constant 0 : index
    %c0_50 = arith.constant 0 : index
    %56 = vector.load %arg19[%c0_48, %c0_49, %c0_50] : memref<1x6x32xf32, #tpu.memory_space<vmem>>, vector<1x6x32xf32>
    %57 = vector.shape_cast %56 : vector<1x6x32xf32> to vector<6x32xf32>
    %58 = vector.shape_cast %55 : vector<6x32xf32> to vector<1x6x32xf32>
    tpu.vector_store %arg19[%c0_48, %c0_49, %c0_50], %58 {strides = array<i32>} : memref<1x6x32xf32, #tpu.memory_space<vmem>>, vector<1x6x32xf32>,
    return
  }
  func.func @transform_0(%arg0: i32, %arg1: i32) -> (i32, i32, i32) {
    %c0_i32 = arith.constant 0 : i32
    %c0_i32_0 = arith.constant 0 : i32
    return %arg0, %c0_i32, %arg1 : i32, i32, i32
  }
  func.func @transform_1(%arg0: i32, %arg1: i32) -> (i32, i32, i32) {
    %c0_i32 = arith.constant 0 : i32
    %c0_i32_0 = arith.constant 0 : i32
    %c0_i32_1 = arith.constant 0 : i32
    return %arg0, %c0_i32, %c0_i32_0 : i32, i32, i32
  }
  func.func @transform_2(%arg0: i32, %arg1: i32) -> (i32, i32) {
    %c0_i32 = arith.constant 0 : i32
    %c0_i32_0 = arith.constant 0 : i32
    %c0_i32_1 = arith.constant 0 : i32
    return %c0_i32, %c0_i32_0 : i32, i32
  }
  func.func @transform_3(%arg0: i32, %arg1: i32) -> (i32, i32) {
    %c0_i32 = arith.constant 0 : i32
    %c0_i32_0 = arith.constant 0 : i32
    %c0_i32_1 = arith.constant 0 : i32
    return %c0_i32, %c0_i32_0 : i32, i32
  }
  func.func @transform_4(%arg0: i32, %arg1: i32) -> (i32, i32) {
    %c0_i32 = arith.constant 0 : i32
    %c0_i32_0 = arith.constant 0 : i32
    %c0_i32_1 = arith.constant 0 : i32
    return %c0_i32, %c0_i32_0 : i32, i32
  }
  func.func @transform_5(%arg0: i32, %arg1: i32) -> (i32, i32) {
    %c0_i32 = arith.constant 0 : i32
    %c0_i32_0 = arith.constant 0 : i32
    %c0_i32_1 = arith.constant 0 : i32
    return %c0_i32, %c0_i32_0 : i32, i32
  }
  func.func @transform_6(%arg0: i32, %arg1: i32) -> (i32, i32) {
    %c0_i32 = arith.constant 0 : i32
    %c0_i32_0 = arith.constant 0 : i32
    %c0_i32_1 = arith.constant 0 : i32
    return %c0_i32, %c0_i32_0 : i32, i32
  }
  func.func @transform_7(%arg0: i32, %arg1: i32) -> (i32, i32) {
    %c0_i32 = arith.constant 0 : i32
    %c0_i32_0 = arith.constant 0 : i32
    %c0_i32_1 = arith.constant 0 : i32
    return %c0_i32, %c0_i32_0 : i32, i32
  }
  func.func @transform_8(%arg0: i32, %arg1: i32) -> (i32, i32) {
    %c0_i32 = arith.constant 0 : i32
    %c0_i32_0 = arith.constant 0 : i32
    %c0_i32_1 = arith.constant 0 : i32
    return %c0_i32, %c0_i32_0 : i32, i32
  }
  func.func @transform_9(%arg0: i32, %arg1: i32) -> (i32, i32) {
    %c0_i32 = arith.constant 0 : i32
    %c0_i32_0 = arith.constant 0 : i32
    %c0_i32_1 = arith.constant 0 : i32
    return %c0_i32, %c0_i32_0 : i32, i32
  }
  func.func @transform_10(%arg0: i32, %arg1: i32) -> (i32, i32) {
    %c0_i32 = arith.constant 0 : i32
    %c0_i32_0 = arith.constant 0 : i32
    %c0_i32_1 = arith.constant 0 : i32
    return %c0_i32, %c0_i32_0 : i32, i32
  }
  func.func @transform_11(%arg0: i32, %arg1: i32) -> (i32, i32) {
    %c0_i32 = arith.constant 0 : i32
    %c0_i32_0 = arith.constant 0 : i32
    %c0_i32_1 = arith.constant 0 : i32
    return %c0_i32, %c0_i32_0 : i32, i32
  }
  func.func @transform_12(%arg0: i32, %arg1: i32) -> (i32, i32) {
    %c0_i32 = arith.constant 0 : i32
    %c0_i32_0 = arith.constant 0 : i32
    %c0_i32_1 = arith.constant 0 : i32
    return %c0_i32, %c0_i32_0 : i32, i32
  }
  func.func @transform_13(%arg0: i32, %arg1: i32) -> (i32, i32) {
    %c0_i32 = arith.constant 0 : i32
    %c0_i32_0 = arith.constant 0 : i32
    %c0_i32_1 = arith.constant 0 : i32
    return %c0_i32, %c0_i32_0 : i32, i32
  }
  func.func @transform_14(%arg0: i32, %arg1: i32) -> (i32, i32) {
    %c0_i32 = arith.constant 0 : i32
    %c0_i32_0 = arith.constant 0 : i32
    %c0_i32_1 = arith.constant 0 : i32
    return %c0_i32, %c0_i32_0 : i32, i32
  }
  func.func @transform_15(%arg0: i32, %arg1: i32) -> (i32, i32) {
    %c0_i32 = arith.constant 0 : i32
    %c0_i32_0 = arith.constant 0 : i32
    %c0_i32_1 = arith.constant 0 : i32
    return %c0_i32, %c0_i32_0 : i32, i32
  }
  func.func @transform_16(%arg0: i32, %arg1: i32) -> (i32, i32) {
    %c0_i32 = arith.constant 0 : i32
    %c0_i32_0 = arith.constant 0 : i32
    %c0_i32_1 = arith.constant 0 : i32
    return %c0_i32, %c0_i32_0 : i32, i32
  }
  func.func @transform_17(%arg0: i32, %arg1: i32) -> (i32, i32, i32) {
    %c0_i32 = arith.constant 0 : i32
    %c0_i32_0 = arith.constant 0 : i32
    return %arg0, %c0_i32, %arg1 : i32, i32, i32
  }
}

</mosaic_0001>

<llo_original>
// kernel: tile.31
$region0: #{tile.31}
  %s0 = inlined_call_operand.vmem [shape: f32[2,6,2,1,1,32], index: 0, kind: input, shape index: {}]
  %s1 = inlined_call_operand.vmem [shape: f32[2,64,6], index: 1, kind: output, shape index: {}]
  $region1: #{tile.31} parent=0
    #allocation0 [shape = 'u8[49152]{0}', space=vmem, size = 0xc000, scoped, tag = 'scoped mem for input reshape']
    %s3 = sshllo.u32 0, 2
    %s4 = smul.addr 2, 11
    %s5 = scalar_lea.vmem %s0, %s4
    %v6 = vld [vmem:[%s5] sm:%s3]
    %s7 = scalar_lea.vmem [#allocation0], 88
    %8 = vst [vmem:[%s7] sm:%s3] %v6
    %s9 = smul.addr 2, 10
    %s10 = scalar_lea.vmem %s0, %s9
    %v11 = vld [vmem:[%s10] sm:%s3]
    %s12 = scalar_lea.vmem [#allocation0], 80
    %13 = vst [vmem:[%s12] sm:%s3] %v11
    %s14 = smul.addr 2, 9
    %s15 = scalar_lea.vmem %s0, %s14
    %v16 = vld [vmem:[%s15] sm:%s3]
    %s17 = scalar_lea.vmem [#allocation0], 72
    %18 = vst [vmem:[%s17] sm:%s3] %v16
    %s19 = smul.addr 2, 8
    %s20 = scalar_lea.vmem %s0, %s19
    %v21 = vld [vmem:[%s20] sm:%s3]
    %s22 = scalar_lea.vmem [#allocation0], 64
    %23 = vst [vmem:[%s22] sm:%s3] %v21
    %s24 = smul.addr 2, 7
    %s25 = scalar_lea.vmem %s0, %s24
    %v26 = vld [vmem:[%s25] sm:%s3]
    %s27 = scalar_lea.vmem [#allocation0], 56
    %28 = vst [vmem:[%s27] sm:%s3] %v26
    %s29 = smul.addr 2, 6
    %s30 = scalar_lea.vmem %s0, %s29
    %v31 = vld [vmem:[%s30] sm:%s3]
    %s32 = scalar_lea.vmem [#allocation0], 48
    %33 = vst [vmem:[%s32] sm:%s3] %v31
    %s34 = smul.addr 2, 5
    %s35 = scalar_lea.vmem %s0, %s34
    %v36 = vld [vmem:[%s35] sm:%s3]
    %s37 = scalar_lea.vmem [#allocation0], 40
    %38 = vst [vmem:[%s37] sm:%s3] %v36
    %s39 = smul.addr 2, 4
    %s40 = scalar_lea.vmem %s0, %s39
    %v41 = vld [vmem:[%s40] sm:%s3]
    %s42 = scalar_lea.vmem [#allocation0], 32
    %43 = vst [vmem:[%s42] sm:%s3] %v41
    %s44 = smul.addr 2, 3
    %s45 = scalar_lea.vmem %s0, %s44
    %v46 = vld [vmem:[%s45] sm:%s3]
    %s47 = scalar_lea.vmem [#allocation0], 24
    %48 = vst [vmem:[%s47] sm:%s3] %v46
    %s49 = smul.addr 2, 2
    %s50 = scalar_lea.vmem %s0, %s49
    %v51 = vld [vmem:[%s50] sm:%s3]
    %s52 = scalar_lea.vmem [#allocation0], 16
    %53 = vst [vmem:[%s52] sm:%s3] %v51
    %s54 = scalar_lea.vmem %s0, 2
    %v55 = vld [vmem:[%s54] sm:%s3]
    %s56 = scalar_lea.vmem [#allocation0], 8
    %57 = vst [vmem:[%s56] sm:%s3] %v55
    %v58 = vld [vmem:[%s0] sm:%s3]
    %59 = vst [vmem:[#allocation0] sm:%s3] %v58
    %s60 = smov 3
    %v61 = vld [vmem:[#allocation0] ss:$9 sm:%s60]
    %vm62 = vcmask 48128
    %63 = vst.msk [vmem:[%s1] ss:$16 sm:$0x3] %vm62, %v61
    %s64 = scalar_lea.vmem [#allocation0], 24
    %s65 = smov 3
    %v66 = vld [vmem:[%s64] ss:$9 sm:%s65]
    %vm67 = vcmask 48128
    %s68 = scalar_lea.vmem %s1, 32
    %69 = vst.msk [vmem:[%s68] ss:$16 sm:$0x3] %vm67, %v66
    %s70 = scalar_lea.vmem [#allocation0], 48
    %s71 = smov 3
    %v72 = vld [vmem:[%s70] ss:$9 sm:%s71]
    %vm73 = vcmask 48128
    %s74 = scalar_lea.vmem %s1, 64
    %75 = vst.msk [vmem:[%s74] ss:$16 sm:$0x3] %vm73, %v72
    %s76 = scalar_lea.vmem [#allocation0], 72
    %s77 = smov 3
    %v78 = vld [vmem:[%s76] ss:$9 sm:%s77]
    %vm79 = vcmask 48128
    %s80 = scalar_lea.vmem %s1, 96
    %81 = vst.msk [vmem:[%s80] ss:$16 sm:$0x3] %vm79, %v78
    %s82 = scalar_lea.vmem [#allocation0], 8
    %s83 = smov 3
    %v84 = vld [vmem:[%s82] ss:$9 sm:%s83]
    %s85 = scalar_lea.vmem [#allocation0], 14
    %s86 = smov 12
    %v87 = vld [vmem:[%s85] ss:$9 sm:%s86]
    %vm88 = vcmask 1043458
    %v89 = vsel %vm88, %v87, %v84
    %s90 = scalar_lea.vmem [#allocation0], 20
    %s91 = smov 48
    %v92 = vld [vmem:[%s90] ss:$9 sm:%s91]
    %vm93 = vcmask 1045508
    %v94 = vsel %vm93, %v92, %v89
    %s95 = scalar_lea.vmem [#allocation0], 26
    %s96 = smov 192
    %v97 = vld [vmem:[%s95] ss:$9 sm:%s96]
    %vm98 = vcmask 1047558
    %v99 = vsel %vm98, %v97, %v94
    %100 = vrot.lane.b32.xlu0 %v99, 126
    %v101 = vpop.permute.xlu0 %100
    %vm102 = vcmask 48128
    %s103 = scalar_lea.vmem %s1, 11
    %104 = vst.msk [vmem:[%s103] ss:$16 sm:$0x3] %vm102, %v101
    %s105 = scalar_lea.vmem %s1, 11
    %106 = vst.msk [vmem:[%s105] ss:$16 sm:$0xc] %vm102, %v101
    %s107 = scalar_lea.vmem %s1, 11
    %108 = vst.msk [vmem:[%s107] ss:$16 sm:$0x30] %vm102, %v101
    %s109 = scalar_lea.vmem %s1, 11
    %110 = vst.msk [vmem:[%s109] ss:$16 sm:$0xc0] %vm102, %v101
    %s111 = scalar_lea.vmem [#allocation0], 1
    %s112 = smov 3
    %v113 = vld [vmem:[%s111] ss:$15 sm:%s112]
    %s114 = scalar_lea.vmem [#allocation0], 4294967291
    %s115 = smov 12
    %v116 = vld [vmem:[%s114] ss:$15 sm:%s115]
    %vm117 = vcmask 1043458
    %v118 = vsel %vm117, %v116, %v113
    %s119 = scalar_lea.vmem [#allocation0], 4294967285
    %s120 = smov 48
    %v121 = vld [vmem:[%s119] ss:$15 sm:%s120]
    %vm122 = vcmask 1045508
    %v123 = vsel %vm122, %v121, %v118
    %s124 = scalar_lea.vmem [#allocation0], 4294967279
    %s125 = smov 192
    %v126 = vld [vmem:[%s124] ss:$15 sm:%s125]
    %vm127 = vcmask 1047558
    %v128 = vsel %vm127, %v126, %v123
    %129 = vrot.lane.b32.xlu0 %v128, 124
    %v130 = vpop.permute.xlu0 %129
    %vm131 = vcmask 48128
    %s132 = scalar_lea.vmem %s1, 6
    %133 = vst.msk [vmem:[%s132] ss:$16 sm:$0x3] %vm131, %v130
    %s134 = scalar_lea.vmem %s1, 6
    %135 = vst.msk [vmem:[%s134] ss:$16 sm:$0xc] %vm131, %v130
    %s136 = scalar_lea.vmem %s1, 6
    %137 = vst.msk [vmem:[%s136] ss:$16 sm:$0x30] %vm131, %v130
    %s138 = scalar_lea.vmem %s1, 6
    %139 = vst.msk [vmem:[%s138] ss:$16 sm:$0xc0] %vm131, %v130
    %s140 = smov 3
    %v141 = vld [vmem:[#allocation0] ss:$9 sm:%s140]
    %s142 = scalar_lea.vmem [#allocation0], 6
    %s143 = smov 12
    %v144 = vld [vmem:[%s142] ss:$9 sm:%s143]
    %vm145 = vcmask 1043458
    %v146 = vsel %vm145, %v144, %v141
    %s147 = scalar_lea.vmem [#allocation0], 12
    %s148 = smov 48
    %v149 = vld [vmem:[%s147] ss:$9 sm:%s148]
    %vm150 = vcmask 1045508
    %v151 = vsel %vm150, %v149, %v146
    %s152 = scalar_lea.vmem [#allocation0], 18
    %s153 = smov 192
    %v154 = vld [vmem:[%s152] ss:$9 sm:%s153]
    %vm155 = vcmask 1047558
    %v156 = vsel %vm155, %v154, %v151
    %157 = vrot.lane.b32.xlu0 %v156, 122
    %v158 = vpop.permute.xlu0 %157
    %vm159 = vcmask 48128
    %s160 = scalar_lea.vmem %s1, 1
    %161 = vst.msk [vmem:[%s160] ss:$16 sm:$0x3] %vm159, %v158
    %s162 = scalar_lea.vmem %s1, 1
    %163 = vst.msk [vmem:[%s162] ss:$16 sm:$0xc] %vm159, %v158
    %s164 = scalar_lea.vmem %s1, 1
    %165 = vst.msk [vmem:[%s164] ss:$16 sm:$0x30] %vm159, %v158
    %s166 = scalar_lea.vmem %s1, 1
    %167 = vst.msk [vmem:[%s166] ss:$16 sm:$0xc0] %vm159, %v158
    %s168 = scalar_lea.vmem [#allocation0], 8
    %s169 = smov 3
    %v170 = vld [vmem:[%s168] ss:$9 sm:%s169]
    %s171 = scalar_lea.vmem [#allocation0], 14
    %s172 = smov 12
    %v173 = vld [vmem:[%s171] ss:$9 sm:%s172]
    %vm174 = vcmask 1043458
    %v175 = vsel %vm174, %v173, %v170
    %s176 = scalar_lea.vmem [#allocation0], 20
    %s177 = smov 48
    %v178 = vld [vmem:[%s176] ss:$9 sm:%s177]
    %vm179 = vcmask 1045508
    %v180 = vsel %vm179, %v178, %v175
    %s181 = scalar_lea.vmem [#allocation0], 26
    %s182 = smov 192
    %v183 = vld [vmem:[%s181] ss:$9 sm:%s182]
    %vm184 = vcmask 1047558
    %v185 = vsel %vm184, %v183, %v180
    %186 = vrot.lane.b32.xlu0 %v185, 120
    %v187 = vpop.permute.xlu0 %186
    %vm188 = vcmask 48128
    %s189 = scalar_lea.vmem %s1, 12
    %190 = vst.msk [vmem:[%s189] ss:$16 sm:$0x3] %vm188, %v187
    %s191 = scalar_lea.vmem %s1, 12
    %192 = vst.msk [vmem:[%s191] ss:$16 sm:$0xc] %vm188, %v187
    %s193 = scalar_lea.vmem %s1, 12
    %194 = vst.msk [vmem:[%s193] ss:$16 sm:$0x30] %vm188, %v187
    %s195 = scalar_lea.vmem %s1, 12
    %196 = vst.msk [vmem:[%s195] ss:$16 sm:$0xc0] %vm188, %v187
    %s197 = scalar_lea.vmem [#allocation0], 1
    %s198 = smov 3
    %v199 = vld [vmem:[%s197] ss:$15 sm:%s198]
    %s200 = scalar_lea.vmem [#allocation0], 4294967291
    %s201 = smov 12
    %v202 = vld [vmem:[%s200] ss:$15 sm:%s201]
    %vm203 = vcmask 1043458
    %v204 = vsel %vm203, %v202, %v199
    %s205 = scalar_lea.vmem [#allocation0], 4294967285
    %s206 = smov 48
    %v207 = vld [vmem:[%s205] ss:$15 sm:%s206]
    %vm208 = vcmask 1045508
    %v209 = vsel %vm208, %v207, %v204
    %s210 = scalar_lea.vmem [#allocation0], 4294967279
    %s211 = smov 192
    %v212 = vld [vmem:[%s210] ss:$15 sm:%s211]
    %vm213 = vcmask 1047558
    %v214 = vsel %vm213, %v212, %v209
    %215 = vrot.lane.b32.xlu0 %v214, 118
    %v216 = vpop.permute.xlu0 %215
    %vm217 = vcmask 48128
    %s218 = scalar_lea.vmem %s1, 7
    %219 = vst.msk [vmem:[%s218] ss:$16 sm:$0x3] %vm217, %v216
    %s220 = scalar_lea.vmem %s1, 7
    %221 = vst.msk [vmem:[%s220] ss:$16 sm:$0xc] %vm217, %v216
    %s222 = scalar_lea.vmem %s1, 7
    %223 = vst.msk [vmem:[%s222] ss:$16 sm:$0x30] %vm217, %v216
    %s224 = scalar_lea.vmem %s1, 7
    %225 = vst.msk [vmem:[%s224] ss:$16 sm:$0xc0] %vm217, %v216
    %s226 = smov 3
    %v227 = vld [vmem:[#allocation0] ss:$9 sm:%s226]
    %s228 = scalar_lea.vmem [#allocation0], 6
    %s229 = smov 12
    %v230 = vld [vmem:[%s228] ss:$9 sm:%s229]
    %vm231 = vcmask 1043458
    %v232 = vsel %vm231, %v230, %v227
    %s233 = scalar_lea.vmem [#allocation0], 12
    %s234 = smov 48
    %v235 = vld [vmem:[%s233] ss:$9 sm:%s234]
    %vm236 = vcmask 1045508
    %v237 = vsel %vm236, %v235, %v232
    %s238 = scalar_lea.vmem [#allocation0], 18
    %s239 = smov 192
    %v240 = vld [vmem:[%s238] ss:$9 sm:%s239]
    %vm241 = vcmask 1047558
    %v242 = vsel %vm241, %v240, %v237
    %243 = vrot.lane.b32.xlu0 %v242, 116
    %v244 = vpop.permute.xlu0 %243
    %vm245 = vcmask 48128
    %s246 = scalar_lea.vmem %s1, 2
    %247 = vst.msk [vmem:[%s246] ss:$16 sm:$0x3] %vm245, %v244
    %s248 = scalar_lea.vmem %s1, 2
    %249 = vst.msk [vmem:[%s248] ss:$16 sm:$0xc] %vm245, %v244
    %s250 = scalar_lea.vmem %s1, 2
    %251 = vst.msk [vmem:[%s250] ss:$16 sm:$0x30] %vm245, %v244
    %s252 = scalar_lea.vmem %s1, 2
    %253 = vst.msk [vmem:[%s252] ss:$16 sm:$0xc0] %vm245, %v244
    %s254 = scalar_lea.vmem [#allocation0], 8
    %s255 = smov 3
    %v256 = vld [vmem:[%s254] ss:$9 sm:%s255]
    %s257 = scalar_lea.vmem [#allocation0], 14
    %s258 = smov 12
    %v259 = vld [vmem:[%s257] ss:$9 sm:%s258]
    %vm260 = vcmask 1043458
    %v261 = vsel %vm260, %v259, %v256
    %s262 = scalar_lea.vmem [#allocation0], 20
    %s263 = smov 48
    %v264 = vld [vmem:[%s262] ss:$9 sm:%s263]
    %vm265 = vcmask 1045508
    %v266 = vsel %vm265, %v264, %v261
    %s267 = scalar_lea.vmem [#allocation0], 26
    %s268 = smov 192
    %v269 = vld [vmem:[%s267] ss:$9 sm:%s268]
    %vm270 = vcmask 1047558
    %v271 = vsel %vm270, %v269, %v266
    %272 = vrot.lane.b32.xlu0 %v271, 114
    %v273 = vpop.permute.xlu0 %272
    %vm274 = vcmask 48128
    %s275 = scalar_lea.vmem %s1, 13
    %276 = vst.msk [vmem:[%s275] ss:$16 sm:$0x3] %vm274, %v273
    %s277 = scalar_lea.vmem %s1, 13
    %278 = vst.msk [vmem:[%s277] ss:$16 sm:$0xc] %vm274, %v273
    %s279 = scalar_lea.vmem %s1, 13
    %280 = vst.msk [vmem:[%s279] ss:$16 sm:$0x30] %vm274, %v273
    %s281 = scalar_lea.vmem %s1, 13
    %282 = vst.msk [vmem:[%s281] ss:$16 sm:$0xc0] %vm274, %v273
    %s283 = scalar_lea.vmem [#allocation0], 1
    %s284 = smov 3
    %v285 = vld [vmem:[%s283] ss:$15 sm:%s284]
    %s286 = scalar_lea.vmem [#allocation0], 4294967291
    %s287 = smov 12
    %v288 = vld [vmem:[%s286] ss:$15 sm:%s287]
    %vm289 = vcmask 1043458
    %v290 = vsel %vm289, %v288, %v285
    %s291 = scalar_lea.vmem [#allocation0], 4294967285
    %s292 = smov 48
    %v293 = vld [vmem:[%s291] ss:$15 sm:%s292]
    %vm294 = vcmask 1045508
    %v295 = vsel %vm294, %v293, %v290
    %s296 = scalar_lea.vmem [#allocation0], 4294967279
    %s297 = smov 192
    %v298 = vld [vmem:[%s296] ss:$15 sm:%s297]
    %vm299 = vcmask 1047558
    %v300 = vsel %vm299, %v298, %v295
    %301 = vrot.lane.b32.xlu0 %v300, 112
    %v302 = vpop.permute.xlu0 %301
    %vm303 = vcmask 48128
    %s304 = scalar_lea.vmem %s1, 8
    %305 = vst.msk [vmem:[%s304] ss:$16 sm:$0x3] %vm303, %v302
    %s306 = scalar_lea.vmem %s1, 8
    %307 = vst.msk [vmem:[%s306] ss:$16 sm:$0xc] %vm303, %v302
    %s308 = scalar_lea.vmem %s1, 8
    %309 = vst.msk [vmem:[%s308] ss:$16 sm:$0x30] %vm303, %v302
    %s310 = scalar_lea.vmem %s1, 8
    %311 = vst.msk [vmem:[%s310] ss:$16 sm:$0xc0] %vm303, %v302
    %s312 = smov 3
    %v313 = vld [vmem:[#allocation0] ss:$9 sm:%s312]
    %s314 = scalar_lea.vmem [#allocation0], 6
    %s315 = smov 12
    %v316 = vld [vmem:[%s314] ss:$9 sm:%s315]
    %vm317 = vcmask 1043458
    %v318 = vsel %vm317, %v316, %v313
    %s319 = scalar_lea.vmem [#allocation0], 12
    %s320 = smov 48
    %v321 = vld [vmem:[%s319] ss:$9 sm:%s320]
    %vm322 = vcmask 1045508
    %v323 = vsel %vm322, %v321, %v318
    %s324 = scalar_lea.vmem [#allocation0], 18
    %s325 = smov 192
    %v326 = vld [vmem:[%s324] ss:$9 sm:%s325]
    %vm327 = vcmask 1047558
    %v328 = vsel %vm327, %v326, %v323
    %329 = vrot.lane.b32.xlu0 %v328, 110
    %v330 = vpop.permute.xlu0 %329
    %vm331 = vcmask 48128
    %s332 = scalar_lea.vmem %s1, 3
    %333 = vst.msk [vmem:[%s332] ss:$16 sm:$0x3] %vm331, %v330
    %s334 = scalar_lea.vmem %s1, 3
    %335 = vst.msk [vmem:[%s334] ss:$16 sm:$0xc] %vm331, %v330
    %s336 = scalar_lea.vmem %s1, 3
    %337 = vst.msk [vmem:[%s336] ss:$16 sm:$0x30] %vm331, %v330
    %s338 = scalar_lea.vmem %s1, 3
    %339 = vst.msk [vmem:[%s338] ss:$16 sm:$0xc0] %vm331, %v330
    %s340 = scalar_lea.vmem [#allocation0], 8
    %s341 = smov 3
    %v342 = vld [vmem:[%s340] ss:$9 sm:%s341]
    %s343 = scalar_lea.vmem [#allocation0], 14
    %s344 = smov 12
    %v345 = vld [vmem:[%s343] ss:$9 sm:%s344]
    %vm346 = vcmask 1043458
    %v347 = vsel %vm346, %v345, %v342
    %s348 = scalar_lea.vmem [#allocation0], 20
    %s349 = smov 48
    %v350 = vld [vmem:[%s348] ss:$9 sm:%s349]
    %vm351 = vcmask 1045508
    %v352 = vsel %vm351, %v350, %v347
    %s353 = scalar_lea.vmem [#allocation0], 26
    %s354 = smov 192
    %v355 = vld [vmem:[%s353] ss:$9 sm:%s354]
    %vm356 = vcmask 1047558
    %v357 = vsel %vm356, %v355, %v352
    %358 = vrot.lane.b32.xlu0 %v357, 108
    %v359 = vpop.permute.xlu0 %358
    %vm360 = vcmask 48128
    %s361 = scalar_lea.vmem %s1, 14
    %362 = vst.msk [vmem:[%s361] ss:$16 sm:$0x3] %vm360, %v359
    %s363 = scalar_lea.vmem %s1, 14
    %364 = vst.msk [vmem:[%s363] ss:$16 sm:$0xc] %vm360, %v359
    %s365 = scalar_lea.vmem %s1, 14
    %366 = vst.msk [vmem:[%s365] ss:$16 sm:$0x30] %vm360, %v359
    %s367 = scalar_lea.vmem %s1, 14
    %368 = vst.msk [vmem:[%s367] ss:$16 sm:$0xc0] %vm360, %v359
    %s369 = scalar_lea.vmem [#allocation0], 1
    %s370 = smov 3
    %v371 = vld [vmem:[%s369] ss:$15 sm:%s370]
    %s372 = scalar_lea.vmem [#allocation0], 4294967291
    %s373 = smov 12
    %v374 = vld [vmem:[%s372] ss:$15 sm:%s373]
    %vm375 = vcmask 1043458
    %v376 = vsel %vm375, %v374, %v371
    %s377 = scalar_lea.vmem [#allocation0], 4294967285
    %s378 = smov 48
    %v379 = vld [vmem:[%s377] ss:$15 sm:%s378]
    %vm380 = vcmask 1045508
    %v381 = vsel %vm380, %v379, %v376
    %s382 = scalar_lea.vmem [#allocation0], 4294967279
    %s383 = smov 192
    %v384 = vld [vmem:[%s382] ss:$15 sm:%s383]
    %vm385 = vcmask 1047558
    %v386 = vsel %vm385, %v384, %v381
    %387 = vrot.lane.b32.xlu0 %v386, 106
    %v388 = vpop.permute.xlu0 %387
    %vm389 = vcmask 48128
    %s390 = scalar_lea.vmem %s1, 9
    %391 = vst.msk [vmem:[%s390] ss:$16 sm:$0x3] %vm389, %v388
    %s392 = scalar_lea.vmem %s1, 9
    %393 = vst.msk [vmem:[%s392] ss:$16 sm:$0xc] %vm389, %v388
    %s394 = scalar_lea.vmem %s1, 9
    %395 = vst.msk [vmem:[%s394] ss:$16 sm:$0x30] %vm389, %v388
    %s396 = scalar_lea.vmem %s1, 9
    %397 = vst.msk [vmem:[%s396] ss:$16 sm:$0xc0] %vm389, %v388
    %s398 = smov 3
    %v399 = vld [vmem:[#allocation0] ss:$9 sm:%s398]
    %s400 = scalar_lea.vmem [#allocation0], 6
    %s401 = smov 12
    %v402 = vld [vmem:[%s400] ss:$9 sm:%s401]
    %vm403 = vcmask 1043458
    %v404 = vsel %vm403, %v402, %v399
    %s405 = scalar_lea.vmem [#allocation0], 12
    %s406 = smov 48
    %v407 = vld [vmem:[%s405] ss:$9 sm:%s406]
    %vm408 = vcmask 1045508
    %v409 = vsel %vm408, %v407, %v404
    %s410 = scalar_lea.vmem [#allocation0], 18
    %s411 = smov 192
    %v412 = vld [vmem:[%s410] ss:$9 sm:%s411]
    %vm413 = vcmask 1047558
    %v414 = vsel %vm413, %v412, %v409
    %415 = vrot.lane.b32.xlu0 %v414, 104
    %v416 = vpop.permute.xlu0 %415
    %vm417 = vcmask 48128
    %s418 = scalar_lea.vmem %s1, 4
    %419 = vst.msk [vmem:[%s418] ss:$16 sm:$0x3] %vm417, %v416
    %s420 = scalar_lea.vmem %s1, 4
    %421 = vst.msk [vmem:[%s420] ss:$16 sm:$0xc] %vm417, %v416
    %s422 = scalar_lea.vmem %s1, 4
    %423 = vst.msk [vmem:[%s422] ss:$16 sm:$0x30] %vm417, %v416
    %s424 = scalar_lea.vmem %s1, 4
    %425 = vst.msk [vmem:[%s424] ss:$16 sm:$0xc0] %vm417, %v416
    %s426 = scalar_lea.vmem [#allocation0], 8
    %s427 = smov 3
    %v428 = vld [vmem:[%s426] ss:$9 sm:%s427]
    %s429 = scalar_lea.vmem [#allocation0], 14
    %s430 = smov 12
    %v431 = vld [vmem:[%s429] ss:$9 sm:%s430]
    %vm432 = vcmask 1043458
    %v433 = vsel %vm432, %v431, %v428
    %s434 = scalar_lea.vmem [#allocation0], 20
    %s435 = smov 48
    %v436 = vld [vmem:[%s434] ss:$9 sm:%s435]
    %vm437 = vcmask 1045508
    %v438 = vsel %vm437, %v436, %v433
    %s439 = scalar_lea.vmem [#allocation0], 26
    %s440 = smov 192
    %v441 = vld [vmem:[%s439] ss:$9 sm:%s440]
    %vm442 = vcmask 1047558
    %v443 = vsel %vm442, %v441, %v438
    %444 = vrot.lane.b32.xlu0 %v443, 102
    %v445 = vpop.permute.xlu0 %444
    %vm446 = vcmask 48128
    %s447 = scalar_lea.vmem %s1, 15
    %448 = vst.msk [vmem:[%s447] ss:$16 sm:$0x3] %vm446, %v445
    %s449 = scalar_lea.vmem %s1, 15
    %450 = vst.msk [vmem:[%s449] ss:$16 sm:$0xc] %vm446, %v445
    %s451 = scalar_lea.vmem %s1, 15
    %452 = vst.msk [vmem:[%s451] ss:$16 sm:$0x30] %vm446, %v445
    %s453 = scalar_lea.vmem %s1, 15
    %454 = vst.msk [vmem:[%s453] ss:$16 sm:$0xc0] %vm446, %v445
    %s455 = scalar_lea.vmem [#allocation0], 1
    %s456 = smov 3
    %v457 = vld [vmem:[%s455] ss:$15 sm:%s456]
    %s458 = scalar_lea.vmem [#allocation0], 4294967291
    %s459 = smov 12
    %v460 = vld [vmem:[%s458] ss:$15 sm:%s459]
    %vm461 = vcmask 1043458
    %v462 = vsel %vm461, %v460, %v457
    %s463 = scalar_lea.vmem [#allocation0], 4294967285
    %s464 = smov 48
    %v465 = vld [vmem:[%s463] ss:$15 sm:%s464]
    %vm466 = vcmask 1045508
    %v467 = vsel %vm466, %v465, %v462
    %s468 = scalar_lea.vmem [#allocation0], 4294967279
    %s469 = smov 192
    %v470 = vld [vmem:[%s468] ss:$15 sm:%s469]
    %vm471 = vcmask 1047558
    %v472 = vsel %vm471, %v470, %v467
    %473 = vrot.lane.b32.xlu0 %v472, 100
    %v474 = vpop.permute.xlu0 %473
    %vm475 = vcmask 31744
    %s476 = scalar_lea.vmem %s1, 10
    %477 = vst.msk [vmem:[%s476] ss:$16 sm:$0x3] %vm475, %v474
    %s478 = scalar_lea.vmem %s1, 10
    %479 = vst.msk [vmem:[%s478] ss:$16 sm:$0xc] %vm475, %v474
    %s480 = scalar_lea.vmem %s1, 10
    %481 = vst.msk [vmem:[%s480] ss:$16 sm:$0x30] %vm475, %v474
    %s482 = scalar_lea.vmem %s1, 10
    %483 = vst.msk [vmem:[%s482] ss:$16 sm:$0xc0] %vm475, %v474
    %s484 = smov 3
    %v485 = vld [vmem:[#allocation0] ss:$9 sm:%s484]
    %s486 = scalar_lea.vmem [#allocation0], 6
    %s487 = smov 12
    %v488 = vld [vmem:[%s486] ss:$9 sm:%s487]
    %vm489 = vcmask 1043458
    %v490 = vsel %vm489, %v488, %v485
    %s491 = scalar_lea.vmem [#allocation0], 12
    %s492 = smov 48
    %v493 = vld [vmem:[%s491] ss:$9 sm:%s492]
    %vm494 = vcmask 1045508
    %v495 = vsel %vm494, %v493, %v490
    %s496 = scalar_lea.vmem [#allocation0], 18
    %s497 = smov 192
    %v498 = vld [vmem:[%s496] ss:$9 sm:%s497]
    %vm499 = vcmask 1047558
    %v500 = vsel %vm499, %v498, %v495
    %501 = vrot.lane.b32.xlu0 %v500, 98
    %v502 = vpop.permute.xlu0 %501
    %vm503 = vcmask 15360
    %s504 = scalar_lea.vmem %s1, 5
    %505 = vst.msk [vmem:[%s504] ss:$16 sm:$0x3] %vm503, %v502
    %s506 = scalar_lea.vmem %s1, 5
    %507 = vst.msk [vmem:[%s506] ss:$16 sm:$0xc] %vm503, %v502
    %s508 = scalar_lea.vmem %s1, 5
    %509 = vst.msk [vmem:[%s508] ss:$16 sm:$0x30] %vm503, %v502
    %s510 = scalar_lea.vmem %s1, 5
    %511 = vst.msk [vmem:[%s510] ss:$16 sm:$0xc0] %vm503, %v502
    %s512 = scalar_lea.vmem [#allocation0], 8
    %s513 = smov 3
    %v514 = vld [vmem:[%s512] ss:$9 sm:%s513]
    %s515 = scalar_lea.vmem [#allocation0], 14
    %s516 = smov 12
    %v517 = vld [vmem:[%s515] ss:$9 sm:%s516]
    %vm518 = vcmask 1043458
    %v519 = vsel %vm518, %v517, %v514
    %s520 = scalar_lea.vmem [#allocation0], 20
    %s521 = smov 48
    %v522 = vld [vmem:[%s520] ss:$9 sm:%s521]
    %vm523 = vcmask 1045508
    %v524 = vsel %vm523, %v522, %v519
    %s525 = scalar_lea.vmem [#allocation0], 26
    %s526 = smov 192
    %v527 = vld [vmem:[%s525] ss:$9 sm:%s526]
    %vm528 = vcmask 1047558
    %v529 = vsel %vm528, %v527, %v524
    %530 = vrot.lane.b32.xlu0 %v529, 4
    %v531 = vpop.permute.xlu0 %530
    %vm532 = vcmask 48160
    %s533 = scalar_lea.vmem %s1, 10
    %534 = vst.msk [vmem:[%s533] ss:$16 sm:$0x3] %vm532, %v531
    %s535 = scalar_lea.vmem %s1, 10
    %536 = vst.msk [vmem:[%s535] ss:$16 sm:$0xc] %vm532, %v531
    %s537 = scalar_lea.vmem %s1, 10
    %538 = vst.msk [vmem:[%s537] ss:$16 sm:$0x30] %vm532, %v531
    %s539 = scalar_lea.vmem %s1, 10
    %540 = vst.msk [vmem:[%s539] ss:$16 sm:$0xc0] %vm532, %v531
    %s541 = scalar_lea.vmem [#allocation0], 1
    %s542 = smov 3
    %v543 = vld [vmem:[%s541] ss:$15 sm:%s542]
    %s544 = scalar_lea.vmem [#allocation0], 4294967291
    %s545 = smov 12
    %v546 = vld [vmem:[%s544] ss:$15 sm:%s545]
    %vm547 = vcmask 1043458
    %v548 = vsel %vm547, %v546, %v543
    %s549 = scalar_lea.vmem [#allocation0], 4294967285
    %s550 = smov 48
    %v551 = vld [vmem:[%s549] ss:$15 sm:%s550]
    %vm552 = vcmask 1045508
    %v553 = vsel %vm552, %v551, %v548
    %s554 = scalar_lea.vmem [#allocation0], 4294967279
    %s555 = smov 192
    %v556 = vld [vmem:[%s554] ss:$15 sm:%s555]
    %vm557 = vcmask 1047558
    %v558 = vsel %vm557, %v556, %v553
    %559 = vrot.lane.b32.xlu0 %v558, 2
    %v560 = vpop.permute.xlu0 %559
    %vm561 = vcmask 48144
    %s562 = scalar_lea.vmem %s1, 5
    %563 = vst.msk [vmem:[%s562] ss:$16 sm:$0x3] %vm561, %v560
    %s564 = scalar_lea.vmem %s1, 5
    %565 = vst.msk [vmem:[%s564] ss:$16 sm:$0xc] %vm561, %v560
    %s566 = scalar_lea.vmem %s1, 5
    %567 = vst.msk [vmem:[%s566] ss:$16 sm:$0x30] %vm561, %v560
    %s568 = scalar_lea.vmem %s1, 5
    %569 = vst.msk [vmem:[%s568] ss:$16 sm:$0xc0] %vm561, %v560

// kernel: fwd.5
$region0: #{fwd.5}
  #allocation0 [shape = 'u32[]', space=smem, size = 0x4, offset = 0x4, fixed_abs, tag = 'smem constant byte address 0x4 - core index']
  #allocation1 [shape = 'u32[144,128]{1,0:T(1,128)}', space=vmem, size = 0x12000, scoped, tag = 'internal scratch']
  %s0 = inlined_call_operand.vmem [shape: f32[2,8,64], index: 0, kind: input, shape index: {}]
  %s1 = inlined_call_operand.vmem [shape: f32[2,32,1], index: 1, kind: input, shape index: {}]
  %s2 = inlined_call_operand.vmem [shape: f32[32,8], index: 2, kind: input, shape index: {}]
  %s3 = inlined_call_operand.vmem [shape: f32[16,32], index: 3, kind: input, shape index: {}]
  %s4 = inlined_call_operand.vmem [shape: f32[16,1], index: 4, kind: input, shape index: {}]
  %s5 = inlined_call_operand.vmem [shape: f32[16,16], index: 5, kind: input, shape index: {}]
  %s6 = inlined_call_operand.vmem [shape: f32[16,1], index: 6, kind: input, shape index: {}]
  %s7 = inlined_call_operand.vmem [shape: f32[32,16], index: 7, kind: input, shape index: {}]
  %s8 = inlined_call_operand.vmem [shape: f32[32,1], index: 8, kind: input, shape index: {}]
  %s9 = inlined_call_operand.vmem [shape: f32[16,32], index: 9, kind: input, shape index: {}]
  %s10 = inlined_call_operand.vmem [shape: f32[16,1], index: 10, kind: input, shape index: {}]
  %s11 = inlined_call_operand.vmem [shape: f32[32,16], index: 11, kind: input, shape index: {}]
  %s12 = inlined_call_operand.vmem [shape: f32[32,1], index: 12, kind: input, shape index: {}]
  %s13 = inlined_call_operand.vmem [shape: f32[32,32], index: 13, kind: input, shape index: {}]
  %s14 = inlined_call_operand.vmem [shape: f32[32,1], index: 14, kind: input, shape index: {}]
  %s15 = inlined_call_operand.vmem [shape: f32[6,32], index: 15, kind: input, shape index: {}]
  %s16 = inlined_call_operand.vmem [shape: f32[6,1], index: 16, kind: input, shape index: {}]
  %s17 = inlined_call_operand.vmem [shape: f32[2,6,64], index: 17, kind: output, shape index: {}]
  %s18 = sld [smem:[#allocation0]]
  $region101: #{fwd.5} parent=0
    _
  %s20 = ssub.s32 1, %s18
  %s21 = scalar_select 0, %s20, %s18
  loop: start=0, step=1, limit=4
  $region2: #{fwd.5} parent=0 // loop_pre_header
    _
  $region3: #{fwd.5} parent=0 // loop_header
    %s23 = sphi 0, %s27
    %p24 = scmp.ge.s32.totalorder %s23, 4
    %s30 = sphi 0, %s42
    %s31 = sphi 0, %s38
    %s32 = sphi 0, %s30
    %s33 = sphi 0, %s31
    %s34 = sphi 0, %s32
    %s35 = sphi 0, %s33
    %s47 = sphi 0, %s49
    %s50 = sphi 0, %s47
    %s51 = sphi 0, %s50
    %s67 = sphi 0, %s51
    %s73 = sphi 0, %s75
    %s76 = sphi 0, %s73
    %s77 = sphi 0, %s76
    %s93 = sphi 0, %s77
    %s97 = sphi 0, %s97
    %s99 = sphi 0, %s97
    %s100 = sphi 0, %s99
    %s114 = sphi 0, %s100
    %s118 = sphi 0, %s118
    %s120 = sphi 0, %s118
    %s121 = sphi 0, %s120
    %s135 = sphi 0, %s121
    %s139 = sphi 0, %s139
    %s141 = sphi 0, %s139
    %s142 = sphi 0, %s141
    %s156 = sphi 0, %s142
    %s160 = sphi 0, %s160
    %s162 = sphi 0, %s160
    %s163 = sphi 0, %s162
    %s177 = sphi 0, %s163
    %s181 = sphi 0, %s181
    %s183 = sphi 0, %s181
    %s184 = sphi 0, %s183
    %s198 = sphi 0, %s184
    %s202 = sphi 0, %s202
    %s204 = sphi 0, %s202
    %s205 = sphi 0, %s204
    %s219 = sphi 0, %s205
    %s223 = sphi 0, %s223
    %s225 = sphi 0, %s223
    %s226 = sphi 0, %s225
    %s240 = sphi 0, %s226
    %s244 = sphi 0, %s244
    %s246 = sphi 0, %s244
    %s247 = sphi 0, %s246
    %s261 = sphi 0, %s247
    %s265 = sphi 0, %s265
    %s267 = sphi 0, %s265
    %s268 = sphi 0, %s267
    %s282 = sphi 0, %s268
    %s286 = sphi 0, %s286
    %s288 = sphi 0, %s286
    %s289 = sphi 0, %s288
    %s303 = sphi 0, %s289
    %s307 = sphi 0, %s307
    %s309 = sphi 0, %s307
    %s310 = sphi 0, %s309
    %s324 = sphi 0, %s310
    %s328 = sphi 0, %s328
    %s330 = sphi 0, %s328
    %s331 = sphi 0, %s330
    %s345 = sphi 0, %s331
    %s349 = sphi 0, %s349
    %s351 = sphi 0, %s349
    %s352 = sphi 0, %s351
    %s366 = sphi 0, %s352
    %s370 = sphi 0, %s370
    %s372 = sphi 0, %s370
    %s373 = sphi 0, %s372
    %s387 = sphi 0, %s373
    %s391 = sphi 0, %s391
    %s393 = sphi 0, %s391
    %s394 = sphi 0, %s393
    %s408 = sphi 0, %s394
    %s416 = sphi 0, %s418
    %s419 = sphi 0, %s416
    %s420 = sphi 0, %s419
    %s436 = sphi 0, %s420
  $region4: #{fwd.5} parent=0 // loop_header_branch
    %26 = sbr.rel (%p24) target = $region8
  $region5: #{fwd.5} parent=0 // loop_body
    %s28 = ssub.s32 %s23, 1
    %s29 = ssub.s32 %s23, 2
    %s36 = sadd.s32 1, %s31
    %p37 = scmp.ge.s32.totalorder %s36, 1
    %s38 = scalar_select %p37, 0, %s36
    %s39 = sadd.s32 1, %s30
    %s40 = scalar_select %p37, %s39, %s30
    %p41 = scmp.ge.s32.totalorder %s40, 2
    %s42 = scalar_select %p41, 0, %s40
    %s43 = ssub.s32 %s30, %s42
    %s44 = ssub.s32 %s31, %s38
    %s45 = sor.u32 %s43, %s44
    %p46 = scmp.eq.s32.totalorder %s45, 0
    %s48 = sadd.s32 %s47, 1
    %s49 = scalar_select %p46, %s47, %s48
    %p52 = pneg %p46
    %p53 = scmp.eq.s32.totalorder %s23, 1
    %p54 = por %p52, %p53
    %p55 = scmp.ne.s32.totalorder %s47, %s50
    %p56 = scmp.eq.s32.totalorder %s23, 0
    %p57 = por %p55, %p56
    %p58 = scmp.ne.s32.totalorder %s47, %s50
    %p59 = scmp.eq.s32.totalorder %s28, 1
    %p60 = por %p58, %p59
    %p61 = scmp.ne.s32.totalorder %s50, %s51
    %p62 = scmp.eq.s32.totalorder %s28, 0
    %p63 = por %p61, %p62
    %p64 = scmp.ne.s32.totalorder %s50, %s51
    %p65 = scmp.eq.s32.totalorder %s29, 1
    %p66 = por %p64, %p65
    %p68 = scmp.ne.s32.totalorder %s51, %s67
    %p69 = scmp.eq.s32.totalorder %s29, 0
    %p70 = por %p68, %p69
    %s71 = ssub.s32 %s30, %s42
    %p72 = scmp.eq.s32.totalorder %s71, 0
    %s74 = sadd.s32 %s73, 1
    %s75 = scalar_select %p72, %s73, %s74
    %p78 = pneg %p72
    %p79 = scmp.eq.s32.totalorder %s23, 1
    %p80 = por %p78, %p79
    %p81 = scmp.ne.s32.totalorder %s73, %s76
    %p82 = scmp.eq.s32.totalorder %s23, 0
    %p83 = por %p81, %p82
    %p84 = scmp.ne.s32.totalorder %s73, %s76
    %p85 = scmp.eq.s32.totalorder %s28, 1
    %p86 = por %p84, %p85
    %p87 = scmp.ne.s32.totalorder %s76, %s77
    %p88 = scmp.eq.s32.totalorder %s28, 0
    %p89 = por %p87, %p88
    %p90 = scmp.ne.s32.totalorder %s76, %s77
    %p91 = scmp.eq.s32.totalorder %s29, 1
    %p92 = por %p90, %p91
    %p94 = scmp.ne.s32.totalorder %s77, %s93
    %p95 = scmp.eq.s32.totalorder %s29, 0
    %p96 = por %p94, %p95
    %s98 = sadd.s32 %s97, 1
    %p101 = scmp.eq.s32.totalorder %s23, 1
    %p102 = scmp.ne.s32.totalorder %s97, %s99
    %p103 = scmp.eq.s32.totalorder %s23, 0
    %p104 = por %p102, %p103
    %p105 = scmp.ne.s32.totalorder %s97, %s99
    %p106 = scmp.eq.s32.totalorder %s28, 1
    %p107 = por %p105, %p106
    %p108 = scmp.ne.s32.totalorder %s99, %s100
    %p109 = scmp.eq.s32.totalorder %s28, 0
    %p110 = por %p108, %p109
    %p111 = scmp.ne.s32.totalorder %s99, %s100
    %p112 = scmp.eq.s32.totalorder %s29, 1
    %p113 = por %p111, %p112
    %p115 = scmp.ne.s32.totalorder %s100, %s114
    %p116 = scmp.eq.s32.totalorder %s29, 0
    %p117 = por %p115, %p116
    %s119 = sadd.s32 %s118, 1
    %p122 = scmp.eq.s32.totalorder %s23, 1
    %p123 = scmp.ne.s32.totalorder %s118, %s120
    %p124 = scmp.eq.s32.totalorder %s23, 0
    %p125 = por %p123, %p124
    %p126 = scmp.ne.s32.totalorder %s118, %s120
    %p127 = scmp.eq.s32.totalorder %s28, 1
    %p128 = por %p126, %p127
    %p129 = scmp.ne.s32.totalorder %s120, %s121
    %p130 = scmp.eq.s32.totalorder %s28, 0
    %p131 = por %p129, %p130
    %p132 = scmp.ne.s32.totalorder %s120, %s121
    %p133 = scmp.eq.s32.totalorder %s29, 1
    %p134 = por %p132, %p133
    %p136 = scmp.ne.s32.totalorder %s121, %s135
    %p137 = scmp.eq.s32.totalorder %s29, 0
    %p138 = por %p136, %p137
    %s140 = sadd.s32 %s139, 1
    %p143 = scmp.eq.s32.totalorder %s23, 1
    %p144 = scmp.ne.s32.totalorder %s139, %s141
    %p145 = scmp.eq.s32.totalorder %s23, 0
    %p146 = por %p144, %p145
    %p147 = scmp.ne.s32.totalorder %s139, %s141
    %p148 = scmp.eq.s32.totalorder %s28, 1
    %p149 = por %p147, %p148
    %p150 = scmp.ne.s32.totalorder %s141, %s142
    %p151 = scmp.eq.s32.totalorder %s28, 0
    %p152 = por %p150, %p151
    %p153 = scmp.ne.s32.totalorder %s141, %s142
    %p154 = scmp.eq.s32.totalorder %s29, 1
    %p155 = por %p153, %p154
    %p157 = scmp.ne.s32.totalorder %s142, %s156
    %p158 = scmp.eq.s32.totalorder %s29, 0
    %p159 = por %p157, %p158
    %s161 = sadd.s32 %s160, 1
    %p164 = scmp.eq.s32.totalorder %s23, 1
    %p165 = scmp.ne.s32.totalorder %s160, %s162
    %p166 = scmp.eq.s32.totalorder %s23, 0
    %p167 = por %p165, %p166
    %p168 = scmp.ne.s32.totalorder %s160, %s162
    %p169 = scmp.eq.s32.totalorder %s28, 1
    %p170 = por %p168, %p169
    %p171 = scmp.ne.s32.totalorder %s162, %s163
    %p172 = scmp.eq.s32.totalorder %s28, 0
    %p173 = por %p171, %p172
    %p174 = scmp.ne.s32.totalorder %s162, %s163
    %p175 = scmp.eq.s32.totalorder %s29, 1
    %p176 = por %p174, %p175
    %p178 = scmp.ne.s32.totalorder %s163, %s177
    %p179 = scmp.eq.s32.totalorder %s29, 0
    %p180 = por %p178, %p179
    %s182 = sadd.s32 %s181, 1
    %p185 = scmp.eq.s32.totalorder %s23, 1
    %p186 = scmp.ne.s32.totalorder %s181, %s183
    %p187 = scmp.eq.s32.totalorder %s23, 0
    %p188 = por %p186, %p187
    %p189 = scmp.ne.s32.totalorder %s181, %s183
    %p190 = scmp.eq.s32.totalorder %s28, 1
    %p191 = por %p189, %p190
    %p192 = scmp.ne.s32.totalorder %s183, %s184
    %p193 = scmp.eq.s32.totalorder %s28, 0
    %p194 = por %p192, %p193
    %p195 = scmp.ne.s32.totalorder %s183, %s184
    %p196 = scmp.eq.s32.totalorder %s29, 1
    %p197 = por %p195, %p196
    %p199 = scmp.ne.s32.totalorder %s184, %s198
    %p200 = scmp.eq.s32.totalorder %s29, 0
    %p201 = por %p199, %p200
    %s203 = sadd.s32 %s202, 1
    %p206 = scmp.eq.s32.totalorder %s23, 1
    %p207 = scmp.ne.s32.totalorder %s202, %s204
    %p208 = scmp.eq.s32.totalorder %s23, 0
    %p209 = por %p207, %p208
    %p210 = scmp.ne.s32.totalorder %s202, %s204
    %p211 = scmp.eq.s32.totalorder %s28, 1
    %p212 = por %p210, %p211
    %p213 = scmp.ne.s32.totalorder %s204, %s205
    %p214 = scmp.eq.s32.totalorder %s28, 0
    %p215 = por %p213, %p214
    %p216 = scmp.ne.s32.totalorder %s204, %s205
    %p217 = scmp.eq.s32.totalorder %s29, 1
    %p218 = por %p216, %p217
    %p220 = scmp.ne.s32.totalorder %s205, %s219
    %p221 = scmp.eq.s32.totalorder %s29, 0
    %p222 = por %p220, %p221
    %s224 = sadd.s32 %s223, 1
    %p227 = scmp.eq.s32.totalorder %s23, 1
    %p228 = scmp.ne.s32.totalorder %s223, %s225
    %p229 = scmp.eq.s32.totalorder %s23, 0
    %p230 = por %p228, %p229
    %p231 = scmp.ne.s32.totalorder %s223, %s225
    %p232 = scmp.eq.s32.totalorder %s28, 1
    %p233 = por %p231, %p232
    %p234 = scmp.ne.s32.totalorder %s225, %s226
    %p235 = scmp.eq.s32.totalorder %s28, 0
    %p236 = por %p234, %p235
    %p237 = scmp.ne.s32.totalorder %s225, %s226
    %p238 = scmp.eq.s32.totalorder %s29, 1
    %p239 = por %p237, %p238
    %p241 = scmp.ne.s32.totalorder %s226, %s240
    %p242 = scmp.eq.s32.totalorder %s29, 0
    %p243 = por %p241, %p242
    %s245 = sadd.s32 %s244, 1
    %p248 = scmp.eq.s32.totalorder %s23, 1
    %p249 = scmp.ne.s32.totalorder %s244, %s246
    %p250 = scmp.eq.s32.totalorder %s23, 0
    %p251 = por %p249, %p250
    %p252 = scmp.ne.s32.totalorder %s244, %s246
    %p253 = scmp.eq.s32.totalorder %s28, 1
    %p254 = por %p252, %p253
    %p255 = scmp.ne.s32.totalorder %s246, %s247
    %p256 = scmp.eq.s32.totalorder %s28, 0
    %p257 = por %p255, %p256
    %p258 = scmp.ne.s32.totalorder %s246, %s247
    %p259 = scmp.eq.s32.totalorder %s29, 1
    %p260 = por %p258, %p259
    %p262 = scmp.ne.s32.totalorder %s247, %s261
    %p263 = scmp.eq.s32.totalorder %s29, 0
    %p264 = por %p262, %p263
    %s266 = sadd.s32 %s265, 1
    %p269 = scmp.eq.s32.totalorder %s23, 1
    %p270 = scmp.ne.s32.totalorder %s265, %s267
    %p271 = scmp.eq.s32.totalorder %s23, 0
    %p272 = por %p270, %p271
    %p273 = scmp.ne.s32.totalorder %s265, %s267
    %p274 = scmp.eq.s32.totalorder %s28, 1
    %p275 = por %p273, %p274
    %p276 = scmp.ne.s32.totalorder %s267, %s268
    %p277 = scmp.eq.s32.totalorder %s28, 0
    %p278 = por %p276, %p277
    %p279 = scmp.ne.s32.totalorder %s267, %s268
    %p280 = scmp.eq.s32.totalorder %s29, 1
    %p281 = por %p279, %p280
    %p283 = scmp.ne.s32.totalorder %s268, %s282
    %p284 = scmp.eq.s32.totalorder %s29, 0
    %p285 = por %p283, %p284
    %s287 = sadd.s32 %s286, 1
    %p290 = scmp.eq.s32.totalorder %s23, 1
    %p291 = scmp.ne.s32.totalorder %s286, %s288
    %p292 = scmp.eq.s32.totalorder %s23, 0
    %p293 = por %p291, %p292
    %p294 = scmp.ne.s32.totalorder %s286, %s288
    %p295 = scmp.eq.s32.totalorder %s28, 1
    %p296 = por %p294, %p295
    %p297 = scmp.ne.s32.totalorder %s288, %s289
    %p298 = scmp.eq.s32.totalorder %s28, 0
    %p299 = por %p297, %p298
    %p300 = scmp.ne.s32.totalorder %s288, %s289
    %p301 = scmp.eq.s32.totalorder %s29, 1
    %p302 = por %p300, %p301
    %p304 = scmp.ne.s32.totalorder %s289, %s303
    %p305 = scmp.eq.s32.totalorder %s29, 0
    %p306 = por %p304, %p305
    %s308 = sadd.s32 %s307, 1
    %p311 = scmp.eq.s32.totalorder %s23, 1
    %p312 = scmp.ne.s32.totalorder %s307, %s309
    %p313 = scmp.eq.s32.totalorder %s23, 0
    %p314 = por %p312, %p313
    %p315 = scmp.ne.s32.totalorder %s307, %s309
    %p316 = scmp.eq.s32.totalorder %s28, 1
    %p317 = por %p315, %p316
    %p318 = scmp.ne.s32.totalorder %s309, %s310
    %p319 = scmp.eq.s32.totalorder %s28, 0
    %p320 = por %p318, %p319
    %p321 = scmp.ne.s32.totalorder %s309, %s310
    %p322 = scmp.eq.s32.totalorder %s29, 1
    %p323 = por %p321, %p322
    %p325 = scmp.ne.s32.totalorder %s310, %s324
    %p326 = scmp.eq.s32.totalorder %s29, 0
    %p327 = por %p325, %p326
    %s329 = sadd.s32 %s328, 1
    %p332 = scmp.eq.s32.totalorder %s23, 1
    %p333 = scmp.ne.s32.totalorder %s328, %s330
    %p334 = scmp.eq.s32.totalorder %s23, 0
    %p335 = por %p333, %p334
    %p336 = scmp.ne.s32.totalorder %s328, %s330
    %p337 = scmp.eq.s32.totalorder %s28, 1
    %p338 = por %p336, %p337
    %p339 = scmp.ne.s32.totalorder %s330, %s331
    %p340 = scmp.eq.s32.totalorder %s28, 0
    %p341 = por %p339, %p340
    %p342 = scmp.ne.s32.totalorder %s330, %s331
    %p343 = scmp.eq.s32.totalorder %s29, 1
    %p344 = por %p342, %p343
    %p346 = scmp.ne.s32.totalorder %s331, %s345
    %p347 = scmp.eq.s32.totalorder %s29, 0
    %p348 = por %p346, %p347
    %s350 = sadd.s32 %s349, 1
    %p353 = scmp.eq.s32.totalorder %s23, 1
    %p354 = scmp.ne.s32.totalorder %s349, %s351
    %p355 = scmp.eq.s32.totalorder %s23, 0
    %p356 = por %p354, %p355
    %p357 = scmp.ne.s32.totalorder %s349, %s351
    %p358 = scmp.eq.s32.totalorder %s28, 1
    %p359 = por %p357, %p358
    %p360 = scmp.ne.s32.totalorder %s351, %s352
    %p361 = scmp.eq.s32.totalorder %s28, 0
    %p362 = por %p360, %p361
    %p363 = scmp.ne.s32.totalorder %s351, %s352
    %p364 = scmp.eq.s32.totalorder %s29, 1
    %p365 = por %p363, %p364
    %p367 = scmp.ne.s32.totalorder %s352, %s366
    %p368 = scmp.eq.s32.totalorder %s29, 0
    %p369 = por %p367, %p368
    %s371 = sadd.s32 %s370, 1
    %p374 = scmp.eq.s32.totalorder %s23, 1
    %p375 = scmp.ne.s32.totalorder %s370, %s372
    %p376 = scmp.eq.s32.totalorder %s23, 0
    %p377 = por %p375, %p376
    %p378 = scmp.ne.s32.totalorder %s370, %s372
    %p379 = scmp.eq.s32.totalorder %s28, 1
    %p380 = por %p378, %p379
    %p381 = scmp.ne.s32.totalorder %s372, %s373
    %p382 = scmp.eq.s32.totalorder %s28, 0
    %p383 = por %p381, %p382
    %p384 = scmp.ne.s32.totalorder %s372, %s373
    %p385 = scmp.eq.s32.totalorder %s29, 1
    %p386 = por %p384, %p385
    %p388 = scmp.ne.s32.totalorder %s373, %s387
    %p389 = scmp.eq.s32.totalorder %s29, 0
    %p390 = por %p388, %p389
    %s392 = sadd.s32 %s391, 1
    %p395 = scmp.eq.s32.totalorder %s23, 1
    %p396 = scmp.ne.s32.totalorder %s391, %s393
    %p397 = scmp.eq.s32.totalorder %s23, 0
    %p398 = por %p396, %p397
    %p399 = scmp.ne.s32.totalorder %s391, %s393
    %p400 = scmp.eq.s32.totalorder %s28, 1
    %p401 = por %p399, %p400
    %p402 = scmp.ne.s32.totalorder %s393, %s394
    %p403 = scmp.eq.s32.totalorder %s28, 0
    %p404 = por %p402, %p403
    %p405 = scmp.ne.s32.totalorder %s393, %s394
    %p406 = scmp.eq.s32.totalorder %s29, 1
    %p407 = por %p405, %p406
    %p409 = scmp.ne.s32.totalorder %s394, %s408
    %p410 = scmp.eq.s32.totalorder %s29, 0
    %p411 = por %p409, %p410
    %s412 = ssub.s32 %s30, %s42
    %s413 = ssub.s32 %s31, %s38
    %s414 = sor.u32 %s412, %s413
    %p415 = scmp.eq.s32.totalorder %s414, 0
    %s417 = sadd.s32 %s416, 1
    %s418 = scalar_select %p415, %s416, %s417
    %p421 = pneg %p415
    %p422 = scmp.eq.s32.totalorder %s23, 1
    %p423 = por %p421, %p422
    %p424 = scmp.ne.s32.totalorder %s416, %s419
    %p425 = scmp.eq.s32.totalorder %s23, 0
    %p426 = por %p424, %p425
    %p427 = scmp.ne.s32.totalorder %s416, %s419
    %p428 = scmp.eq.s32.totalorder %s28, 1
    %p429 = por %p427, %p428
    %p430 = scmp.ne.s32.totalorder %s419, %s420
    %p431 = scmp.eq.s32.totalorder %s28, 0
    %p432 = por %p430, %p431
    %p433 = scmp.ne.s32.totalorder %s419, %s420
    %p434 = scmp.eq.s32.totalorder %s29, 1
    %p435 = por %p433, %p434
    %p437 = scmp.ne.s32.totalorder %s420, %s436
    %p438 = scmp.eq.s32.totalorder %s29, 0
    %p439 = por %p437, %p438
    %p440 = scmp.le.s32.totalorder 1, %s23
    %p441 = scmp.lt.s32.totalorder %s23, 3
    %p442 = pnand %p440, %p441
    %p443 = pneg %p442
    // Predicated region
    $region9: #{fwd.5} parent=5 // pred_check
      _
    $region10: #{fwd.5} parent=5 // pred_check_branch
      %445 = sbr.rel (%p442) target = $region12
    $region11: #{fwd.5} parent=5 // pred_region
      %s446 = ssub.s32 %s23, 1
      // Predicated region
      $region13: #{fwd.5} parent=11 // pred_check
        %p447 = pneg %p110
      $region14: #{fwd.5} parent=11 // pred_check_branch
        %449 = sbr.rel (%p447) target = $region16
      $region15: #{fwd.5} parent=11 // pred_region
        _
      $region16: #{fwd.5} parent=11 // pred_fallthru
        _
      // Predicated region
      $region17: #{fwd.5} parent=11 // pred_check
        %p450 = pneg %p131
      $region18: #{fwd.5} parent=11 // pred_check_branch
        %452 = sbr.rel (%p450) target = $region20
      $region19: #{fwd.5} parent=11 // pred_region
        _
      $region20: #{fwd.5} parent=11 // pred_fallthru
        _
      // Predicated region
      $region21: #{fwd.5} parent=11 // pred_check
        %p453 = pneg %p152
      $region22: #{fwd.5} parent=11 // pred_check_branch
        %455 = sbr.rel (%p453) target = $region24
      $region23: #{fwd.5} parent=11 // pred_region
        _
      $region24: #{fwd.5} parent=11 // pred_fallthru
        _
      // Predicated region
      $region25: #{fwd.5} parent=11 // pred_check
        %p456 = pneg %p173
      $region26: #{fwd.5} parent=11 // pred_check_branch
        %458 = sbr.rel (%p456) target = $region28
      $region27: #{fwd.5} parent=11 // pred_region
        _
      $region28: #{fwd.5} parent=11 // pred_fallthru
        _
      // Predicated region
      $region29: #{fwd.5} parent=11 // pred_check
        %p459 = pneg %p194
      $region30: #{fwd.5} parent=11 // pred_check_branch
        %461 = sbr.rel (%p459) target = $region32
      $region31: #{fwd.5} parent=11 // pred_region
        _
      $region32: #{fwd.5} parent=11 // pred_fallthru
        _
      // Predicated region
      $region33: #{fwd.5} parent=11 // pred_check
        %p462 = pneg %p215
      $region34: #{fwd.5} parent=11 // pred_check_branch
        %464 = sbr.rel (%p462) target = $region36
      $region35: #{fwd.5} parent=11 // pred_region
        _
      $region36: #{fwd.5} parent=11 // pred_fallthru
        _
      // Predicated region
      $region37: #{fwd.5} parent=11 // pred_check
        %p465 = pneg %p236
      $region38: #{fwd.5} parent=11 // pred_check_branch
        %467 = sbr.rel (%p465) target = $region40
      $region39: #{fwd.5} parent=11 // pred_region
        _
      $region40: #{fwd.5} parent=11 // pred_fallthru
        _
      // Predicated region
      $region41: #{fwd.5} parent=11 // pred_check
        %p468 = pneg %p257
      $region42: #{fwd.5} parent=11 // pred_check_branch
        %470 = sbr.rel (%p468) target = $region44
      $region43: #{fwd.5} parent=11 // pred_region
        _
      $region44: #{fwd.5} parent=11 // pred_fallthru
        _
      // Predicated region
      $region45: #{fwd.5} parent=11 // pred_check
        %p471 = pneg %p278
      $region46: #{fwd.5} parent=11 // pred_check_branch
        %473 = sbr.rel (%p471) target = $region48
      $region47: #{fwd.5} parent=11 // pred_region
        _
      $region48: #{fwd.5} parent=11 // pred_fallthru
        _
      // Predicated region
      $region49: #{fwd.5} parent=11 // pred_check
        %p474 = pneg %p299
      $region50: #{fwd.5} parent=11 // pred_check_branch
        %476 = sbr.rel (%p474) target = $region52
      $region51: #{fwd.5} parent=11 // pred_region
        _
      $region52: #{fwd.5} parent=11 // pred_fallthru
        _
      // Predicated region
      $region53: #{fwd.5} parent=11 // pred_check
        %p477 = pneg %p320
      $region54: #{fwd.5} parent=11 // pred_check_branch
        %479 = sbr.rel (%p477) target = $region56
      $region55: #{fwd.5} parent=11 // pred_region
        _
      $region56: #{fwd.5} parent=11 // pred_fallthru
        _
      // Predicated region
      $region57: #{fwd.5} parent=11 // pred_check
        %p480 = pneg %p341
      $region58: #{fwd.5} parent=11 // pred_check_branch
        %482 = sbr.rel (%p480) target = $region60
      $region59: #{fwd.5} parent=11 // pred_region
        _
      $region60: #{fwd.5} parent=11 // pred_fallthru
        _
      // Predicated region
      $region61: #{fwd.5} parent=11 // pred_check
        %p483 = pneg %p362
      $region62: #{fwd.5} parent=11 // pred_check_branch
        %485 = sbr.rel (%p483) target = $region64
      $region63: #{fwd.5} parent=11 // pred_region
        _
      $region64: #{fwd.5} parent=11 // pred_fallthru
        _
      // Predicated region
      $region65: #{fwd.5} parent=11 // pred_check
        %p486 = pneg %p383
      $region66: #{fwd.5} parent=11 // pred_check_branch
        %488 = sbr.rel (%p486) target = $region68
      $region67: #{fwd.5} parent=11 // pred_region
        _
      $region68: #{fwd.5} parent=11 // pred_fallthru
        _
      // Predicated region
      $region69: #{fwd.5} parent=11 // pred_check
        %p489 = pneg %p404
      $region70: #{fwd.5} parent=11 // pred_check_branch
        %491 = sbr.rel (%p489) target = $region72
      $region71: #{fwd.5} parent=11 // pred_region
        _
      $region72: #{fwd.5} parent=11 // pred_fallthru
        _
    $region12: #{fwd.5} parent=5 // pred_fallthru
      _
    %p492 = scmp.lt.s32.totalorder %s23, 2
    // Predicated region
    $region73: #{fwd.5} parent=5 // pred_check
      %p493 = pneg %p492
    $region74: #{fwd.5} parent=5 // pred_check_branch
      %495 = sbr.rel (%p493) target = $region76
    $region75: #{fwd.5} parent=5 // pred_region
      // Predicated region
      $region77: #{fwd.5} parent=75 // pred_check
        %p496 = pneg %p57
      $region78: #{fwd.5} parent=75 // pred_check_branch
        %498 = sbr.rel (%p496) target = $region80
      $region79: #{fwd.5} parent=75 // pred_region
        %p499 = scmp.lt.s32.totalorder %s30, 1
        %s500 = scalar_select %p499, %s30, 1
        %p501 = scmp.lt.s32.totalorder %s31, 0
        %s502 = scalar_select %p501, %s31, 0
        %s503 = sadd.s32 %s502, %s500
        %s504 = smul.addr %s503, 8
        %s505 = scalar_lea.vmem %s0, %s504
      $region80: #{fwd.5} parent=75 // pred_fallthru
        _
      // Predicated region
      $region81: #{fwd.5} parent=75 // pred_check
        %p506 = pneg %p83
      $region82: #{fwd.5} parent=75 // pred_check_branch
        %508 = sbr.rel (%p506) target = $region84
      $region83: #{fwd.5} parent=75 // pred_region
        %p509 = scmp.lt.s32.totalorder %s30, 1
        %s510 = scalar_select %p509, %s30, 1
        %s511 = smul.addr %s510, 4
        %s512 = smul.addr %s511, 8
        %s513 = scalar_lea.vmem %s1, %s512
      $region84: #{fwd.5} parent=75 // pred_fallthru
        _
    $region76: #{fwd.5} parent=5 // pred_fallthru
      _
    %p514 = scmp.le.s32.totalorder 1, %s23
    %p515 = scmp.lt.s32.totalorder %s23, 3
    %p516 = pnand %p514, %p515
    %p517 = pneg %p516
    // Predicated region
    $region85: #{fwd.5} parent=5 // pred_check
      _
    $region86: #{fwd.5} parent=5 // pred_check_branch
      %519 = sbr.rel (%p516) target = $region88
    $region87: #{fwd.5} parent=5 // pred_region
      %s520 = ssub.s32 %s23, 1
      %p521 = scmp.lt.s32.totalorder %s32, 1
      %s522 = scalar_select %p521, %s32, 1
      %p523 = scmp.lt.s32.totalorder %s33, 0
      %s524 = scalar_select %p523, %s33, 0
      %s525 = sadd.s32 %s524, %s522
      %s526 = smul.addr %s525, 8
      %s527 = scalar_lea.vmem %s0, %s526
      %p528 = pneg %p63
      %p529 = pneg %p60
      %p530 = scmp.lt.s32.totalorder %s32, 1
      %s531 = scalar_select %p530, %s32, 1
      %s532 = smul.addr %s531, 4
      %s533 = smul.addr %s532, 8
      %s534 = scalar_lea.vmem %s1, %s533
      %p535 = pneg %p89
      %p536 = pneg %p86
      %p537 = pneg %p110
      %p538 = pneg %p107
      %p539 = pneg %p131
      %p540 = pneg %p128
      %p541 = pneg %p152
      %p542 = pneg %p149
      %p543 = pneg %p173
      %p544 = pneg %p170
      %p545 = pneg %p194
      %p546 = pneg %p191
      %p547 = pneg %p215
      %p548 = pneg %p212
      %p549 = pneg %p236
      %p550 = pneg %p233
      %p551 = pneg %p257
      %p552 = pneg %p254
      %p553 = pneg %p278
      %p554 = pneg %p275
      %p555 = pneg %p299
      %p556 = pneg %p296
      %p557 = pneg %p320
      %p558 = pneg %p317
      %p559 = pneg %p341
      %p560 = pneg %p338
      %p561 = pneg %p362
      %p562 = pneg %p359
      %p563 = pneg %p383
      %p564 = pneg %p380
      %p565 = pneg %p404
      %p566 = pneg %p401
      %p567 = pneg %p432
      %p568 = pneg %p429
      %p569 = scmp.lt.s32.totalorder %s32, 1
      %s570 = scalar_select %p569, %s32, 1
      %p571 = scmp.lt.s32.totalorder %s33, 0
      %s572 = scalar_select %p571, %s33, 0
      %s573 = sadd.s32 %s572, %s570
      %s574 = smul.addr %s573, 8
      %s575 = scalar_lea.vmem %s17, %s574
      %p576 = scmp.lt.s32.totalorder %s32, 1
      %s577 = scalar_select %p576, %s32, 1
      %p578 = scmp.lt.s32.totalorder %s33, 0
      %s579 = scalar_select %p578, %s33, 0
      %s580 = sadd.s32 %s579, %s577
      %s581 = smul.addr %s580, 8
      %s582 = scalar_lea.vmem %s0, %s581
      %p583 = scmp.lt.s32.totalorder %s32, 1
      %s584 = scalar_select %p583, %s32, 1
      %s585 = smul.addr %s584, 4
      %s586 = smul.addr %s585, 8
      %s587 = scalar_lea.vmem %s1, %s586
      %p588 = scmp.lt.s32.totalorder %s32, 1
      %s589 = scalar_select %p588, %s32, 1
      %p590 = scmp.lt.s32.totalorder %s33, 0
      %s591 = scalar_select %p590, %s33, 0
      %s592 = sadd.s32 %s591, %s589
      %s593 = smul.addr %s592, 8
      %s594 = scalar_lea.vmem %s17, %s593
      %v595 = vld [vmem:[%s582] sm:$0xff]
      %v596 = vld [vmem:[%s2] sm:$0xff]
      %v597 = vld [vmem:[%s2 + $0x8] sm:$0xff]
      %v598 = vld [vmem:[%s2 + $0x10] sm:$0xff]
      %v599 = vld [vmem:[%s2 + $0x18] sm:$0xff]
      %v600 = vld [vmem:[%s587] sm:$0xff]
      %v601 = vld [vmem:[%s587 + $0x8] sm:$0xff]
      %v602 = vld [vmem:[%s587 + $0x10] sm:$0xff]
      %v603 = vld [vmem:[%s587 + $0x18] sm:$0xff]
      %605 = vset.pattern.permute.xlu0 0
      %606 = vperm.xlu0 %605, %v600
      %v607 = vpop.permute.xlu0 %606
      %610 = vset.pattern.permute.xlu0 0
      %611 = vperm.xlu0 %610, %v601
      %v612 = vpop.permute.xlu0 %611
      %615 = vset.pattern.permute.xlu0 0
      %616 = vperm.xlu0 %615, %v602
      %v617 = vpop.permute.xlu0 %616
      %620 = vset.pattern.permute.xlu0 0
      %621 = vperm.xlu0 %620, %v603
      %v622 = vpop.permute.xlu0 %621
      %vm624 = vcmask 64512
      %v626 = vsel %vm624, %v596, 0
      %v629 = vsel %vm624, %v597, 0
      %v632 = vsel %vm624, %v598, 0
      %v635 = vsel %vm624, %v599, 0
      %637 = vmatprep.subr.mxu0 0.0
      %638 = vmatpush1.msra.mxu0 %v595
      %639 = vmatprep.subr.mxu0 0.0
      %640 = vmatpush1.msra.mxu0 0.0
      %641 = vmatprep.subr.mxu0 0.0
      %642 = vmatpush1.msra.mxu0 0.0
      %643 = vmatprep.subr.mxu0 0.0
      %644 = vmatpush1.msra.mxu0 0.0
      %645 = vmatprep.subr.mxu0 0.0
      %646 = vmatpush1.msra.mxu0 0.0
      %647 = vmatprep.subr.mxu0 0.0
      %648 = vmatpush1.msra.mxu0 0.0
      %649 = vmatprep.subr.mxu0 0.0
      %650 = vmatpush1.msra.mxu0 0.0
      %651 = vmatprep.subr.mxu0 0.0
      %652 = vmatpush1.msra.mxu0 0.0
      %653 = vmatprep.subr.mxu0 0.0
      %654 = vmatpush1.msra.mxu0 0.0
      %655 = vmatprep.subr.mxu0 0.0
      %656 = vmatpush1.msra.mxu0 0.0
      %657 = vmatprep.subr.mxu0 0.0
      %658 = vmatpush1.msra.mxu0 0.0
      %659 = vmatprep.subr.mxu0 0.0
      %660 = vmatpush1.msra.mxu0 0.0
      %661 = vmatprep.subr.mxu0 0.0
      %662 = vmatpush1.msra.mxu0 0.0
      %663 = vmatprep.subr.mxu0 0.0
      %664 = vmatpush1.msra.mxu0 0.0
      %665 = vmatprep.subr.mxu0 0.0
      %666 = vmatpush1.msra.mxu0 0.0
      %667 = vmatprep.subr.mxu0 0.0
      %668 = vmatpush1.msra.mxu0 0.0
      %669 = vmatprep.subr.mxu0 0.0
      %670 = vmatpush1.msra.mxu0 0.0
      %671 = vmatprep.subr.mxu0 0.0
      %672 = vmatpush1.msra.mxu0 0.0
      %673 = vmatprep.subr.mxu0 0.0
      %674 = vmatpush1.msra.mxu0 0.0
      %675 = vmatprep.subr.mxu0 0.0
      %676 = vmatpush1.msra.mxu0 0.0
      %677 = vmatprep.subr.mxu0 0.0
      %678 = vmatpush1.msra.mxu0 0.0
      %679 = vmatprep.subr.mxu0 0.0
      %680 = vmatpush1.msra.mxu0 0.0
      %681 = vmatprep.subr.mxu0 0.0
      %682 = vmatpush1.msra.mxu0 0.0
      %683 = vmatprep.subr.mxu0 0.0
      %684 = vmatpush1.msra.mxu0 0.0
      %685 = vmatprep.subr.mxu0 0.0
      %686 = vmatpush1.msra.mxu0 0.0
      %687 = vmatprep.subr.mxu0 0.0
      %688 = vmatpush1.msra.mxu0 0.0
      %689 = vmatprep.subr.mxu0 0.0
      %690 = vmatpush1.msra.mxu0 0.0
      %691 = vmatprep.subr.mxu0 0.0
      %692 = vmatpush1.msra.mxu0 0.0
      %693 = vmatprep.subr.mxu0 0.0
      %694 = vmatpush1.msra.mxu0 0.0
      %695 = vmatprep.subr.mxu0 0.0
      %696 = vmatpush1.msra.mxu0 0.0
      %697 = vmatprep.subr.mxu0 0.0
      %698 = vmatpush1.msra.mxu0 0.0
      %699 = vmatprep.subr.mxu0 0.0
      %700 = vmatpush1.msra.mxu0 0.0
      %701 = vmatprep.mubr.f32.mxu0 0.0
      %702 = vmatmul.mubr.f32.gmra.mrb[0].mxu0 %v626
      %v703 = vpop.f32.mrb[0].mxu0
      %v704 = vadd.f32 %v607, %v703
      %v705 = vpop.f32.mrb[0].mxu0
      %706 = vmatprep.mubr.f32.mxu0 0.0
      %707 = vmatmul.mubr.f32.gmra.mrb[0].mxu0 %v629
      %v708 = vpop.f32.mrb[0].mxu0
      %v709 = vadd.f32 %v612, %v708
      %v710 = vpop.f32.mrb[0].mxu0
      %711 = vmatprep.mubr.f32.mxu0 0.0
      %712 = vmatmul.mubr.f32.gmra.mrb[0].mxu0 %v632
      %v713 = vpop.f32.mrb[0].mxu0
      %v714 = vadd.f32 %v617, %v713
      %v715 = vpop.f32.mrb[0].mxu0
      %716 = vmatprep.mubr.f32.mxu0 0.0
      %717 = vmatmul.mubr.f32.gmra.mrb[0].mxu0 %v635
      %v718 = vpop.f32.mrb[0].mxu0
      %v719 = vadd.f32 %v622, %v718
      %v720 = vpop.f32.mrb[0].mxu0
      %721 = vdwg.mxu0
      %v722 = vmax.f32 %v704, 0.0
      %v723 = vmax.f32 %v709, 0.0
      %v724 = vmax.f32 %v714, 0.0
      %v725 = vmax.f32 %v719, 0.0
      %v726 = vld [vmem:[%s3] sm:$0xff]
      %v727 = vld [vmem:[%s3 + $0x8] sm:$0xff]
      %v728 = vld [vmem:[%s4] sm:$0xff]
      %v729 = vld [vmem:[%s4 + $0x8] sm:$0xff]
      %731 = vset.pattern.permute.xlu0 0
      %732 = vperm.xlu0 %731, %v728
      %v733 = vpop.permute.xlu0 %732
      %736 = vset.pattern.permute.xlu0 0
      %737 = vperm.xlu0 %736, %v729
      %v738 = vpop.permute.xlu0 %737
      %vm740 = vcmask 261120
      %v742 = vsel %vm740, %v726, 0
      %v745 = vsel %vm740, %v727, 0
      %747 = vmatprep.subr.mxu0 0.0
      %748 = vmatpush1.msra.mxu0 %v722
      %749 = vmatprep.subr.mxu0 0.0
      %750 = vmatpush1.msra.mxu0 %v723
      %751 = vmatprep.subr.mxu0 0.0
      %752 = vmatpush1.msra.mxu0 %v724
      %753 = vmatprep.subr.mxu0 0.0
      %754 = vmatpush1.msra.mxu0 %v725
      %755 = vmatprep.subr.mxu0 0.0
      %756 = vmatpush1.msra.mxu0 0.0
      %757 = vmatprep.subr.mxu0 0.0
      %758 = vmatpush1.msra.mxu0 0.0
      %759 = vmatprep.subr.mxu0 0.0
      %760 = vmatpush1.msra.mxu0 0.0
      %761 = vmatprep.subr.mxu0 0.0
      %762 = vmatpush1.msra.mxu0 0.0
      %763 = vmatprep.subr.mxu0 0.0
      %764 = vmatpush1.msra.mxu0 0.0
      %765 = vmatprep.subr.mxu0 0.0
      %766 = vmatpush1.msra.mxu0 0.0
      %767 = vmatprep.subr.mxu0 0.0
      %768 = vmatpush1.msra.mxu0 0.0
      %769 = vmatprep.subr.mxu0 0.0
      %770 = vmatpush1.msra.mxu0 0.0
      %771 = vmatprep.subr.mxu0 0.0
      %772 = vmatpush1.msra.mxu0 0.0
      %773 = vmatprep.subr.mxu0 0.0
      %774 = vmatpush1.msra.mxu0 0.0
      %775 = vmatprep.subr.mxu0 0.0
      %776 = vmatpush1.msra.mxu0 0.0
      %777 = vmatprep.subr.mxu0 0.0
      %778 = vmatpush1.msra.mxu0 0.0
      %779 = vmatprep.subr.mxu0 0.0
      %780 = vmatpush1.msra.mxu0 0.0
      %781 = vmatprep.subr.mxu0 0.0
      %782 = vmatpush1.msra.mxu0 0.0
      %783 = vmatprep.subr.mxu0 0.0
      %784 = vmatpush1.msra.mxu0 0.0
      %785 = vmatprep.subr.mxu0 0.0
      %786 = vmatpush1.msra.mxu0 0.0
      %787 = vmatprep.subr.mxu0 0.0
      %788 = vmatpush1.msra.mxu0 0.0
      %789 = vmatprep.subr.mxu0 0.0
      %790 = vmatpush1.msra.mxu0 0.0
      %791 = vmatprep.subr.mxu0 0.0
      %792 = vmatpush1.msra.mxu0 0.0
      %793 = vmatprep.subr.mxu0 0.0
      %794 = vmatpush1.msra.mxu0 0.0
      %795 = vmatprep.subr.mxu0 0.0
      %796 = vmatpush1.msra.mxu0 0.0
      %797 = vmatprep.subr.mxu0 0.0
      %798 = vmatpush1.msra.mxu0 0.0
      %799 = vmatprep.subr.mxu0 0.0
      %800 = vmatpush1.msra.mxu0 0.0
      %801 = vmatprep.subr.mxu0 0.0
      %802 = vmatpush1.msra.mxu0 0.0
      %803 = vmatprep.subr.mxu0 0.0
      %804 = vmatpush1.msra.mxu0 0.0
      %805 = vmatprep.subr.mxu0 0.0
      %806 = vmatpush1.msra.mxu0 0.0
      %807 = vmatprep.subr.mxu0 0.0
      %808 = vmatpush1.msra.mxu0 0.0
      %809 = vmatprep.subr.mxu0 0.0
      %810 = vmatpush1.msra.mxu0 0.0
      %811 = vmatprep.mubr.f32.mxu0 0.0
      %812 = vmatmul.mubr.f32.gmra.mrb[0].mxu0 %v742
      %v813 = vpop.f32.mrb[0].mxu0
      %v814 = vadd.f32 %v733, %v813
      %v815 = vpop.f32.mrb[0].mxu0
      %816 = vmatprep.mubr.f32.mxu0 0.0
      %817 = vmatmul.mubr.f32.gmra.mrb[0].mxu0 %v745
      %v818 = vpop.f32.mrb[0].mxu0
      %v819 = vadd.f32 %v738, %v818
      %v820 = vpop.f32.mrb[0].mxu0
      %821 = vdwg.mxu0
      %v822 = vld [vmem:[%s5] sm:$0xff]
      %v823 = vld [vmem:[%s5 + $0x8] sm:$0xff]
      %v824 = vld [vmem:[%s6] sm:$0xff]
      %v825 = vld [vmem:[%s6 + $0x8] sm:$0xff]
      %827 = vset.pattern.permute.xlu0 0
      %828 = vperm.xlu0 %827, %v824
      %v829 = vpop.permute.xlu0 %828
      %832 = vset.pattern.permute.xlu0 0
      %833 = vperm.xlu0 %832, %v825
      %v834 = vpop.permute.xlu0 %833
      %vm836 = vcmask 130048
      %v838 = vsel %vm836, %v822, 0
      %v841 = vsel %vm836, %v823, 0
      %843 = vmatprep.subr.mxu0 0.0
      %844 = vmatpush1.msra.mxu0 %v814
      %845 = vmatprep.subr.mxu0 0.0
      %846 = vmatpush1.msra.mxu0 %v819
      %847 = vmatprep.subr.mxu0 0.0
      %848 = vmatpush1.msra.mxu0 0.0
      %849 = vmatprep.subr.mxu0 0.0
      %850 = vmatpush1.msra.mxu0 0.0
      %851 = vmatprep.subr.mxu0 0.0
      %852 = vmatpush1.msra.mxu0 0.0
      %853 = vmatprep.subr.mxu0 0.0
      %854 = vmatpush1.msra.mxu0 0.0
      %855 = vmatprep.subr.mxu0 0.0
      %856 = vmatpush1.msra.mxu0 0.0
      %857 = vmatprep.subr.mxu0 0.0
      %858 = vmatpush1.msra.mxu0 0.0
      %859 = vmatprep.subr.mxu0 0.0
      %860 = vmatpush1.msra.mxu0 0.0
      %861 = vmatprep.subr.mxu0 0.0
      %862 = vmatpush1.msra.mxu0 0.0
      %863 = vmatprep.subr.mxu0 0.0
      %864 = vmatpush1.msra.mxu0 0.0
      %865 = vmatprep.subr.mxu0 0.0
      %866 = vmatpush1.msra.mxu0 0.0
      %867 = vmatprep.subr.mxu0 0.0
      %868 = vmatpush1.msra.mxu0 0.0
      %869 = vmatprep.subr.mxu0 0.0
      %870 = vmatpush1.msra.mxu0 0.0
      %871 = vmatprep.subr.mxu0 0.0
      %872 = vmatpush1.msra.mxu0 0.0
      %873 = vmatprep.subr.mxu0 0.0
      %874 = vmatpush1.msra.mxu0 0.0
      %875 = vmatprep.subr.mxu0 0.0
      %876 = vmatpush1.msra.mxu0 0.0
      %877 = vmatprep.subr.mxu0 0.0
      %878 = vmatpush1.msra.mxu0 0.0
      %879 = vmatprep.subr.mxu0 0.0
      %880 = vmatpush1.msra.mxu0 0.0
      %881 = vmatprep.subr.mxu0 0.0
      %882 = vmatpush1.msra.mxu0 0.0
      %883 = vmatprep.subr.mxu0 0.0
      %884 = vmatpush1.msra.mxu0 0.0
      %885 = vmatprep.subr.mxu0 0.0
      %886 = vmatpush1.msra.mxu0 0.0
      %887 = vmatprep.subr.mxu0 0.0
      %888 = vmatpush1.msra.mxu0 0.0
      %889 = vmatprep.subr.mxu0 0.0
      %890 = vmatpush1.msra.mxu0 0.0
      %891 = vmatprep.subr.mxu0 0.0
      %892 = vmatpush1.msra.mxu0 0.0
      %893 = vmatprep.subr.mxu0 0.0
      %894 = vmatpush1.msra.mxu0 0.0
      %895 = vmatprep.subr.mxu0 0.0
      %896 = vmatpush1.msra.mxu0 0.0
      %897 = vmatprep.subr.mxu0 0.0
      %898 = vmatpush1.msra.mxu0 0.0
      %899 = vmatprep.subr.mxu0 0.0
      %900 = vmatpush1.msra.mxu0 0.0
      %901 = vmatprep.subr.mxu0 0.0
      %902 = vmatpush1.msra.mxu0 0.0
      %903 = vmatprep.subr.mxu0 0.0
      %904 = vmatpush1.msra.mxu0 0.0
      %905 = vmatprep.subr.mxu0 0.0
      %906 = vmatpush1.msra.mxu0 0.0
      %907 = vmatprep.mubr.f32.mxu0 0.0
      %908 = vmatmul.mubr.f32.gmra.mrb[0].mxu0 %v838
      %v909 = vpop.f32.mrb[0].mxu0
      %v910 = vadd.f32 %v829, %v909
      %v911 = vpop.f32.mrb[0].mxu0
      %912 = vmatprep.mubr.f32.mxu0 0.0
      %913 = vmatmul.mubr.f32.gmra.mrb[0].mxu0 %v841
      %v914 = vpop.f32.mrb[0].mxu0
      %v915 = vadd.f32 %v834, %v914
      %v916 = vpop.f32.mrb[0].mxu0
      %917 = vdwg.mxu0
      %v918 = vmax.f32 %v910, 0.0
      %v919 = vmax.f32 %v915, 0.0
      %v920 = vld [vmem:[%s7] sm:$0xff]
      %v921 = vld [vmem:[%s7 + $0x8] sm:$0xff]
      %v922 = vld [vmem:[%s7 + $0x10] sm:$0xff]
      %v923 = vld [vmem:[%s7 + $0x18] sm:$0xff]
      %v924 = vld [vmem:[%s8] sm:$0xff]
      %v925 = vld [vmem:[%s8 + $0x8] sm:$0xff]
      %v926 = vld [vmem:[%s8 + $0x10] sm:$0xff]
      %v927 = vld [vmem:[%s8 + $0x18] sm:$0xff]
      %929 = vset.pattern.permute.xlu0 0
      %930 = vperm.xlu0 %929, %v924
      %v931 = vpop.permute.xlu0 %930
      %934 = vset.pattern.permute.xlu0 0
      %935 = vperm.xlu0 %934, %v925
      %v936 = vpop.permute.xlu0 %935
      %939 = vset.pattern.permute.xlu0 0
      %940 = vperm.xlu0 %939, %v926
      %v941 = vpop.permute.xlu0 %940
      %944 = vset.pattern.permute.xlu0 0
      %945 = vperm.xlu0 %944, %v927
      %v946 = vpop.permute.xlu0 %945
      %v949 = vsel %vm836, %v920, 0
      %v952 = vsel %vm836, %v921, 0
      %v955 = vsel %vm836, %v922, 0
      %v958 = vsel %vm836, %v923, 0
      %960 = vmatprep.subr.mxu0 0.0
      %961 = vmatpush1.msra.mxu0 %v918
      %962 = vmatprep.subr.mxu0 0.0
      %963 = vmatpush1.msra.mxu0 %v919
      %964 = vmatprep.subr.mxu0 0.0
      %965 = vmatpush1.msra.mxu0 0.0
      %966 = vmatprep.subr.mxu0 0.0
      %967 = vmatpush1.msra.mxu0 0.0
      %968 = vmatprep.subr.mxu0 0.0
      %969 = vmatpush1.msra.mxu0 0.0
      %970 = vmatprep.subr.mxu0 0.0
      %971 = vmatpush1.msra.mxu0 0.0
      %972 = vmatprep.subr.mxu0 0.0
      %973 = vmatpush1.msra.mxu0 0.0
      %974 = vmatprep.subr.mxu0 0.0
      %975 = vmatpush1.msra.mxu0 0.0
      %976 = vmatprep.subr.mxu0 0.0
      %977 = vmatpush1.msra.mxu0 0.0
      %978 = vmatprep.subr.mxu0 0.0
      %979 = vmatpush1.msra.mxu0 0.0
      %980 = vmatprep.subr.mxu0 0.0
      %981 = vmatpush1.msra.mxu0 0.0
      %982 = vmatprep.subr.mxu0 0.0
      %983 = vmatpush1.msra.mxu0 0.0
      %984 = vmatprep.subr.mxu0 0.0
      %985 = vmatpush1.msra.mxu0 0.0
      %986 = vmatprep.subr.mxu0 0.0
      %987 = vmatpush1.msra.mxu0 0.0
      %988 = vmatprep.subr.mxu0 0.0
      %989 = vmatpush1.msra.mxu0 0.0
      %990 = vmatprep.subr.mxu0 0.0
      %991 = vmatpush1.msra.mxu0 0.0
      %992 = vmatprep.subr.mxu0 0.0
      %993 = vmatpush1.msra.mxu0 0.0
      %994 = vmatprep.subr.mxu0 0.0
      %995 = vmatpush1.msra.mxu0 0.0
      %996 = vmatprep.subr.mxu0 0.0
      %997 = vmatpush1.msra.mxu0 0.0
      %998 = vmatprep.subr.mxu0 0.0
      %999 = vmatpush1.msra.mxu0 0.0
      %1000 = vmatprep.subr.mxu0 0.0
      %1001 = vmatpush1.msra.mxu0 0.0
      %1002 = vmatprep.subr.mxu0 0.0
      %1003 = vmatpush1.msra.mxu0 0.0
      %1004 = vmatprep.subr.mxu0 0.0
      %1005 = vmatpush1.msra.mxu0 0.0
      %1006 = vmatprep.subr.mxu0 0.0
      %1007 = vmatpush1.msra.mxu0 0.0
      %1008 = vmatprep.subr.mxu0 0.0
      %1009 = vmatpush1.msra.mxu0 0.0
      %1010 = vmatprep.subr.mxu0 0.0
      %1011 = vmatpush1.msra.mxu0 0.0
      %1012 = vmatprep.subr.mxu0 0.0
      %1013 = vmatpush1.msra.mxu0 0.0
      %1014 = vmatprep.subr.mxu0 0.0
      %1015 = vmatpush1.msra.mxu0 0.0
      %1016 = vmatprep.subr.mxu0 0.0
      %1017 = vmatpush1.msra.mxu0 0.0
      %1018 = vmatprep.subr.mxu0 0.0
      %1019 = vmatpush1.msra.mxu0 0.0
      %1020 = vmatprep.subr.mxu0 0.0
      %1021 = vmatpush1.msra.mxu0 0.0
      %1022 = vmatprep.subr.mxu0 0.0
      %1023 = vmatpush1.msra.mxu0 0.0
      %1024 = vmatprep.mubr.f32.mxu0 0.0
      %1025 = vmatmul.mubr.f32.gmra.mrb[0].mxu0 %v949
      %v1026 = vpop.f32.mrb[0].mxu0
      %v1027 = vadd.f32 %v931, %v1026
      %v1028 = vpop.f32.mrb[0].mxu0
      %1029 = vmatprep.mubr.f32.mxu0 0.0
      %1030 = vmatmul.mubr.f32.gmra.mrb[0].mxu0 %v952
      %v1031 = vpop.f32.mrb[0].mxu0
      %v1032 = vadd.f32 %v936, %v1031
      %v1033 = vpop.f32.mrb[0].mxu0
      %1034 = vmatprep.mubr.f32.mxu0 0.0
      %1035 = vmatmul.mubr.f32.gmra.mrb[0].mxu0 %v955
      %v1036 = vpop.f32.mrb[0].mxu0
      %v1037 = vadd.f32 %v941, %v1036
      %v1038 = vpop.f32.mrb[0].mxu0
      %1039 = vmatprep.mubr.f32.mxu0 0.0
      %1040 = vmatmul.mubr.f32.gmra.mrb[0].mxu0 %v958
      %v1041 = vpop.f32.mrb[0].mxu0
      %v1042 = vadd.f32 %v946, %v1041
      %v1043 = vpop.f32.mrb[0].mxu0
      %1044 = vdwg.mxu0
      %v1045 = vmax.f32 %v1027, 0.0
      %v1046 = vmax.f32 %v1032, 0.0
      %v1047 = vmax.f32 %v1037, 0.0
      %v1048 = vmax.f32 %v1042, 0.0
      %v1049 = vld [vmem:[%s9] sm:$0xff]
      %v1050 = vld [vmem:[%s9 + $0x8] sm:$0xff]
      %v1051 = vld [vmem:[%s10] sm:$0xff]
      %v1052 = vld [vmem:[%s10 + $0x8] sm:$0xff]
      %1054 = vset.pattern.permute.xlu0 0
      %1055 = vperm.xlu0 %1054, %v1051
      %v1056 = vpop.permute.xlu0 %1055
      %1059 = vset.pattern.permute.xlu0 0
      %1060 = vperm.xlu0 %1059, %v1052
      %v1061 = vpop.permute.xlu0 %1060
      %v1064 = vsel %vm740, %v1049, 0
      %v1067 = vsel %vm740, %v1050, 0
      %1069 = vmatprep.subr.mxu0 0.0
      %1070 = vmatpush1.msra.mxu0 %v1045
      %1071 = vmatprep.subr.mxu0 0.0
      %1072 = vmatpush1.msra.mxu0 %v1046
      %1073 = vmatprep.subr.mxu0 0.0
      %1074 = vmatpush1.msra.mxu0 %v1047
      %1075 = vmatprep.subr.mxu0 0.0
      %1076 = vmatpush1.msra.mxu0 %v1048
      %1077 = vmatprep.subr.mxu0 0.0
      %1078 = vmatpush1.msra.mxu0 0.0
      %1079 = vmatprep.subr.mxu0 0.0
      %1080 = vmatpush1.msra.mxu0 0.0
      %1081 = vmatprep.subr.mxu0 0.0
      %1082 = vmatpush1.msra.mxu0 0.0
      %1083 = vmatprep.subr.mxu0 0.0
      %1084 = vmatpush1.msra.mxu0 0.0
      %1085 = vmatprep.subr.mxu0 0.0
      %1086 = vmatpush1.msra.mxu0 0.0
      %1087 = vmatprep.subr.mxu0 0.0
      %1088 = vmatpush1.msra.mxu0 0.0
      %1089 = vmatprep.subr.mxu0 0.0
      %1090 = vmatpush1.msra.mxu0 0.0
      %1091 = vmatprep.subr.mxu0 0.0
      %1092 = vmatpush1.msra.mxu0 0.0
      %1093 = vmatprep.subr.mxu0 0.0
      %1094 = vmatpush1.msra.mxu0 0.0
      %1095 = vmatprep.subr.mxu0 0.0
      %1096 = vmatpush1.msra.mxu0 0.0
      %1097 = vmatprep.subr.mxu0 0.0
      %1098 = vmatpush1.msra.mxu0 0.0
      %1099 = vmatprep.subr.mxu0 0.0
      %1100 = vmatpush1.msra.mxu0 0.0
      %1101 = vmatprep.subr.mxu0 0.0
      %1102 = vmatpush1.msra.mxu0 0.0
      %1103 = vmatprep.subr.mxu0 0.0
      %1104 = vmatpush1.msra.mxu0 0.0
      %1105 = vmatprep.subr.mxu0 0.0
      %1106 = vmatpush1.msra.mxu0 0.0
      %1107 = vmatprep.subr.mxu0 0.0
      %1108 = vmatpush1.msra.mxu0 0.0
      %1109 = vmatprep.subr.mxu0 0.0
      %1110 = vmatpush1.msra.mxu0 0.0
      %1111 = vmatprep.subr.mxu0 0.0
      %1112 = vmatpush1.msra.mxu0 0.0
      %1113 = vmatprep.subr.mxu0 0.0
      %1114 = vmatpush1.msra.mxu0 0.0
      %1115 = vmatprep.subr.mxu0 0.0
      %1116 = vmatpush1.msra.mxu0 0.0
      %1117 = vmatprep.subr.mxu0 0.0
      %1118 = vmatpush1.msra.mxu0 0.0
      %1119 = vmatprep.subr.mxu0 0.0
      %1120 = vmatpush1.msra.mxu0 0.0
      %1121 = vmatprep.subr.mxu0 0.0
      %1122 = vmatpush1.msra.mxu0 0.0
      %1123 = vmatprep.subr.mxu0 0.0
      %1124 = vmatpush1.msra.mxu0 0.0
      %1125 = vmatprep.subr.mxu0 0.0
      %1126 = vmatpush1.msra.mxu0 0.0
      %1127 = vmatprep.subr.mxu0 0.0
      %1128 = vmatpush1.msra.mxu0 0.0
      %1129 = vmatprep.subr.mxu0 0.0
      %1130 = vmatpush1.msra.mxu0 0.0
      %1131 = vmatprep.subr.mxu0 0.0
      %1132 = vmatpush1.msra.mxu0 0.0
      %1133 = vmatprep.mubr.f32.mxu0 0.0
      %1134 = vmatmul.mubr.f32.gmra.mrb[0].mxu0 %v1064
      %v1135 = vpop.f32.mrb[0].mxu0
      %v1136 = vadd.f32 %v1056, %v1135
      %v1137 = vpop.f32.mrb[0].mxu0
      %1138 = vmatprep.mubr.f32.mxu0 0.0
      %1139 = vmatmul.mubr.f32.gmra.mrb[0].mxu0 %v1067
      %v1140 = vpop.f32.mrb[0].mxu0
      %v1141 = vadd.f32 %v1061, %v1140
      %v1142 = vpop.f32.mrb[0].mxu0
      %1143 = vdwg.mxu0
      %v1144 = vmax.f32 %v1136, 0.0
      %v1145 = vmax.f32 %v1141, 0.0
      %v1146 = vadd.f32 %v814, %v1144
      %v1147 = vadd.f32 %v819, %v1145
      %v1148 = vld [vmem:[%s11] sm:$0xff]
      %v1149 = vld [vmem:[%s11 + $0x8] sm:$0xff]
      %v1150 = vld [vmem:[%s11 + $0x10] sm:$0xff]
      %v1151 = vld [vmem:[%s11 + $0x18] sm:$0xff]
      %v1152 = vld [vmem:[%s12] sm:$0xff]
      %v1153 = vld [vmem:[%s12 + $0x8] sm:$0xff]
      %v1154 = vld [vmem:[%s12 + $0x10] sm:$0xff]
      %v1155 = vld [vmem:[%s12 + $0x18] sm:$0xff]
      %1157 = vset.pattern.permute.xlu0 0
      %1158 = vperm.xlu0 %1157, %v1152
      %v1159 = vpop.permute.xlu0 %1158
      %1162 = vset.pattern.permute.xlu0 0
      %1163 = vperm.xlu0 %1162, %v1153
      %v1164 = vpop.permute.xlu0 %1163
      %1167 = vset.pattern.permute.xlu0 0
      %1168 = vperm.xlu0 %1167, %v1154
      %v1169 = vpop.permute.xlu0 %1168
      %1172 = vset.pattern.permute.xlu0 0
      %1173 = vperm.xlu0 %1172, %v1155
      %v1174 = vpop.permute.xlu0 %1173
      %v1177 = vsel %vm836, %v1148, 0
      %v1180 = vsel %vm836, %v1149, 0
      %v1183 = vsel %vm836, %v1150, 0
      %v1186 = vsel %vm836, %v1151, 0
      %1188 = vmatprep.subr.mxu0 0.0
      %1189 = vmatpush1.msra.mxu0 %v1146
      %1190 = vmatprep.subr.mxu0 0.0
      %1191 = vmatpush1.msra.mxu0 %v1147
      %1192 = vmatprep.subr.mxu0 0.0
      %1193 = vmatpush1.msra.mxu0 0.0
      %1194 = vmatprep.subr.mxu0 0.0
      %1195 = vmatpush1.msra.mxu0 0.0
      %1196 = vmatprep.subr.mxu0 0.0
      %1197 = vmatpush1.msra.mxu0 0.0
      %1198 = vmatprep.subr.mxu0 0.0
      %1199 = vmatpush1.msra.mxu0 0.0
      %1200 = vmatprep.subr.mxu0 0.0
      %1201 = vmatpush1.msra.mxu0 0.0
      %1202 = vmatprep.subr.mxu0 0.0
      %1203 = vmatpush1.msra.mxu0 0.0
      %1204 = vmatprep.subr.mxu0 0.0
      %1205 = vmatpush1.msra.mxu0 0.0
      %1206 = vmatprep.subr.mxu0 0.0
      %1207 = vmatpush1.msra.mxu0 0.0
      %1208 = vmatprep.subr.mxu0 0.0
      %1209 = vmatpush1.msra.mxu0 0.0
      %1210 = vmatprep.subr.mxu0 0.0
      %1211 = vmatpush1.msra.mxu0 0.0
      %1212 = vmatprep.subr.mxu0 0.0
      %1213 = vmatpush1.msra.mxu0 0.0
      %1214 = vmatprep.subr.mxu0 0.0
      %1215 = vmatpush1.msra.mxu0 0.0
      %1216 = vmatprep.subr.mxu0 0.0
      %1217 = vmatpush1.msra.mxu0 0.0
      %1218 = vmatprep.subr.mxu0 0.0
      %1219 = vmatpush1.msra.mxu0 0.0
      %1220 = vmatprep.subr.mxu0 0.0
      %1221 = vmatpush1.msra.mxu0 0.0
      %1222 = vmatprep.subr.mxu0 0.0
      %1223 = vmatpush1.msra.mxu0 0.0
      %1224 = vmatprep.subr.mxu0 0.0
      %1225 = vmatpush1.msra.mxu0 0.0
      %1226 = vmatprep.subr.mxu0 0.0
      %1227 = vmatpush1.msra.mxu0 0.0
      %1228 = vmatprep.subr.mxu0 0.0
      %1229 = vmatpush1.msra.mxu0 0.0
      %1230 = vmatprep.subr.mxu0 0.0
      %1231 = vmatpush1.msra.mxu0 0.0
      %1232 = vmatprep.subr.mxu0 0.0
      %1233 = vmatpush1.msra.mxu0 0.0
      %1234 = vmatprep.subr.mxu0 0.0
      %1235 = vmatpush1.msra.mxu0 0.0
      %1236 = vmatprep.subr.mxu0 0.0
      %1237 = vmatpush1.msra.mxu0 0.0
      %1238 = vmatprep.subr.mxu0 0.0
      %1239 = vmatpush1.msra.mxu0 0.0
      %1240 = vmatprep.subr.mxu0 0.0
      %1241 = vmatpush1.msra.mxu0 0.0
      %1242 = vmatprep.subr.mxu0 0.0
      %1243 = vmatpush1.msra.mxu0 0.0
      %1244 = vmatprep.subr.mxu0 0.0
      %1245 = vmatpush1.msra.mxu0 0.0
      %1246 = vmatprep.subr.mxu0 0.0
      %1247 = vmatpush1.msra.mxu0 0.0
      %1248 = vmatprep.subr.mxu0 0.0
      %1249 = vmatpush1.msra.mxu0 0.0
      %1250 = vmatprep.subr.mxu0 0.0
      %1251 = vmatpush1.msra.mxu0 0.0
      %1252 = vmatprep.mubr.f32.mxu0 0.0
      %1253 = vmatmul.mubr.f32.gmra.mrb[0].mxu0 %v1177
      %v1254 = vpop.f32.mrb[0].mxu0
      %v1255 = vadd.f32 %v1159, %v1254
      %v1256 = vpop.f32.mrb[0].mxu0
      %1257 = vmatprep.mubr.f32.mxu0 0.0
      %1258 = vmatmul.mubr.f32.gmra.mrb[0].mxu0 %v1180
      %v1259 = vpop.f32.mrb[0].mxu0
      %v1260 = vadd.f32 %v1164, %v1259
      %v1261 = vpop.f32.mrb[0].mxu0
      %1262 = vmatprep.mubr.f32.mxu0 0.0
      %1263 = vmatmul.mubr.f32.gmra.mrb[0].mxu0 %v1183
      %v1264 = vpop.f32.mrb[0].mxu0
      %v1265 = vadd.f32 %v1169, %v1264
      %v1266 = vpop.f32.mrb[0].mxu0
      %1267 = vmatprep.mubr.f32.mxu0 0.0
      %1268 = vmatmul.mubr.f32.gmra.mrb[0].mxu0 %v1186
      %v1269 = vpop.f32.mrb[0].mxu0
      %v1270 = vadd.f32 %v1174, %v1269
      %v1271 = vpop.f32.mrb[0].mxu0
      %1272 = vdwg.mxu0
      %v1273 = vmax.f32 %v1255, 0.0
      %v1274 = vmax.f32 %v1260, 0.0
      %v1275 = vmax.f32 %v1265, 0.0
      %v1276 = vmax.f32 %v1270, 0.0
      %v1277 = vld [vmem:[%s13] sm:$0xff]
      %v1278 = vld [vmem:[%s13 + $0x8] sm:$0xff]
      %v1279 = vld [vmem:[%s13 + $0x10] sm:$0xff]
      %v1280 = vld [vmem:[%s13 + $0x18] sm:$0xff]
      %v1281 = vld [vmem:[%s14] sm:$0xff]
      %v1282 = vld [vmem:[%s14 + $0x8] sm:$0xff]
      %v1283 = vld [vmem:[%s14 + $0x10] sm:$0xff]
      %v1284 = vld [vmem:[%s14 + $0x18] sm:$0xff]
      %1286 = vset.pattern.permute.xlu0 0
      %1287 = vperm.xlu0 %1286, %v1281
      %v1288 = vpop.permute.xlu0 %1287
      %1291 = vset.pattern.permute.xlu0 0
      %1292 = vperm.xlu0 %1291, %v1282
      %v1293 = vpop.permute.xlu0 %1292
      %1296 = vset.pattern.permute.xlu0 0
      %1297 = vperm.xlu0 %1296, %v1283
      %v1298 = vpop.permute.xlu0 %1297
      %1301 = vset.pattern.permute.xlu0 0
      %1302 = vperm.xlu0 %1301, %v1284
      %v1303 = vpop.permute.xlu0 %1302
      %v1306 = vsel %vm740, %v1277, 0
      %v1309 = vsel %vm740, %v1278, 0
      %v1312 = vsel %vm740, %v1279, 0
      %v1315 = vsel %vm740, %v1280, 0
      %1317 = vmatprep.subr.mxu0 0.0
      %1318 = vmatpush1.msra.mxu0 %v1273
      %1319 = vmatprep.subr.mxu0 0.0
      %1320 = vmatpush1.msra.mxu0 %v1274
      %1321 = vmatprep.subr.mxu0 0.0
      %1322 = vmatpush1.msra.mxu0 %v1275
      %1323 = vmatprep.subr.mxu0 0.0
      %1324 = vmatpush1.msra.mxu0 %v1276
      %1325 = vmatprep.subr.mxu0 0.0
      %1326 = vmatpush1.msra.mxu0 0.0
      %1327 = vmatprep.subr.mxu0 0.0
      %1328 = vmatpush1.msra.mxu0 0.0
      %1329 = vmatprep.subr.mxu0 0.0
      %1330 = vmatpush1.msra.mxu0 0.0
      %1331 = vmatprep.subr.mxu0 0.0
      %1332 = vmatpush1.msra.mxu0 0.0
      %1333 = vmatprep.subr.mxu0 0.0
      %1334 = vmatpush1.msra.mxu0 0.0
      %1335 = vmatprep.subr.mxu0 0.0
      %1336 = vmatpush1.msra.mxu0 0.0
      %1337 = vmatprep.subr.mxu0 0.0
      %1338 = vmatpush1.msra.mxu0 0.0
      %1339 = vmatprep.subr.mxu0 0.0
      %1340 = vmatpush1.msra.mxu0 0.0
      %1341 = vmatprep.subr.mxu0 0.0
      %1342 = vmatpush1.msra.mxu0 0.0
      %1343 = vmatprep.subr.mxu0 0.0
      %1344 = vmatpush1.msra.mxu0 0.0
      %1345 = vmatprep.subr.mxu0 0.0
      %1346 = vmatpush1.msra.mxu0 0.0
      %1347 = vmatprep.subr.mxu0 0.0
      %1348 = vmatpush1.msra.mxu0 0.0
      %1349 = vmatprep.subr.mxu0 0.0
      %1350 = vmatpush1.msra.mxu0 0.0
      %1351 = vmatprep.subr.mxu0 0.0
      %1352 = vmatpush1.msra.mxu0 0.0
      %1353 = vmatprep.subr.mxu0 0.0
      %1354 = vmatpush1.msra.mxu0 0.0
      %1355 = vmatprep.subr.mxu0 0.0
      %1356 = vmatpush1.msra.mxu0 0.0
      %1357 = vmatprep.subr.mxu0 0.0
      %1358 = vmatpush1.msra.mxu0 0.0
      %1359 = vmatprep.subr.mxu0 0.0
      %1360 = vmatpush1.msra.mxu0 0.0
      %1361 = vmatprep.subr.mxu0 0.0
      %1362 = vmatpush1.msra.mxu0 0.0
      %1363 = vmatprep.subr.mxu0 0.0
      %1364 = vmatpush1.msra.mxu0 0.0
      %1365 = vmatprep.subr.mxu0 0.0
      %1366 = vmatpush1.msra.mxu0 0.0
      %1367 = vmatprep.subr.mxu0 0.0
      %1368 = vmatpush1.msra.mxu0 0.0
      %1369 = vmatprep.subr.mxu0 0.0
      %1370 = vmatpush1.msra.mxu0 0.0
      %1371 = vmatprep.subr.mxu0 0.0
      %1372 = vmatpush1.msra.mxu0 0.0
      %1373 = vmatprep.subr.mxu0 0.0
      %1374 = vmatpush1.msra.mxu0 0.0
      %1375 = vmatprep.subr.mxu0 0.0
      %1376 = vmatpush1.msra.mxu0 0.0
      %1377 = vmatprep.subr.mxu0 0.0
      %1378 = vmatpush1.msra.mxu0 0.0
      %1379 = vmatprep.subr.mxu0 0.0
      %1380 = vmatpush1.msra.mxu0 0.0
      %1381 = vmatprep.mubr.f32.mxu0 0.0
      %1382 = vmatmul.mubr.f32.gmra.mrb[0].mxu0 %v1306
      %v1383 = vpop.f32.mrb[0].mxu0
      %v1384 = vadd.f32 %v1288, %v1383
      %v1385 = vpop.f32.mrb[0].mxu0
      %1386 = vmatprep.mubr.f32.mxu0 0.0
      %1387 = vmatmul.mubr.f32.gmra.mrb[0].mxu0 %v1309
      %v1388 = vpop.f32.mrb[0].mxu0
      %v1389 = vadd.f32 %v1293, %v1388
      %v1390 = vpop.f32.mrb[0].mxu0
      %1391 = vmatprep.mubr.f32.mxu0 0.0
      %1392 = vmatmul.mubr.f32.gmra.mrb[0].mxu0 %v1312
      %v1393 = vpop.f32.mrb[0].mxu0
      %v1394 = vadd.f32 %v1298, %v1393
      %v1395 = vpop.f32.mrb[0].mxu0
      %1396 = vmatprep.mubr.f32.mxu0 0.0
      %1397 = vmatmul.mubr.f32.gmra.mrb[0].mxu0 %v1315
      %v1398 = vpop.f32.mrb[0].mxu0
      %v1399 = vadd.f32 %v1303, %v1398
      %v1400 = vpop.f32.mrb[0].mxu0
      %1401 = vdwg.mxu0
      %v1402 = vmax.f32 %v1384, 0.0
      %v1403 = vmax.f32 %v1389, 0.0
      %v1404 = vmax.f32 %v1394, 0.0
      %v1405 = vmax.f32 %v1399, 0.0
      %v1406 = vld [vmem:[%s15] sm:$0x3f]
      %v1407 = vld [vmem:[%s16] sm:$0x3f]
      %1409 = vset.pattern.permute.xlu0 0
      %1410 = vperm.xlu0 %1409, %v1407
      %v1411 = vpop.permute.xlu0 %1410
      %v1414 = vsel %vm740, %v1406, 0
      %1416 = vmatprep.subr.mxu0 0.0
      %1417 = vmatpush1.msra.mxu0 %v1402
      %1418 = vmatprep.subr.mxu0 0.0
      %1419 = vmatpush1.msra.mxu0 %v1403
      %1420 = vmatprep.subr.mxu0 0.0
      %1421 = vmatpush1.msra.mxu0 %v1404
      %1422 = vmatprep.subr.mxu0 0.0
      %1423 = vmatpush1.msra.mxu0 %v1405
      %1424 = vmatprep.subr.mxu0 0.0
      %1425 = vmatpush1.msra.mxu0 0.0
      %1426 = vmatprep.subr.mxu0 0.0
      %1427 = vmatpush1.msra.mxu0 0.0
      %1428 = vmatprep.subr.mxu0 0.0
      %1429 = vmatpush1.msra.mxu0 0.0
      %1430 = vmatprep.subr.mxu0 0.0
      %1431 = vmatpush1.msra.mxu0 0.0
      %1432 = vmatprep.subr.mxu0 0.0
      %1433 = vmatpush1.msra.mxu0 0.0
      %1434 = vmatprep.subr.mxu0 0.0
      %1435 = vmatpush1.msra.mxu0 0.0
      %1436 = vmatprep.subr.mxu0 0.0
      %1437 = vmatpush1.msra.mxu0 0.0
      %1438 = vmatprep.subr.mxu0 0.0
      %1439 = vmatpush1.msra.mxu0 0.0
      %1440 = vmatprep.subr.mxu0 0.0
      %1441 = vmatpush1.msra.mxu0 0.0
      %1442 = vmatprep.subr.mxu0 0.0
      %1443 = vmatpush1.msra.mxu0 0.0
      %1444 = vmatprep.subr.mxu0 0.0
      %1445 = vmatpush1.msra.mxu0 0.0
      %1446 = vmatprep.subr.mxu0 0.0
      %1447 = vmatpush1.msra.mxu0 0.0
      %1448 = vmatprep.subr.mxu0 0.0
      %1449 = vmatpush1.msra.mxu0 0.0
      %1450 = vmatprep.subr.mxu0 0.0
      %1451 = vmatpush1.msra.mxu0 0.0
      %1452 = vmatprep.subr.mxu0 0.0
      %1453 = vmatpush1.msra.mxu0 0.0
      %1454 = vmatprep.subr.mxu0 0.0
      %1455 = vmatpush1.msra.mxu0 0.0
      %1456 = vmatprep.subr.mxu0 0.0
      %1457 = vmatpush1.msra.mxu0 0.0
      %1458 = vmatprep.subr.mxu0 0.0
      %1459 = vmatpush1.msra.mxu0 0.0
      %1460 = vmatprep.subr.mxu0 0.0
      %1461 = vmatpush1.msra.mxu0 0.0
      %1462 = vmatprep.subr.mxu0 0.0
      %1463 = vmatpush1.msra.mxu0 0.0
      %1464 = vmatprep.subr.mxu0 0.0
      %1465 = vmatpush1.msra.mxu0 0.0
      %1466 = vmatprep.subr.mxu0 0.0
      %1467 = vmatpush1.msra.mxu0 0.0
      %1468 = vmatprep.subr.mxu0 0.0
      %1469 = vmatpush1.msra.mxu0 0.0
      %1470 = vmatprep.subr.mxu0 0.0
      %1471 = vmatpush1.msra.mxu0 0.0
      %1472 = vmatprep.subr.mxu0 0.0
      %1473 = vmatpush1.msra.mxu0 0.0
      %1474 = vmatprep.subr.mxu0 0.0
      %1475 = vmatpush1.msra.mxu0 0.0
      %1476 = vmatprep.subr.mxu0 0.0
      %1477 = vmatpush1.msra.mxu0 0.0
      %1478 = vmatprep.subr.mxu0 0.0
      %1479 = vmatpush1.msra.mxu0 0.0
      %1480 = vmatprep.mubr.f32.mxu0 0.0
      %1481 = vmatmul.mubr.f32.gmra.mrb[0].mxu0 %v1414
      %v1482 = vpop.f32.mrb[0].mxu0
      %v1483 = vadd.f32 %v1411, %v1482
      %v1484 = vpop.f32.mrb[0].mxu0
      %1485 = vdwg.mxu0
      %vm1486 = vcmask 521216
      %1487 = vst.msk [vmem:[%s594] sm:$0x3f] %vm1486, %v1483
      %p1488 = scmp.lt.s32.totalorder %s32, 1
      %s1489 = scalar_select %p1488, %s32, 1
      %p1490 = scmp.lt.s32.totalorder %s33, 0
      %s1491 = scalar_select %p1490, %s33, 0
      %s1492 = sadd.s32 %s1491, %s1489
      %s1493 = smul.addr %s1492, 8
      %s1494 = scalar_lea.vmem %s17, %s1493
      // Predicated region
      $region89: #{fwd.5} parent=87 // pred_check
        %p1495 = pneg %p429
      $region90: #{fwd.5} parent=87 // pred_check_branch
        %1497 = sbr.rel (%p1495) target = $region92
      $region91: #{fwd.5} parent=87 // pred_region
        _
      $region92: #{fwd.5} parent=87 // pred_fallthru
        _
    $region88: #{fwd.5} parent=5 // pred_fallthru
      _
    %p1498 = scmp.le.s32.totalorder 2, %s23
    // Predicated region
    $region93: #{fwd.5} parent=5 // pred_check
      %p1499 = pneg %p1498
    $region94: #{fwd.5} parent=5 // pred_check_branch
      %1501 = sbr.rel (%p1499) target = $region96
    $region95: #{fwd.5} parent=5 // pred_region
      %s1502 = ssub.s32 %s23, 2
      // Predicated region
      $region97: #{fwd.5} parent=95 // pred_check
        %p1503 = pneg %p435
      $region98: #{fwd.5} parent=95 // pred_check_branch
        %1505 = sbr.rel (%p1503) target = $region100
      $region99: #{fwd.5} parent=95 // pred_region
        %p1506 = scmp.lt.s32.totalorder %s34, 1
        %s1507 = scalar_select %p1506, %s34, 1
        %p1508 = scmp.lt.s32.totalorder %s35, 0
        %s1509 = scalar_select %p1508, %s35, 0
        %s1510 = sadd.s32 %s1509, %s1507
        %s1511 = smul.addr %s1510, 8
        %s1512 = scalar_lea.vmem %s17, %s1511
      $region100: #{fwd.5} parent=95 // pred_fallthru
        _
    $region96: #{fwd.5} parent=5 // pred_fallthru
      _
  $region6: #{fwd.5} parent=0 // loop_footer
    %s27 = sadd.s32 1, %s23
  $region7: #{fwd.5} parent=0 // loop_footer_branch
    %22 = sbr.rel target = $region3
  $region8: #{fwd.5} parent=0 // loop_exit
    _

// kernel: fwd.3
$region0: #{fwd.3}
  #allocation0 [shape = 'u32[]', space=smem, size = 0x4, offset = 0x4, fixed_abs, tag = 'smem constant byte address 0x4 - core index']
  #allocation1 [shape = 'u32[144,128]{1,0:T(1,128)}', space=vmem, size = 0x12000, scoped, tag = 'internal scratch']
  %s0 = inlined_call_operand.vmem [shape: f32[2,64,6], index: 0, kind: input, shape index: {}]
  %s1 = inlined_call_operand.vmem [shape: f32[6,16], index: 1, kind: input, shape index: {}]
  %s2 = inlined_call_operand.vmem [shape: f32[1,16], index: 2, kind: input, shape index: {}]
  %s3 = inlined_call_operand.vmem [shape: f32[16,32], index: 3, kind: input, shape index: {}]
  %s4 = inlined_call_operand.vmem [shape: f32[1,32], index: 4, kind: input, shape index: {}]
  %s5 = inlined_call_operand.vmem [shape: f32[32,64], index: 5, kind: input, shape index: {}]
  %s6 = inlined_call_operand.vmem [shape: f32[32,64], index: 6, kind: input, shape index: {}]
  %s7 = inlined_call_operand.vmem [shape: f32[1,64], index: 7, kind: input, shape index: {}]
  %s8 = inlined_call_operand.vmem [shape: f32[64,32], index: 8, kind: input, shape index: {}]
  %s9 = inlined_call_operand.vmem [shape: f32[1,32], index: 9, kind: input, shape index: {}]
  %s10 = inlined_call_operand.vmem [shape: f32[2,1,32], index: 10, kind: output, shape index: {}]
  %s11 = sld [smem:[#allocation0]]
  $region73: #{fwd.3} parent=0
    _
  %s13 = ssub.s32 1, %s11
  %s14 = scalar_select 0, %s13, %s11
  loop: start=0, step=1, limit=4
  $region2: #{fwd.3} parent=0 // loop_pre_header
    _
  $region3: #{fwd.3} parent=0 // loop_header
    %s16 = sphi 0, %s20
    %p17 = scmp.ge.s32.totalorder %s16, 4
    %s26 = sphi 0, %s28
    %s29 = sphi 0, %s26
    %s30 = sphi 0, %s29
    %s46 = sphi 0, %s30
    %s50 = sphi 0, %s50
    %s52 = sphi 0, %s50
    %s53 = sphi 0, %s52
    %s67 = sphi 0, %s53
    %s71 = sphi 0, %s71
    %s73 = sphi 0, %s71
    %s74 = sphi 0, %s73
    %s88 = sphi 0, %s74
    %s92 = sphi 0, %s92
    %s94 = sphi 0, %s92
    %s95 = sphi 0, %s94
    %s109 = sphi 0, %s95
    %s113 = sphi 0, %s113
    %s115 = sphi 0, %s113
    %s116 = sphi 0, %s115
    %s130 = sphi 0, %s116
    %s134 = sphi 0, %s134
    %s136 = sphi 0, %s134
    %s137 = sphi 0, %s136
    %s151 = sphi 0, %s137
    %s155 = sphi 0, %s155
    %s157 = sphi 0, %s155
    %s158 = sphi 0, %s157
    %s172 = sphi 0, %s158
    %s176 = sphi 0, %s176
    %s178 = sphi 0, %s176
    %s179 = sphi 0, %s178
    %s193 = sphi 0, %s179
    %s197 = sphi 0, %s197
    %s199 = sphi 0, %s197
    %s200 = sphi 0, %s199
    %s214 = sphi 0, %s200
    %s218 = sphi 0, %s218
    %s220 = sphi 0, %s218
    %s221 = sphi 0, %s220
    %s235 = sphi 0, %s221
    %s241 = sphi 0, %s243
    %s244 = sphi 0, %s241
    %s245 = sphi 0, %s244
    %s261 = sphi 0, %s245
  $region4: #{fwd.3} parent=0 // loop_header_branch
    %19 = sbr.rel (%p17) target = $region8
  $region5: #{fwd.3} parent=0 // loop_body
    %s21 = ssub.s32 %s16, 1
    %s22 = ssub.s32 %s16, 2
    %s23 = sadd.s32 %s16, 1
    %s24 = ssub.s32 %s16, %s23
    %p25 = scmp.eq.s32.totalorder %s24, 0
    %s27 = sadd.s32 %s26, 1
    %s28 = scalar_select %p25, %s26, %s27
    %p31 = pneg %p25
    %p32 = scmp.eq.s32.totalorder %s16, 1
    %p33 = por %p31, %p32
    %p34 = scmp.ne.s32.totalorder %s26, %s29
    %p35 = scmp.eq.s32.totalorder %s16, 0
    %p36 = por %p34, %p35
    %p37 = scmp.ne.s32.totalorder %s26, %s29
    %p38 = scmp.eq.s32.totalorder %s21, 1
    %p39 = por %p37, %p38
    %p40 = scmp.ne.s32.totalorder %s29, %s30
    %p41 = scmp.eq.s32.totalorder %s21, 0
    %p42 = por %p40, %p41
    %p43 = scmp.ne.s32.totalorder %s29, %s30
    %p44 = scmp.eq.s32.totalorder %s22, 1
    %p45 = por %p43, %p44
    %p47 = scmp.ne.s32.totalorder %s30, %s46
    %p48 = scmp.eq.s32.totalorder %s22, 0
    %p49 = por %p47, %p48
    %s51 = sadd.s32 %s50, 1
    %p54 = scmp.eq.s32.totalorder %s16, 1
    %p55 = scmp.ne.s32.totalorder %s50, %s52
    %p56 = scmp.eq.s32.totalorder %s16, 0
    %p57 = por %p55, %p56
    %p58 = scmp.ne.s32.totalorder %s50, %s52
    %p59 = scmp.eq.s32.totalorder %s21, 1
    %p60 = por %p58, %p59
    %p61 = scmp.ne.s32.totalorder %s52, %s53
    %p62 = scmp.eq.s32.totalorder %s21, 0
    %p63 = por %p61, %p62
    %p64 = scmp.ne.s32.totalorder %s52, %s53
    %p65 = scmp.eq.s32.totalorder %s22, 1
    %p66 = por %p64, %p65
    %p68 = scmp.ne.s32.totalorder %s53, %s67
    %p69 = scmp.eq.s32.totalorder %s22, 0
    %p70 = por %p68, %p69
    %s72 = sadd.s32 %s71, 1
    %p75 = scmp.eq.s32.totalorder %s16, 1
    %p76 = scmp.ne.s32.totalorder %s71, %s73
    %p77 = scmp.eq.s32.totalorder %s16, 0
    %p78 = por %p76, %p77
    %p79 = scmp.ne.s32.totalorder %s71, %s73
    %p80 = scmp.eq.s32.totalorder %s21, 1
    %p81 = por %p79, %p80
    %p82 = scmp.ne.s32.totalorder %s73, %s74
    %p83 = scmp.eq.s32.totalorder %s21, 0
    %p84 = por %p82, %p83
    %p85 = scmp.ne.s32.totalorder %s73, %s74
    %p86 = scmp.eq.s32.totalorder %s22, 1
    %p87 = por %p85, %p86
    %p89 = scmp.ne.s32.totalorder %s74, %s88
    %p90 = scmp.eq.s32.totalorder %s22, 0
    %p91 = por %p89, %p90
    %s93 = sadd.s32 %s92, 1
    %p96 = scmp.eq.s32.totalorder %s16, 1
    %p97 = scmp.ne.s32.totalorder %s92, %s94
    %p98 = scmp.eq.s32.totalorder %s16, 0
    %p99 = por %p97, %p98
    %p100 = scmp.ne.s32.totalorder %s92, %s94
    %p101 = scmp.eq.s32.totalorder %s21, 1
    %p102 = por %p100, %p101
    %p103 = scmp.ne.s32.totalorder %s94, %s95
    %p104 = scmp.eq.s32.totalorder %s21, 0
    %p105 = por %p103, %p104
    %p106 = scmp.ne.s32.totalorder %s94, %s95
    %p107 = scmp.eq.s32.totalorder %s22, 1
    %p108 = por %p106, %p107
    %p110 = scmp.ne.s32.totalorder %s95, %s109
    %p111 = scmp.eq.s32.totalorder %s22, 0
    %p112 = por %p110, %p111
    %s114 = sadd.s32 %s113, 1
    %p117 = scmp.eq.s32.totalorder %s16, 1
    %p118 = scmp.ne.s32.totalorder %s113, %s115
    %p119 = scmp.eq.s32.totalorder %s16, 0
    %p120 = por %p118, %p119
    %p121 = scmp.ne.s32.totalorder %s113, %s115
    %p122 = scmp.eq.s32.totalorder %s21, 1
    %p123 = por %p121, %p122
    %p124 = scmp.ne.s32.totalorder %s115, %s116
    %p125 = scmp.eq.s32.totalorder %s21, 0
    %p126 = por %p124, %p125
    %p127 = scmp.ne.s32.totalorder %s115, %s116
    %p128 = scmp.eq.s32.totalorder %s22, 1
    %p129 = por %p127, %p128
    %p131 = scmp.ne.s32.totalorder %s116, %s130
    %p132 = scmp.eq.s32.totalorder %s22, 0
    %p133 = por %p131, %p132
    %s135 = sadd.s32 %s134, 1
    %p138 = scmp.eq.s32.totalorder %s16, 1
    %p139 = scmp.ne.s32.totalorder %s134, %s136
    %p140 = scmp.eq.s32.totalorder %s16, 0
    %p141 = por %p139, %p140
    %p142 = scmp.ne.s32.totalorder %s134, %s136
    %p143 = scmp.eq.s32.totalorder %s21, 1
    %p144 = por %p142, %p143
    %p145 = scmp.ne.s32.totalorder %s136, %s137
    %p146 = scmp.eq.s32.totalorder %s21, 0
    %p147 = por %p145, %p146
    %p148 = scmp.ne.s32.totalorder %s136, %s137
    %p149 = scmp.eq.s32.totalorder %s22, 1
    %p150 = por %p148, %p149
    %p152 = scmp.ne.s32.totalorder %s137, %s151
    %p153 = scmp.eq.s32.totalorder %s22, 0
    %p154 = por %p152, %p153
    %s156 = sadd.s32 %s155, 1
    %p159 = scmp.eq.s32.totalorder %s16, 1
    %p160 = scmp.ne.s32.totalorder %s155, %s157
    %p161 = scmp.eq.s32.totalorder %s16, 0
    %p162 = por %p160, %p161
    %p163 = scmp.ne.s32.totalorder %s155, %s157
    %p164 = scmp.eq.s32.totalorder %s21, 1
    %p165 = por %p163, %p164
    %p166 = scmp.ne.s32.totalorder %s157, %s158
    %p167 = scmp.eq.s32.totalorder %s21, 0
    %p168 = por %p166, %p167
    %p169 = scmp.ne.s32.totalorder %s157, %s158
    %p170 = scmp.eq.s32.totalorder %s22, 1
    %p171 = por %p169, %p170
    %p173 = scmp.ne.s32.totalorder %s158, %s172
    %p174 = scmp.eq.s32.totalorder %s22, 0
    %p175 = por %p173, %p174
    %s177 = sadd.s32 %s176, 1
    %p180 = scmp.eq.s32.totalorder %s16, 1
    %p181 = scmp.ne.s32.totalorder %s176, %s178
    %p182 = scmp.eq.s32.totalorder %s16, 0
    %p183 = por %p181, %p182
    %p184 = scmp.ne.s32.totalorder %s176, %s178
    %p185 = scmp.eq.s32.totalorder %s21, 1
    %p186 = por %p184, %p185
    %p187 = scmp.ne.s32.totalorder %s178, %s179
    %p188 = scmp.eq.s32.totalorder %s21, 0
    %p189 = por %p187, %p188
    %p190 = scmp.ne.s32.totalorder %s178, %s179
    %p191 = scmp.eq.s32.totalorder %s22, 1
    %p192 = por %p190, %p191
    %p194 = scmp.ne.s32.totalorder %s179, %s193
    %p195 = scmp.eq.s32.totalorder %s22, 0
    %p196 = por %p194, %p195
    %s198 = sadd.s32 %s197, 1
    %p201 = scmp.eq.s32.totalorder %s16, 1
    %p202 = scmp.ne.s32.totalorder %s197, %s199
    %p203 = scmp.eq.s32.totalorder %s16, 0
    %p204 = por %p202, %p203
    %p205 = scmp.ne.s32.totalorder %s197, %s199
    %p206 = scmp.eq.s32.totalorder %s21, 1
    %p207 = por %p205, %p206
    %p208 = scmp.ne.s32.totalorder %s199, %s200
    %p209 = scmp.eq.s32.totalorder %s21, 0
    %p210 = por %p208, %p209
    %p211 = scmp.ne.s32.totalorder %s199, %s200
    %p212 = scmp.eq.s32.totalorder %s22, 1
    %p213 = por %p211, %p212
    %p215 = scmp.ne.s32.totalorder %s200, %s214
    %p216 = scmp.eq.s32.totalorder %s22, 0
    %p217 = por %p215, %p216
    %s219 = sadd.s32 %s218, 1
    %p222 = scmp.eq.s32.totalorder %s16, 1
    %p223 = scmp.ne.s32.totalorder %s218, %s220
    %p224 = scmp.eq.s32.totalorder %s16, 0
    %p225 = por %p223, %p224
    %p226 = scmp.ne.s32.totalorder %s218, %s220
    %p227 = scmp.eq.s32.totalorder %s21, 1
    %p228 = por %p226, %p227
    %p229 = scmp.ne.s32.totalorder %s220, %s221
    %p230 = scmp.eq.s32.totalorder %s21, 0
    %p231 = por %p229, %p230
    %p232 = scmp.ne.s32.totalorder %s220, %s221
    %p233 = scmp.eq.s32.totalorder %s22, 1
    %p234 = por %p232, %p233
    %p236 = scmp.ne.s32.totalorder %s221, %s235
    %p237 = scmp.eq.s32.totalorder %s22, 0
    %p238 = por %p236, %p237
    %s239 = ssub.s32 %s16, %s23
    %p240 = scmp.eq.s32.totalorder %s239, 0
    %s242 = sadd.s32 %s241, 1
    %s243 = scalar_select %p240, %s241, %s242
    %p246 = pneg %p240
    %p247 = scmp.eq.s32.totalorder %s16, 1
    %p248 = por %p246, %p247
    %p249 = scmp.ne.s32.totalorder %s241, %s244
    %p250 = scmp.eq.s32.totalorder %s16, 0
    %p251 = por %p249, %p250
    %p252 = scmp.ne.s32.totalorder %s241, %s244
    %p253 = scmp.eq.s32.totalorder %s21, 1
    %p254 = por %p252, %p253
    %p255 = scmp.ne.s32.totalorder %s244, %s245
    %p256 = scmp.eq.s32.totalorder %s21, 0
    %p257 = por %p255, %p256
    %p258 = scmp.ne.s32.totalorder %s244, %s245
    %p259 = scmp.eq.s32.totalorder %s22, 1
    %p260 = por %p258, %p259
    %p262 = scmp.ne.s32.totalorder %s245, %s261
    %p263 = scmp.eq.s32.totalorder %s22, 0
    %p264 = por %p262, %p263
    %p265 = scmp.le.s32.totalorder 1, %s16
    %p266 = scmp.lt.s32.totalorder %s16, 3
    %p267 = pnand %p265, %p266
    %p268 = pneg %p267
    // Predicated region
    $region9: #{fwd.3} parent=5 // pred_check
      _
    $region10: #{fwd.3} parent=5 // pred_check_branch
      %270 = sbr.rel (%p267) target = $region12
    $region11: #{fwd.3} parent=5 // pred_region
      %s271 = ssub.s32 %s16, 1
      // Predicated region
      $region13: #{fwd.3} parent=11 // pred_check
        %p272 = pneg %p63
      $region14: #{fwd.3} parent=11 // pred_check_branch
        %274 = sbr.rel (%p272) target = $region16
      $region15: #{fwd.3} parent=11 // pred_region
        _
      $region16: #{fwd.3} parent=11 // pred_fallthru
        _
      // Predicated region
      $region17: #{fwd.3} parent=11 // pred_check
        %p275 = pneg %p84
      $region18: #{fwd.3} parent=11 // pred_check_branch
        %277 = sbr.rel (%p275) target = $region20
      $region19: #{fwd.3} parent=11 // pred_region
        _
      $region20: #{fwd.3} parent=11 // pred_fallthru
        _
      // Predicated region
      $region21: #{fwd.3} parent=11 // pred_check
        %p278 = pneg %p105
      $region22: #{fwd.3} parent=11 // pred_check_branch
        %280 = sbr.rel (%p278) target = $region24
      $region23: #{fwd.3} parent=11 // pred_region
        _
      $region24: #{fwd.3} parent=11 // pred_fallthru
        _
      // Predicated region
      $region25: #{fwd.3} parent=11 // pred_check
        %p281 = pneg %p126
      $region26: #{fwd.3} parent=11 // pred_check_branch
        %283 = sbr.rel (%p281) target = $region28
      $region27: #{fwd.3} parent=11 // pred_region
        _
      $region28: #{fwd.3} parent=11 // pred_fallthru
        _
      // Predicated region
      $region29: #{fwd.3} parent=11 // pred_check
        %p284 = pneg %p147
      $region30: #{fwd.3} parent=11 // pred_check_branch
        %286 = sbr.rel (%p284) target = $region32
      $region31: #{fwd.3} parent=11 // pred_region
        _
      $region32: #{fwd.3} parent=11 // pred_fallthru
        _
      // Predicated region
      $region33: #{fwd.3} parent=11 // pred_check
        %p287 = pneg %p168
      $region34: #{fwd.3} parent=11 // pred_check_branch
        %289 = sbr.rel (%p287) target = $region36
      $region35: #{fwd.3} parent=11 // pred_region
        _
      $region36: #{fwd.3} parent=11 // pred_fallthru
        _
      // Predicated region
      $region37: #{fwd.3} parent=11 // pred_check
        %p290 = pneg %p189
      $region38: #{fwd.3} parent=11 // pred_check_branch
        %292 = sbr.rel (%p290) target = $region40
      $region39: #{fwd.3} parent=11 // pred_region
        _
      $region40: #{fwd.3} parent=11 // pred_fallthru
        _
      // Predicated region
      $region41: #{fwd.3} parent=11 // pred_check
        %p293 = pneg %p210
      $region42: #{fwd.3} parent=11 // pred_check_branch
        %295 = sbr.rel (%p293) target = $region44
      $region43: #{fwd.3} parent=11 // pred_region
        _
      $region44: #{fwd.3} parent=11 // pred_fallthru
        _
      // Predicated region
      $region45: #{fwd.3} parent=11 // pred_check
        %p296 = pneg %p231
      $region46: #{fwd.3} parent=11 // pred_check_branch
        %298 = sbr.rel (%p296) target = $region48
      $region47: #{fwd.3} parent=11 // pred_region
        _
      $region48: #{fwd.3} parent=11 // pred_fallthru
        _
    $region12: #{fwd.3} parent=5 // pred_fallthru
      _
    %p299 = scmp.lt.s32.totalorder %s16, 2
    // Predicated region
    $region49: #{fwd.3} parent=5 // pred_check
      %p300 = pneg %p299
    $region50: #{fwd.3} parent=5 // pred_check_branch
      %302 = sbr.rel (%p300) target = $region52
    $region51: #{fwd.3} parent=5 // pred_region
      // Predicated region
      $region53: #{fwd.3} parent=51 // pred_check
        %p303 = pneg %p36
      $region54: #{fwd.3} parent=51 // pred_check_branch
        %305 = sbr.rel (%p303) target = $region56
      $region55: #{fwd.3} parent=51 // pred_region
        %p306 = scmp.lt.s32.totalorder %s16, 1
        %s307 = scalar_select %p306, %s16, 1
        %s308 = smul.addr %s307, 8
        %s309 = smul.addr %s308, 8
        %s310 = scalar_lea.vmem %s0, %s309
      $region56: #{fwd.3} parent=51 // pred_fallthru
        _
    $region52: #{fwd.3} parent=5 // pred_fallthru
      _
    %p311 = scmp.le.s32.totalorder 1, %s16
    %p312 = scmp.lt.s32.totalorder %s16, 3
    %p313 = pnand %p311, %p312
    %p314 = pneg %p313
    // Predicated region
    $region57: #{fwd.3} parent=5 // pred_check
      _
    $region58: #{fwd.3} parent=5 // pred_check_branch
      %316 = sbr.rel (%p313) target = $region60
    $region59: #{fwd.3} parent=5 // pred_region
      %s317 = ssub.s32 %s16, 1
      %p318 = scmp.lt.s32.totalorder %s21, 1
      %s319 = scalar_select %p318, %s21, 1
      %s320 = smul.addr %s319, 8
      %s321 = smul.addr %s320, 8
      %s322 = scalar_lea.vmem %s0, %s321
      %p323 = pneg %p42
      %p324 = pneg %p39
      %p325 = pneg %p63
      %p326 = pneg %p60
      %p327 = pneg %p84
      %p328 = pneg %p81
      %p329 = pneg %p105
      %p330 = pneg %p102
      %p331 = pneg %p126
      %p332 = pneg %p123
      %p333 = pneg %p147
      %p334 = pneg %p144
      %p335 = pneg %p168
      %p336 = pneg %p165
      %p337 = pneg %p189
      %p338 = pneg %p186
      %p339 = pneg %p210
      %p340 = pneg %p207
      %p341 = pneg %p231
      %p342 = pneg %p228
      %p343 = pneg %p257
      %p344 = pneg %p254
      %p345 = scmp.lt.s32.totalorder %s21, 1
      %s346 = scalar_select %p345, %s21, 1
      %s347 = scalar_lea.vmem %s10, %s346
      %p348 = scmp.lt.s32.totalorder %s21, 1
      %s349 = scalar_select %p348, %s21, 1
      %s350 = smul.addr %s349, 8
      %s351 = smul.addr %s350, 8
      %s352 = scalar_lea.vmem %s0, %s351
      %p353 = scmp.lt.s32.totalorder %s21, 1
      %s354 = scalar_select %p353, %s21, 1
      %s355 = scalar_lea.vmem %s10, %s354
      %v356 = vld [vmem:[%s352] sm:$0xff]
      %v357 = vld [vmem:[%s352 + $0x8] sm:$0xff]
      %v358 = vld [vmem:[%s352 + $0x10] sm:$0xff]
      %v359 = vld [vmem:[%s352 + $0x18] sm:$0xff]
      %v360 = vld [vmem:[%s352 + $0x20] sm:$0xff]
      %v361 = vld [vmem:[%s352 + $0x28] sm:$0xff]
      %v362 = vld [vmem:[%s352 + $0x30] sm:$0xff]
      %v363 = vld [vmem:[%s352 + $0x38] sm:$0xff]
      %v364 = vld [vmem:[%s1] sm:$0x3f]
      %v365 = vld [vmem:[%s2] sm:$0x1]
      %v367 = vlaneseq
      %v368 = vshrl.u32 %v367, 7
      %v369 = vsub.s32 0, %v368
      %v370 = vrot.slane %v365, %v369
      %vm372 = vcmask 48128
      %v374 = vsel %vm372, %v356, 0
      %v377 = vsel %vm372, %v357, 0
      %v380 = vsel %vm372, %v358, 0
      %v383 = vsel %vm372, %v359, 0
      %v386 = vsel %vm372, %v360, 0
      %v389 = vsel %vm372, %v361, 0
      %v392 = vsel %vm372, %v362, 0
      %v395 = vsel %vm372, %v363, 0
      %vm397 = vcmask 1045504
      %v399 = vsel %vm397, %v364, 0
      %401 = vmatprep.subr.mxu0 0.0
      %402 = vmatpush1.msra.mxu0 %v399
      %403 = vmatprep.subr.mxu0 0.0
      %404 = vmatpush1.msra.mxu0 0.0
      %405 = vmatprep.subr.mxu0 0.0
      %406 = vmatpush1.msra.mxu0 0.0
      %407 = vmatprep.subr.mxu0 0.0
      %408 = vmatpush1.msra.mxu0 0.0
      %409 = vmatprep.subr.mxu0 0.0
      %410 = vmatpush1.msra.mxu0 0.0
      %411 = vmatprep.subr.mxu0 0.0
      %412 = vmatpush1.msra.mxu0 0.0
      %413 = vmatprep.subr.mxu0 0.0
      %414 = vmatpush1.msra.mxu0 0.0
      %415 = vmatprep.subr.mxu0 0.0
      %416 = vmatpush1.msra.mxu0 0.0
      %417 = vmatprep.subr.mxu0 0.0
      %418 = vmatpush1.msra.mxu0 0.0
      %419 = vmatprep.subr.mxu0 0.0
      %420 = vmatpush1.msra.mxu0 0.0
      %421 = vmatprep.subr.mxu0 0.0
      %422 = vmatpush1.msra.mxu0 0.0
      %423 = vmatprep.subr.mxu0 0.0
      %424 = vmatpush1.msra.mxu0 0.0
      %425 = vmatprep.subr.mxu0 0.0
      %426 = vmatpush1.msra.mxu0 0.0
      %427 = vmatprep.subr.mxu0 0.0
      %428 = vmatpush1.msra.mxu0 0.0
      %429 = vmatprep.subr.mxu0 0.0
      %430 = vmatpush1.msra.mxu0 0.0
      %431 = vmatprep.subr.mxu0 0.0
      %432 = vmatpush1.msra.mxu0 0.0
      %433 = vmatprep.subr.mxu0 0.0
      %434 = vmatpush1.msra.mxu0 0.0
      %435 = vmatprep.subr.mxu0 0.0
      %436 = vmatpush1.msra.mxu0 0.0
      %437 = vmatprep.subr.mxu0 0.0
      %438 = vmatpush1.msra.mxu0 0.0
      %439 = vmatprep.subr.mxu0 0.0
      %440 = vmatpush1.msra.mxu0 0.0
      %441 = vmatprep.subr.mxu0 0.0
      %442 = vmatpush1.msra.mxu0 0.0
      %443 = vmatprep.subr.mxu0 0.0
      %444 = vmatpush1.msra.mxu0 0.0
      %445 = vmatprep.subr.mxu0 0.0
      %446 = vmatpush1.msra.mxu0 0.0
      %447 = vmatprep.subr.mxu0 0.0
      %448 = vmatpush1.msra.mxu0 0.0
      %449 = vmatprep.subr.mxu0 0.0
      %450 = vmatpush1.msra.mxu0 0.0
      %451 = vmatprep.subr.mxu0 0.0
      %452 = vmatpush1.msra.mxu0 0.0
      %453 = vmatprep.subr.mxu0 0.0
      %454 = vmatpush1.msra.mxu0 0.0
      %455 = vmatprep.subr.mxu0 0.0
      %456 = vmatpush1.msra.mxu0 0.0
      %457 = vmatprep.subr.mxu0 0.0
      %458 = vmatpush1.msra.mxu0 0.0
      %459 = vmatprep.subr.mxu0 0.0
      %460 = vmatpush1.msra.mxu0 0.0
      %461 = vmatprep.subr.mxu0 0.0
      %462 = vmatpush1.msra.mxu0 0.0
      %463 = vmatprep.subr.mxu0 0.0
      %464 = vmatpush1.msra.mxu0 0.0
      %465 = vmatprep.mubr.f32.mxu0 0.0
      %466 = vmatmul.mubr.f32.gmra.mrb[0].mxu0 %v374
      %v467 = vpop.f32.mrb[0].mxu0
      %v468 = vadd.f32 %v370, %v467
      %v469 = vpop.f32.mrb[0].mxu0
      %470 = vmatprep.mubr.f32.mxu0 0.0
      %471 = vmatmul.mubr.f32.gmra.mrb[0].mxu0 %v377
      %v472 = vpop.f32.mrb[0].mxu0
      %v473 = vadd.f32 %v370, %v472
      %v474 = vpop.f32.mrb[0].mxu0
      %475 = vmatprep.mubr.f32.mxu0 0.0
      %476 = vmatmul.mubr.f32.gmra.mrb[0].mxu0 %v380
      %v477 = vpop.f32.mrb[0].mxu0
      %v478 = vadd.f32 %v370, %v477
      %v479 = vpop.f32.mrb[0].mxu0
      %480 = vmatprep.mubr.f32.mxu0 0.0
      %481 = vmatmul.mubr.f32.gmra.mrb[0].mxu0 %v383
      %v482 = vpop.f32.mrb[0].mxu0
      %v483 = vadd.f32 %v370, %v482
      %v484 = vpop.f32.mrb[0].mxu0
      %485 = vmatprep.mubr.f32.mxu0 0.0
      %486 = vmatmul.mubr.f32.gmra.mrb[0].mxu0 %v386
      %v487 = vpop.f32.mrb[0].mxu0
      %v488 = vadd.f32 %v370, %v487
      %v489 = vpop.f32.mrb[0].mxu0
      %490 = vmatprep.mubr.f32.mxu0 0.0
      %491 = vmatmul.mubr.f32.gmra.mrb[0].mxu0 %v389
      %v492 = vpop.f32.mrb[0].mxu0
      %v493 = vadd.f32 %v370, %v492
      %v494 = vpop.f32.mrb[0].mxu0
      %495 = vmatprep.mubr.f32.mxu0 0.0
      %496 = vmatmul.mubr.f32.gmra.mrb[0].mxu0 %v392
      %v497 = vpop.f32.mrb[0].mxu0
      %v498 = vadd.f32 %v370, %v497
      %v499 = vpop.f32.mrb[0].mxu0
      %500 = vmatprep.mubr.f32.mxu0 0.0
      %501 = vmatmul.mubr.f32.gmra.mrb[0].mxu0 %v395
      %v502 = vpop.f32.mrb[0].mxu0
      %v503 = vadd.f32 %v370, %v502
      %v504 = vpop.f32.mrb[0].mxu0
      %505 = vdwg.mxu0
      %v506 = vmax.f32 %v468, 0.0
      %v507 = vmax.f32 %v473, 0.0
      %v508 = vmax.f32 %v478, 0.0
      %v509 = vmax.f32 %v483, 0.0
      %v510 = vmax.f32 %v488, 0.0
      %v511 = vmax.f32 %v493, 0.0
      %v512 = vmax.f32 %v498, 0.0
      %v513 = vmax.f32 %v503, 0.0
      %v514 = vld [vmem:[%s3] sm:$0xff]
      %v515 = vld [vmem:[%s3 + $0x8] sm:$0xff]
      %v516 = vld [vmem:[%s4] sm:$0x1]
      %v518 = vlaneseq
      %v519 = vshrl.u32 %v518, 7
      %v520 = vsub.s32 0, %v519
      %v521 = vrot.slane %v516, %v520
      %vm523 = vcmask 130048
      %v525 = vsel %vm523, %v506, 0
      %v528 = vsel %vm523, %v507, 0
      %v531 = vsel %vm523, %v508, 0
      %v534 = vsel %vm523, %v509, 0
      %v537 = vsel %vm523, %v510, 0
      %v540 = vsel %vm523, %v511, 0
      %v543 = vsel %vm523, %v512, 0
      %v546 = vsel %vm523, %v513, 0
      %548 = vmatprep.subr.mxu0 0.0
      %549 = vmatpush1.msra.mxu0 %v514
      %550 = vmatprep.subr.mxu0 0.0
      %551 = vmatpush1.msra.mxu0 %v515
      %552 = vmatprep.subr.mxu0 0.0
      %553 = vmatpush1.msra.mxu0 0.0
      %554 = vmatprep.subr.mxu0 0.0
      %555 = vmatpush1.msra.mxu0 0.0
      %556 = vmatprep.subr.mxu0 0.0
      %557 = vmatpush1.msra.mxu0 0.0
      %558 = vmatprep.subr.mxu0 0.0
      %559 = vmatpush1.msra.mxu0 0.0
      %560 = vmatprep.subr.mxu0 0.0
      %561 = vmatpush1.msra.mxu0 0.0
      %562 = vmatprep.subr.mxu0 0.0
      %563 = vmatpush1.msra.mxu0 0.0
      %564 = vmatprep.subr.mxu0 0.0
      %565 = vmatpush1.msra.mxu0 0.0
      %566 = vmatprep.subr.mxu0 0.0
      %567 = vmatpush1.msra.mxu0 0.0
      %568 = vmatprep.subr.mxu0 0.0
      %569 = vmatpush1.msra.mxu0 0.0
      %570 = vmatprep.subr.mxu0 0.0
      %571 = vmatpush1.msra.mxu0 0.0
      %572 = vmatprep.subr.mxu0 0.0
      %573 = vmatpush1.msra.mxu0 0.0
      %574 = vmatprep.subr.mxu0 0.0
      %575 = vmatpush1.msra.mxu0 0.0
      %576 = vmatprep.subr.mxu0 0.0
      %577 = vmatpush1.msra.mxu0 0.0
      %578 = vmatprep.subr.mxu0 0.0
      %579 = vmatpush1.msra.mxu0 0.0
      %580 = vmatprep.subr.mxu0 0.0
      %581 = vmatpush1.msra.mxu0 0.0
      %582 = vmatprep.subr.mxu0 0.0
      %583 = vmatpush1.msra.mxu0 0.0
      %584 = vmatprep.subr.mxu0 0.0
      %585 = vmatpush1.msra.mxu0 0.0
      %586 = vmatprep.subr.mxu0 0.0
      %587 = vmatpush1.msra.mxu0 0.0
      %588 = vmatprep.subr.mxu0 0.0
      %589 = vmatpush1.msra.mxu0 0.0
      %590 = vmatprep.subr.mxu0 0.0
      %591 = vmatpush1.msra.mxu0 0.0
      %592 = vmatprep.subr.mxu0 0.0
      %593 = vmatpush1.msra.mxu0 0.0
      %594 = vmatprep.subr.mxu0 0.0
      %595 = vmatpush1.msra.mxu0 0.0
      %596 = vmatprep.subr.mxu0 0.0
      %597 = vmatpush1.msra.mxu0 0.0
      %598 = vmatprep.subr.mxu0 0.0
      %599 = vmatpush1.msra.mxu0 0.0
      %600 = vmatprep.subr.mxu0 0.0
      %601 = vmatpush1.msra.mxu0 0.0
      %602 = vmatprep.subr.mxu0 0.0
      %603 = vmatpush1.msra.mxu0 0.0
      %604 = vmatprep.subr.mxu0 0.0
      %605 = vmatpush1.msra.mxu0 0.0
      %606 = vmatprep.subr.mxu0 0.0
      %607 = vmatpush1.msra.mxu0 0.0
      %608 = vmatprep.subr.mxu0 0.0
      %609 = vmatpush1.msra.mxu0 0.0
      %610 = vmatprep.subr.mxu0 0.0
      %611 = vmatpush1.msra.mxu0 0.0
      %612 = vmatprep.mubr.f32.mxu0 0.0
      %613 = vmatmul.mubr.f32.gmra.mrb[0].mxu0 %v525
      %v614 = vpop.f32.mrb[0].mxu0
      %v615 = vadd.f32 %v521, %v614
      %v616 = vpop.f32.mrb[0].mxu0
      %617 = vmatprep.mubr.f32.mxu0 0.0
      %618 = vmatmul.mubr.f32.gmra.mrb[0].mxu0 %v528
      %v619 = vpop.f32.mrb[0].mxu0
      %v620 = vadd.f32 %v521, %v619
      %v621 = vpop.f32.mrb[0].mxu0
      %622 = vmatprep.mubr.f32.mxu0 0.0
      %623 = vmatmul.mubr.f32.gmra.mrb[0].mxu0 %v531
      %v624 = vpop.f32.mrb[0].mxu0
      %v625 = vadd.f32 %v521, %v624
      %v626 = vpop.f32.mrb[0].mxu0
      %627 = vmatprep.mubr.f32.mxu0 0.0
      %628 = vmatmul.mubr.f32.gmra.mrb[0].mxu0 %v534
      %v629 = vpop.f32.mrb[0].mxu0
      %v630 = vadd.f32 %v521, %v629
      %v631 = vpop.f32.mrb[0].mxu0
      %632 = vmatprep.mubr.f32.mxu0 0.0
      %633 = vmatmul.mubr.f32.gmra.mrb[0].mxu0 %v537
      %v634 = vpop.f32.mrb[0].mxu0
      %v635 = vadd.f32 %v521, %v634
      %v636 = vpop.f32.mrb[0].mxu0
      %637 = vmatprep.mubr.f32.mxu0 0.0
      %638 = vmatmul.mubr.f32.gmra.mrb[0].mxu0 %v540
      %v639 = vpop.f32.mrb[0].mxu0
      %v640 = vadd.f32 %v521, %v639
      %v641 = vpop.f32.mrb[0].mxu0
      %642 = vmatprep.mubr.f32.mxu0 0.0
      %643 = vmatmul.mubr.f32.gmra.mrb[0].mxu0 %v543
      %v644 = vpop.f32.mrb[0].mxu0
      %v645 = vadd.f32 %v521, %v644
      %v646 = vpop.f32.mrb[0].mxu0
      %647 = vmatprep.mubr.f32.mxu0 0.0
      %648 = vmatmul.mubr.f32.gmra.mrb[0].mxu0 %v546
      %v649 = vpop.f32.mrb[0].mxu0
      %v650 = vadd.f32 %v521, %v649
      %v651 = vpop.f32.mrb[0].mxu0
      %652 = vdwg.mxu0
      %vm653 = vcmask 261120
      %v654 = vsel %vm653, %v615, -inf
      %v655 = vsel %vm653, %v620, -inf
      %v656 = vsel %vm653, %v625, -inf
      %v657 = vsel %vm653, %v630, -inf
      %v658 = vsel %vm653, %v635, -inf
      %v659 = vmax.f32 %v654, %v658
      %v660 = vsel %vm653, %v640, -inf
      %v661 = vmax.f32 %v655, %v660
      %v662 = vsel %vm653, %v645, -inf
      %v663 = vmax.f32 %v656, %v662
      %v664 = vsel %vm653, %v650, -inf
      %v665 = vmax.f32 %v657, %v664
      %v666 = vmax.f32 %v659, %v661
      %v667 = vmax.f32 %v663, %v665
      %v668 = vmax.f32 %v666, %v667
      %v669 = vrot.slane %v668, 4
      %v670 = vmax.f32 %v668, %v669
      %v671 = vrot.slane %v670, 2
      %v672 = vmax.f32 %v670, %v671
      %v673 = vrot.slane %v672, 1
      %v674 = vmax.f32 %v672, %v673
      %v675 = vld [vmem:[%s5] sm:$0xff]
      %v676 = vld [vmem:[%s5 + $0x8] sm:$0xff]
      %v677 = vld [vmem:[%s5 + $0x10] sm:$0xff]
      %v678 = vld [vmem:[%s5 + $0x18] sm:$0xff]
      %v679 = vld [vmem:[%s6] sm:$0xff]
      %v680 = vld [vmem:[%s6 + $0x8] sm:$0xff]
      %v681 = vld [vmem:[%s6 + $0x10] sm:$0xff]
      %v682 = vld [vmem:[%s6 + $0x18] sm:$0xff]
      %v684 = vsel %vm653, %v674, 0
      %686 = vmatprep.subr.mxu0 0.0
      %687 = vmatpush1.msra.mxu0 %v679
      %688 = vmatprep.subr.mxu0 0.0
      %689 = vmatpush1.msra.mxu0 %v680
      %690 = vmatprep.subr.mxu0 0.0
      %691 = vmatpush1.msra.mxu0 %v681
      %692 = vmatprep.subr.mxu0 0.0
      %693 = vmatpush1.msra.mxu0 %v682
      %694 = vmatprep.subr.mxu0 0.0
      %695 = vmatpush1.msra.mxu0 0.0
      %696 = vmatprep.subr.mxu0 0.0
      %697 = vmatpush1.msra.mxu0 0.0
      %698 = vmatprep.subr.mxu0 0.0
      %699 = vmatpush1.msra.mxu0 0.0
      %700 = vmatprep.subr.mxu0 0.0
      %701 = vmatpush1.msra.mxu0 0.0
      %702 = vmatprep.subr.mxu0 0.0
      %703 = vmatpush1.msra.mxu0 0.0
      %704 = vmatprep.subr.mxu0 0.0
      %705 = vmatpush1.msra.mxu0 0.0
      %706 = vmatprep.subr.mxu0 0.0
      %707 = vmatpush1.msra.mxu0 0.0
      %708 = vmatprep.subr.mxu0 0.0
      %709 = vmatpush1.msra.mxu0 0.0
      %710 = vmatprep.subr.mxu0 0.0
      %711 = vmatpush1.msra.mxu0 0.0
      %712 = vmatprep.subr.mxu0 0.0
      %713 = vmatpush1.msra.mxu0 0.0
      %714 = vmatprep.subr.mxu0 0.0
      %715 = vmatpush1.msra.mxu0 0.0
      %716 = vmatprep.subr.mxu0 0.0
      %717 = vmatpush1.msra.mxu0 0.0
      %718 = vmatprep.subr.mxu0 0.0
      %719 = vmatpush1.msra.mxu0 0.0
      %720 = vmatprep.subr.mxu0 0.0
      %721 = vmatpush1.msra.mxu0 0.0
      %722 = vmatprep.subr.mxu0 0.0
      %723 = vmatpush1.msra.mxu0 0.0
      %724 = vmatprep.subr.mxu0 0.0
      %725 = vmatpush1.msra.mxu0 0.0
      %726 = vmatprep.subr.mxu0 0.0
      %727 = vmatpush1.msra.mxu0 0.0
      %728 = vmatprep.subr.mxu0 0.0
      %729 = vmatpush1.msra.mxu0 0.0
      %730 = vmatprep.subr.mxu0 0.0
      %731 = vmatpush1.msra.mxu0 0.0
      %732 = vmatprep.subr.mxu0 0.0
      %733 = vmatpush1.msra.mxu0 0.0
      %734 = vmatprep.subr.mxu0 0.0
      %735 = vmatpush1.msra.mxu0 0.0
      %736 = vmatprep.subr.mxu0 0.0
      %737 = vmatpush1.msra.mxu0 0.0
      %738 = vmatprep.subr.mxu0 0.0
      %739 = vmatpush1.msra.mxu0 0.0
      %740 = vmatprep.subr.mxu0 0.0
      %741 = vmatpush1.msra.mxu0 0.0
      %742 = vmatprep.subr.mxu0 0.0
      %743 = vmatpush1.msra.mxu0 0.0
      %744 = vmatprep.subr.mxu0 0.0
      %745 = vmatpush1.msra.mxu0 0.0
      %746 = vmatprep.subr.mxu0 0.0
      %747 = vmatpush1.msra.mxu0 0.0
      %748 = vmatprep.subr.mxu0 0.0
      %749 = vmatpush1.msra.mxu0 0.0
      %750 = vmatprep.mubr.f32.mxu0 0.0
      %751 = vmatmul.mubr.f32.gmra.mrb[0].mxu0 %v684
      %v752 = vpop.f32.mrb[0].mxu0
      %v753 = vadd.f32 0.0, %v752
      %v754 = vpop.f32.mrb[0].mxu0
      %755 = vdwg.mxu0
      %v756 = vlaneseq
      %v757 = vshrl.u32 %v756, 7
      %v758 = vsub.s32 0, %v757
      %v759 = vrot.slane %v753, %v758
      %v761 = vsel %vm653, %v615, 0
      %v764 = vsel %vm653, %v620, 0
      %v767 = vsel %vm653, %v625, 0
      %v770 = vsel %vm653, %v630, 0
      %v773 = vsel %vm653, %v635, 0
      %v776 = vsel %vm653, %v640, 0
      %v779 = vsel %vm653, %v645, 0
      %v782 = vsel %vm653, %v650, 0
      %784 = vmatprep.subr.mxu0 0.0
      %785 = vmatpush1.msra.mxu0 %v675
      %786 = vmatprep.subr.mxu0 0.0
      %787 = vmatpush1.msra.mxu0 %v676
      %788 = vmatprep.subr.mxu0 0.0
      %789 = vmatpush1.msra.mxu0 %v677
      %790 = vmatprep.subr.mxu0 0.0
      %791 = vmatpush1.msra.mxu0 %v678
      %792 = vmatprep.subr.mxu0 0.0
      %793 = vmatpush1.msra.mxu0 0.0
      %794 = vmatprep.subr.mxu0 0.0
      %795 = vmatpush1.msra.mxu0 0.0
      %796 = vmatprep.subr.mxu0 0.0
      %797 = vmatpush1.msra.mxu0 0.0
      %798 = vmatprep.subr.mxu0 0.0
      %799 = vmatpush1.msra.mxu0 0.0
      %800 = vmatprep.subr.mxu0 0.0
      %801 = vmatpush1.msra.mxu0 0.0
      %802 = vmatprep.subr.mxu0 0.0
      %803 = vmatpush1.msra.mxu0 0.0
      %804 = vmatprep.subr.mxu0 0.0
      %805 = vmatpush1.msra.mxu0 0.0
      %806 = vmatprep.subr.mxu0 0.0
      %807 = vmatpush1.msra.mxu0 0.0
      %808 = vmatprep.subr.mxu0 0.0
      %809 = vmatpush1.msra.mxu0 0.0
      %810 = vmatprep.subr.mxu0 0.0
      %811 = vmatpush1.msra.mxu0 0.0
      %812 = vmatprep.subr.mxu0 0.0
      %813 = vmatpush1.msra.mxu0 0.0
      %814 = vmatprep.subr.mxu0 0.0
      %815 = vmatpush1.msra.mxu0 0.0
      %816 = vmatprep.subr.mxu0 0.0
      %817 = vmatpush1.msra.mxu0 0.0
      %818 = vmatprep.subr.mxu0 0.0
      %819 = vmatpush1.msra.mxu0 0.0
      %820 = vmatprep.subr.mxu0 0.0
      %821 = vmatpush1.msra.mxu0 0.0
      %822 = vmatprep.subr.mxu0 0.0
      %823 = vmatpush1.msra.mxu0 0.0
      %824 = vmatprep.subr.mxu0 0.0
      %825 = vmatpush1.msra.mxu0 0.0
      %826 = vmatprep.subr.mxu0 0.0
      %827 = vmatpush1.msra.mxu0 0.0
      %828 = vmatprep.subr.mxu0 0.0
      %829 = vmatpush1.msra.mxu0 0.0
      %830 = vmatprep.subr.mxu0 0.0
      %831 = vmatpush1.msra.mxu0 0.0
      %832 = vmatprep.subr.mxu0 0.0
      %833 = vmatpush1.msra.mxu0 0.0
      %834 = vmatprep.subr.mxu0 0.0
      %835 = vmatpush1.msra.mxu0 0.0
      %836 = vmatprep.subr.mxu0 0.0
      %837 = vmatpush1.msra.mxu0 0.0
      %838 = vmatprep.subr.mxu0 0.0
      %839 = vmatpush1.msra.mxu0 0.0
      %840 = vmatprep.subr.mxu0 0.0
      %841 = vmatpush1.msra.mxu0 0.0
      %842 = vmatprep.subr.mxu0 0.0
      %843 = vmatpush1.msra.mxu0 0.0
      %844 = vmatprep.subr.mxu0 0.0
      %845 = vmatpush1.msra.mxu0 0.0
      %846 = vmatprep.subr.mxu0 0.0
      %847 = vmatpush1.msra.mxu0 0.0
      %848 = vmatprep.mubr.f32.mxu0 0.0
      %849 = vmatmul.mubr.f32.gmra.mrb[0].mxu0 %v761
      %v850 = vpop.f32.mrb[0].mxu0
      %v851 = vadd.f32 %v759, %v850
      %v852 = vpop.f32.mrb[0].mxu0
      %853 = vmatprep.mubr.f32.mxu0 0.0
      %854 = vmatmul.mubr.f32.gmra.mrb[0].mxu0 %v764
      %v855 = vpop.f32.mrb[0].mxu0
      %v856 = vadd.f32 %v759, %v855
      %v857 = vpop.f32.mrb[0].mxu0
      %858 = vmatprep.mubr.f32.mxu0 0.0
      %859 = vmatmul.mubr.f32.gmra.mrb[0].mxu0 %v767
      %v860 = vpop.f32.mrb[0].mxu0
      %v861 = vadd.f32 %v759, %v860
      %v862 = vpop.f32.mrb[0].mxu0
      %863 = vmatprep.mubr.f32.mxu0 0.0
      %864 = vmatmul.mubr.f32.gmra.mrb[0].mxu0 %v770
      %v865 = vpop.f32.mrb[0].mxu0
      %v866 = vadd.f32 %v759, %v865
      %v867 = vpop.f32.mrb[0].mxu0
      %868 = vmatprep.mubr.f32.mxu0 0.0
      %869 = vmatmul.mubr.f32.gmra.mrb[0].mxu0 %v773
      %v870 = vpop.f32.mrb[0].mxu0
      %v871 = vadd.f32 %v759, %v870
      %v872 = vpop.f32.mrb[0].mxu0
      %873 = vmatprep.mubr.f32.mxu0 0.0
      %874 = vmatmul.mubr.f32.gmra.mrb[0].mxu0 %v776
      %v875 = vpop.f32.mrb[0].mxu0
      %v876 = vadd.f32 %v759, %v875
      %v877 = vpop.f32.mrb[0].mxu0
      %878 = vmatprep.mubr.f32.mxu0 0.0
      %879 = vmatmul.mubr.f32.gmra.mrb[0].mxu0 %v779
      %v880 = vpop.f32.mrb[0].mxu0
      %v881 = vadd.f32 %v759, %v880
      %v882 = vpop.f32.mrb[0].mxu0
      %883 = vmatprep.mubr.f32.mxu0 0.0
      %884 = vmatmul.mubr.f32.gmra.mrb[0].mxu0 %v782
      %v885 = vpop.f32.mrb[0].mxu0
      %v886 = vadd.f32 %v759, %v885
      %v887 = vpop.f32.mrb[0].mxu0
      %888 = vdwg.mxu0
      %v889 = vld [vmem:[%s7] sm:$0x1]
      %v891 = vlaneseq
      %v892 = vshrl.u32 %v891, 7
      %v893 = vsub.s32 0, %v892
      %v894 = vrot.slane %v889, %v893
      %v896 = vadd.f32 %v851, %v894
      %v897 = vadd.f32 %v856, %v894
      %v898 = vadd.f32 %v861, %v894
      %v899 = vadd.f32 %v866, %v894
      %v900 = vadd.f32 %v871, %v894
      %v901 = vadd.f32 %v876, %v894
      %v902 = vadd.f32 %v881, %v894
      %v903 = vadd.f32 %v886, %v894
      %v904 = vmax.f32 %v896, 0.0
      %v905 = vmax.f32 %v897, 0.0
      %v906 = vmax.f32 %v898, 0.0
      %v907 = vmax.f32 %v899, 0.0
      %v908 = vmax.f32 %v900, 0.0
      %v909 = vmax.f32 %v901, 0.0
      %v910 = vmax.f32 %v902, 0.0
      %v911 = vmax.f32 %v903, 0.0
      %v912 = vld [vmem:[%s8] sm:$0xff]
      %v913 = vld [vmem:[%s8 + $0x8] sm:$0xff]
      %v914 = vld [vmem:[%s8 + $0x10] sm:$0xff]
      %v915 = vld [vmem:[%s8 + $0x18] sm:$0xff]
      %v916 = vld [vmem:[%s8 + $0x20] sm:$0xff]
      %v917 = vld [vmem:[%s8 + $0x28] sm:$0xff]
      %v918 = vld [vmem:[%s8 + $0x30] sm:$0xff]
      %v919 = vld [vmem:[%s8 + $0x38] sm:$0xff]
      %v920 = vld [vmem:[%s9] sm:$0x1]
      %v922 = vlaneseq
      %v923 = vshrl.u32 %v922, 7
      %v924 = vsub.s32 0, %v923
      %v925 = vrot.slane %v920, %v924
      %vm927 = vcmask 523264
      %v929 = vsel %vm927, %v904, 0
      %v932 = vsel %vm927, %v905, 0
      %v935 = vsel %vm927, %v906, 0
      %v938 = vsel %vm927, %v907, 0
      %v941 = vsel %vm927, %v908, 0
      %v944 = vsel %vm927, %v909, 0
      %v947 = vsel %vm927, %v910, 0
      %v950 = vsel %vm927, %v911, 0
      %952 = vmatprep.subr.mxu0 0.0
      %953 = vmatpush1.msra.mxu0 %v912
      %954 = vmatprep.subr.mxu0 0.0
      %955 = vmatpush1.msra.mxu0 %v913
      %956 = vmatprep.subr.mxu0 0.0
      %957 = vmatpush1.msra.mxu0 %v914
      %958 = vmatprep.subr.mxu0 0.0
      %959 = vmatpush1.msra.mxu0 %v915
      %960 = vmatprep.subr.mxu0 0.0
      %961 = vmatpush1.msra.mxu0 %v916
      %962 = vmatprep.subr.mxu0 0.0
      %963 = vmatpush1.msra.mxu0 %v917
      %964 = vmatprep.subr.mxu0 0.0
      %965 = vmatpush1.msra.mxu0 %v918
      %966 = vmatprep.subr.mxu0 0.0
      %967 = vmatpush1.msra.mxu0 %v919
      %968 = vmatprep.subr.mxu0 0.0
      %969 = vmatpush1.msra.mxu0 0.0
      %970 = vmatprep.subr.mxu0 0.0
      %971 = vmatpush1.msra.mxu0 0.0
      %972 = vmatprep.subr.mxu0 0.0
      %973 = vmatpush1.msra.mxu0 0.0
      %974 = vmatprep.subr.mxu0 0.0
      %975 = vmatpush1.msra.mxu0 0.0
      %976 = vmatprep.subr.mxu0 0.0
      %977 = vmatpush1.msra.mxu0 0.0
      %978 = vmatprep.subr.mxu0 0.0
      %979 = vmatpush1.msra.mxu0 0.0
      %980 = vmatprep.subr.mxu0 0.0
      %981 = vmatpush1.msra.mxu0 0.0
      %982 = vmatprep.subr.mxu0 0.0
      %983 = vmatpush1.msra.mxu0 0.0
      %984 = vmatprep.subr.mxu0 0.0
      %985 = vmatpush1.msra.mxu0 0.0
      %986 = vmatprep.subr.mxu0 0.0
      %987 = vmatpush1.msra.mxu0 0.0
      %988 = vmatprep.subr.mxu0 0.0
      %989 = vmatpush1.msra.mxu0 0.0
      %990 = vmatprep.subr.mxu0 0.0
      %991 = vmatpush1.msra.mxu0 0.0
      %992 = vmatprep.subr.mxu0 0.0
      %993 = vmatpush1.msra.mxu0 0.0
      %994 = vmatprep.subr.mxu0 0.0
      %995 = vmatpush1.msra.mxu0 0.0
      %996 = vmatprep.subr.mxu0 0.0
      %997 = vmatpush1.msra.mxu0 0.0
      %998 = vmatprep.subr.mxu0 0.0
      %999 = vmatpush1.msra.mxu0 0.0
      %1000 = vmatprep.subr.mxu0 0.0
      %1001 = vmatpush1.msra.mxu0 0.0
      %1002 = vmatprep.subr.mxu0 0.0
      %1003 = vmatpush1.msra.mxu0 0.0
      %1004 = vmatprep.subr.mxu0 0.0
      %1005 = vmatpush1.msra.mxu0 0.0
      %1006 = vmatprep.subr.mxu0 0.0
      %1007 = vmatpush1.msra.mxu0 0.0
      %1008 = vmatprep.subr.mxu0 0.0
      %1009 = vmatpush1.msra.mxu0 0.0
      %1010 = vmatprep.subr.mxu0 0.0
      %1011 = vmatpush1.msra.mxu0 0.0
      %1012 = vmatprep.subr.mxu0 0.0
      %1013 = vmatpush1.msra.mxu0 0.0
      %1014 = vmatprep.subr.mxu0 0.0
      %1015 = vmatpush1.msra.mxu0 0.0
      %1016 = vmatprep.mubr.f32.mxu0 0.0
      %1017 = vmatmul.mubr.f32.gmra.mrb[0].mxu0 %v929
      %v1018 = vpop.f32.mrb[0].mxu0
      %v1019 = vadd.f32 %v925, %v1018
      %v1020 = vpop.f32.mrb[0].mxu0
      %1021 = vmatprep.mubr.f32.mxu0 0.0
      %1022 = vmatmul.mubr.f32.gmra.mrb[0].mxu0 %v932
      %v1023 = vpop.f32.mrb[0].mxu0
      %v1024 = vadd.f32 %v925, %v1023
      %v1025 = vpop.f32.mrb[0].mxu0
      %1026 = vmatprep.mubr.f32.mxu0 0.0
      %1027 = vmatmul.mubr.f32.gmra.mrb[0].mxu0 %v935
      %v1028 = vpop.f32.mrb[0].mxu0
      %v1029 = vadd.f32 %v925, %v1028
      %v1030 = vpop.f32.mrb[0].mxu0
      %1031 = vmatprep.mubr.f32.mxu0 0.0
      %1032 = vmatmul.mubr.f32.gmra.mrb[0].mxu0 %v938
      %v1033 = vpop.f32.mrb[0].mxu0
      %v1034 = vadd.f32 %v925, %v1033
      %v1035 = vpop.f32.mrb[0].mxu0
      %1036 = vmatprep.mubr.f32.mxu0 0.0
      %1037 = vmatmul.mubr.f32.gmra.mrb[0].mxu0 %v941
      %v1038 = vpop.f32.mrb[0].mxu0
      %v1039 = vadd.f32 %v925, %v1038
      %v1040 = vpop.f32.mrb[0].mxu0
      %1041 = vmatprep.mubr.f32.mxu0 0.0
      %1042 = vmatmul.mubr.f32.gmra.mrb[0].mxu0 %v944
      %v1043 = vpop.f32.mrb[0].mxu0
      %v1044 = vadd.f32 %v925, %v1043
      %v1045 = vpop.f32.mrb[0].mxu0
      %1046 = vmatprep.mubr.f32.mxu0 0.0
      %1047 = vmatmul.mubr.f32.gmra.mrb[0].mxu0 %v947
      %v1048 = vpop.f32.mrb[0].mxu0
      %v1049 = vadd.f32 %v925, %v1048
      %v1050 = vpop.f32.mrb[0].mxu0
      %1051 = vmatprep.mubr.f32.mxu0 0.0
      %1052 = vmatmul.mubr.f32.gmra.mrb[0].mxu0 %v950
      %v1053 = vpop.f32.mrb[0].mxu0
      %v1054 = vadd.f32 %v925, %v1053
      %v1055 = vpop.f32.mrb[0].mxu0
      %1056 = vdwg.mxu0
      %v1057 = vsel %vm653, %v1019, -inf
      %v1058 = vsel %vm653, %v1024, -inf
      %v1059 = vsel %vm653, %v1029, -inf
      %v1060 = vsel %vm653, %v1034, -inf
      %v1061 = vsel %vm653, %v1039, -inf
      %v1062 = vmax.f32 %v1057, %v1061
      %v1063 = vsel %vm653, %v1044, -inf
      %v1064 = vmax.f32 %v1058, %v1063
      %v1065 = vsel %vm653, %v1049, -inf
      %v1066 = vmax.f32 %v1059, %v1065
      %v1067 = vsel %vm653, %v1054, -inf
      %v1068 = vmax.f32 %v1060, %v1067
      %v1069 = vmax.f32 %v1062, %v1064
      %v1070 = vmax.f32 %v1066, %v1068
      %v1071 = vmax.f32 %v1069, %v1070
      %v1072 = vrot.slane %v1071, 4
      %v1073 = vmax.f32 %v1071, %v1072
      %v1074 = vrot.slane %v1073, 2
      %v1075 = vmax.f32 %v1073, %v1074
      %v1076 = vrot.slane %v1075, 1
      %v1077 = vmax.f32 %v1075, %v1076
      %vm1078 = vcmask 253952
      %1079 = vst.msk [vmem:[%s355] sm:$0x1] %vm1078, %v1077
      %p1080 = scmp.lt.s32.totalorder %s21, 1
      %s1081 = scalar_select %p1080, %s21, 1
      %s1082 = scalar_lea.vmem %s10, %s1081
      // Predicated region
      $region61: #{fwd.3} parent=59 // pred_check
        %p1083 = pneg %p254
      $region62: #{fwd.3} parent=59 // pred_check_branch
        %1085 = sbr.rel (%p1083) target = $region64
      $region63: #{fwd.3} parent=59 // pred_region
        _
      $region64: #{fwd.3} parent=59 // pred_fallthru
        _
    $region60: #{fwd.3} parent=5 // pred_fallthru
      _
    %p1086 = scmp.le.s32.totalorder 2, %s16
    // Predicated region
    $region65: #{fwd.3} parent=5 // pred_check
      %p1087 = pneg %p1086
    $region66: #{fwd.3} parent=5 // pred_check_branch
      %1089 = sbr.rel (%p1087) target = $region68
    $region67: #{fwd.3} parent=5 // pred_region
      %s1090 = ssub.s32 %s16, 2
      // Predicated region
      $region69: #{fwd.3} parent=67 // pred_check
        %p1091 = pneg %p260
      $region70: #{fwd.3} parent=67 // pred_check_branch
        %1093 = sbr.rel (%p1091) target = $region72
      $region71: #{fwd.3} parent=67 // pred_region
        %p1094 = scmp.lt.s32.totalorder %s22, 1
        %s1095 = scalar_select %p1094, %s22, 1
        %s1096 = scalar_lea.vmem %s10, %s1095
      $region72: #{fwd.3} parent=67 // pred_fallthru
        _
    $region68: #{fwd.3} parent=5 // pred_fallthru
      _
  $region6: #{fwd.3} parent=0 // loop_footer
    %s20 = sadd.s32 1, %s16
  $region7: #{fwd.3} parent=0 // loop_footer_branch
    %15 = sbr.rel target = $region3
  $region8: #{fwd.3} parent=0 // loop_exit
    _

// kernel: fwd.4
$region0: #{fwd.4}
  #allocation0 [shape = 'u32[]', space=smem, size = 0x4, offset = 0x4, fixed_abs, tag = 'smem constant byte address 0x4 - core index']
  #allocation1 [shape = 'u32[144,128]{1,0:T(1,128)}', space=vmem, size = 0x12000, scoped, tag = 'internal scratch']
  %s0 = inlined_call_operand.vmem [shape: f32[2,8,32], index: 0, kind: input, shape index: {}]
  %s1 = inlined_call_operand.vmem [shape: f32[2,32,1], index: 1, kind: input, shape index: {}]
  %s2 = inlined_call_operand.vmem [shape: f32[32,8], index: 2, kind: input, shape index: {}]
  %s3 = inlined_call_operand.vmem [shape: f32[16,32], index: 3, kind: input, shape index: {}]
  %s4 = inlined_call_operand.vmem [shape: f32[16,1], index: 4, kind: input, shape index: {}]
  %s5 = inlined_call_operand.vmem [shape: f32[16,16], index: 5, kind: input, shape index: {}]
  %s6 = inlined_call_operand.vmem [shape: f32[16,1], index: 6, kind: input, shape index: {}]
  %s7 = inlined_call_operand.vmem [shape: f32[32,16], index: 7, kind: input, shape index: {}]
  %s8 = inlined_call_operand.vmem [shape: f32[32,1], index: 8, kind: input, shape index: {}]
  %s9 = inlined_call_operand.vmem [shape: f32[16,32], index: 9, kind: input, shape index: {}]
  %s10 = inlined_call_operand.vmem [shape: f32[16,1], index: 10, kind: input, shape index: {}]
  %s11 = inlined_call_operand.vmem [shape: f32[32,16], index: 11, kind: input, shape index: {}]
  %s12 = inlined_call_operand.vmem [shape: f32[32,1], index: 12, kind: input, shape index: {}]
  %s13 = inlined_call_operand.vmem [shape: f32[32,32], index: 13, kind: input, shape index: {}]
  %s14 = inlined_call_operand.vmem [shape: f32[32,1], index: 14, kind: input, shape index: {}]
  %s15 = inlined_call_operand.vmem [shape: f32[6,32], index: 15, kind: input, shape index: {}]
  %s16 = inlined_call_operand.vmem [shape: f32[6,1], index: 16, kind: input, shape index: {}]
  %s17 = inlined_call_operand.vmem [shape: f32[2,6,32], index: 17, kind: output, shape index: {}]
  %s18 = sld [smem:[#allocation0]]
  $region101: #{fwd.4} parent=0
    _
  %s20 = ssub.s32 1, %s18
  %s21 = scalar_select 0, %s20, %s18
  loop: start=0, step=1, limit=4
  $region2: #{fwd.4} parent=0 // loop_pre_header
    _
  $region3: #{fwd.4} parent=0 // loop_header
    %s23 = sphi 0, %s27
    %p24 = scmp.ge.s32.totalorder %s23, 4
    %s30 = sphi 0, %s42
    %s31 = sphi 0, %s38
    %s32 = sphi 0, %s30
    %s33 = sphi 0, %s31
    %s34 = sphi 0, %s32
    %s35 = sphi 0, %s33
    %s47 = sphi 0, %s49
    %s50 = sphi 0, %s47
    %s51 = sphi 0, %s50
    %s67 = sphi 0, %s51
    %s73 = sphi 0, %s75
    %s76 = sphi 0, %s73
    %s77 = sphi 0, %s76
    %s93 = sphi 0, %s77
    %s97 = sphi 0, %s97
    %s99 = sphi 0, %s97
    %s100 = sphi 0, %s99
    %s114 = sphi 0, %s100
    %s118 = sphi 0, %s118
    %s120 = sphi 0, %s118
    %s121 = sphi 0, %s120
    %s135 = sphi 0, %s121
    %s139 = sphi 0, %s139
    %s141 = sphi 0, %s139
    %s142 = sphi 0, %s141
    %s156 = sphi 0, %s142
    %s160 = sphi 0, %s160
    %s162 = sphi 0, %s160
    %s163 = sphi 0, %s162
    %s177 = sphi 0, %s163
    %s181 = sphi 0, %s181
    %s183 = sphi 0, %s181
    %s184 = sphi 0, %s183
    %s198 = sphi 0, %s184
    %s202 = sphi 0, %s202
    %s204 = sphi 0, %s202
    %s205 = sphi 0, %s204
    %s219 = sphi 0, %s205
    %s223 = sphi 0, %s223
    %s225 = sphi 0, %s223
    %s226 = sphi 0, %s225
    %s240 = sphi 0, %s226
    %s244 = sphi 0, %s244
    %s246 = sphi 0, %s244
    %s247 = sphi 0, %s246
    %s261 = sphi 0, %s247
    %s265 = sphi 0, %s265
    %s267 = sphi 0, %s265
    %s268 = sphi 0, %s267
    %s282 = sphi 0, %s268
    %s286 = sphi 0, %s286
    %s288 = sphi 0, %s286
    %s289 = sphi 0, %s288
    %s303 = sphi 0, %s289
    %s307 = sphi 0, %s307
    %s309 = sphi 0, %s307
    %s310 = sphi 0, %s309
    %s324 = sphi 0, %s310
    %s328 = sphi 0, %s328
    %s330 = sphi 0, %s328
    %s331 = sphi 0, %s330
    %s345 = sphi 0, %s331
    %s349 = sphi 0, %s349
    %s351 = sphi 0, %s349
    %s352 = sphi 0, %s351
    %s366 = sphi 0, %s352
    %s370 = sphi 0, %s370
    %s372 = sphi 0, %s370
    %s373 = sphi 0, %s372
    %s387 = sphi 0, %s373
    %s391 = sphi 0, %s391
    %s393 = sphi 0, %s391
    %s394 = sphi 0, %s393
    %s408 = sphi 0, %s394
    %s416 = sphi 0, %s418
    %s419 = sphi 0, %s416
    %s420 = sphi 0, %s419
    %s436 = sphi 0, %s420
  $region4: #{fwd.4} parent=0 // loop_header_branch
    %26 = sbr.rel (%p24) target = $region8
  $region5: #{fwd.4} parent=0 // loop_body
    %s28 = ssub.s32 %s23, 1
    %s29 = ssub.s32 %s23, 2
    %s36 = sadd.s32 1, %s31
    %p37 = scmp.ge.s32.totalorder %s36, 1
    %s38 = scalar_select %p37, 0, %s36
    %s39 = sadd.s32 1, %s30
    %s40 = scalar_select %p37, %s39, %s30
    %p41 = scmp.ge.s32.totalorder %s40, 2
    %s42 = scalar_select %p41, 0, %s40
    %s43 = ssub.s32 %s30, %s42
    %s44 = ssub.s32 %s31, %s38
    %s45 = sor.u32 %s43, %s44
    %p46 = scmp.eq.s32.totalorder %s45, 0
    %s48 = sadd.s32 %s47, 1
    %s49 = scalar_select %p46, %s47, %s48
    %p52 = pneg %p46
    %p53 = scmp.eq.s32.totalorder %s23, 1
    %p54 = por %p52, %p53
    %p55 = scmp.ne.s32.totalorder %s47, %s50
    %p56 = scmp.eq.s32.totalorder %s23, 0
    %p57 = por %p55, %p56
    %p58 = scmp.ne.s32.totalorder %s47, %s50
    %p59 = scmp.eq.s32.totalorder %s28, 1
    %p60 = por %p58, %p59
    %p61 = scmp.ne.s32.totalorder %s50, %s51
    %p62 = scmp.eq.s32.totalorder %s28, 0
    %p63 = por %p61, %p62
    %p64 = scmp.ne.s32.totalorder %s50, %s51
    %p65 = scmp.eq.s32.totalorder %s29, 1
    %p66 = por %p64, %p65
    %p68 = scmp.ne.s32.totalorder %s51, %s67
    %p69 = scmp.eq.s32.totalorder %s29, 0
    %p70 = por %p68, %p69
    %s71 = ssub.s32 %s30, %s42
    %p72 = scmp.eq.s32.totalorder %s71, 0
    %s74 = sadd.s32 %s73, 1
    %s75 = scalar_select %p72, %s73, %s74
    %p78 = pneg %p72
    %p79 = scmp.eq.s32.totalorder %s23, 1
    %p80 = por %p78, %p79
    %p81 = scmp.ne.s32.totalorder %s73, %s76
    %p82 = scmp.eq.s32.totalorder %s23, 0
    %p83 = por %p81, %p82
    %p84 = scmp.ne.s32.totalorder %s73, %s76
    %p85 = scmp.eq.s32.totalorder %s28, 1
    %p86 = por %p84, %p85
    %p87 = scmp.ne.s32.totalorder %s76, %s77
    %p88 = scmp.eq.s32.totalorder %s28, 0
    %p89 = por %p87, %p88
    %p90 = scmp.ne.s32.totalorder %s76, %s77
    %p91 = scmp.eq.s32.totalorder %s29, 1
    %p92 = por %p90, %p91
    %p94 = scmp.ne.s32.totalorder %s77, %s93
    %p95 = scmp.eq.s32.totalorder %s29, 0
    %p96 = por %p94, %p95
    %s98 = sadd.s32 %s97, 1
    %p101 = scmp.eq.s32.totalorder %s23, 1
    %p102 = scmp.ne.s32.totalorder %s97, %s99
    %p103 = scmp.eq.s32.totalorder %s23, 0
    %p104 = por %p102, %p103
    %p105 = scmp.ne.s32.totalorder %s97, %s99
    %p106 = scmp.eq.s32.totalorder %s28, 1
    %p107 = por %p105, %p106
    %p108 = scmp.ne.s32.totalorder %s99, %s100
    %p109 = scmp.eq.s32.totalorder %s28, 0
    %p110 = por %p108, %p109
    %p111 = scmp.ne.s32.totalorder %s99, %s100
    %p112 = scmp.eq.s32.totalorder %s29, 1
    %p113 = por %p111, %p112
    %p115 = scmp.ne.s32.totalorder %s100, %s114
    %p116 = scmp.eq.s32.totalorder %s29, 0
    %p117 = por %p115, %p116
    %s119 = sadd.s32 %s118, 1
    %p122 = scmp.eq.s32.totalorder %s23, 1
    %p123 = scmp.ne.s32.totalorder %s118, %s120
    %p124 = scmp.eq.s32.totalorder %s23, 0
    %p125 = por %p123, %p124
    %p126 = scmp.ne.s32.totalorder %s118, %s120
    %p127 = scmp.eq.s32.totalorder %s28, 1
    %p128 = por %p126, %p127
    %p129 = scmp.ne.s32.totalorder %s120, %s121
    %p130 = scmp.eq.s32.totalorder %s28, 0
    %p131 = por %p129, %p130
    %p132 = scmp.ne.s32.totalorder %s120, %s121
    %p133 = scmp.eq.s32.totalorder %s29, 1
    %p134 = por %p132, %p133
    %p136 = scmp.ne.s32.totalorder %s121, %s135
    %p137 = scmp.eq.s32.totalorder %s29, 0
    %p138 = por %p136, %p137
    %s140 = sadd.s32 %s139, 1
    %p143 = scmp.eq.s32.totalorder %s23, 1
    %p144 = scmp.ne.s32.totalorder %s139, %s141
    %p145 = scmp.eq.s32.totalorder %s23, 0
    %p146 = por %p144, %p145
    %p147 = scmp.ne.s32.totalorder %s139, %s141
    %p148 = scmp.eq.s32.totalorder %s28, 1
    %p149 = por %p147, %p148
    %p150 = scmp.ne.s32.totalorder %s141, %s142
    %p151 = scmp.eq.s32.totalorder %s28, 0
    %p152 = por %p150, %p151
    %p153 = scmp.ne.s32.totalorder %s141, %s142
    %p154 = scmp.eq.s32.totalorder %s29, 1
    %p155 = por %p153, %p154
    %p157 = scmp.ne.s32.totalorder %s142, %s156
    %p158 = scmp.eq.s32.totalorder %s29, 0
    %p159 = por %p157, %p158
    %s161 = sadd.s32 %s160, 1
    %p164 = scmp.eq.s32.totalorder %s23, 1
    %p165 = scmp.ne.s32.totalorder %s160, %s162
    %p166 = scmp.eq.s32.totalorder %s23, 0
    %p167 = por %p165, %p166
    %p168 = scmp.ne.s32.totalorder %s160, %s162
    %p169 = scmp.eq.s32.totalorder %s28, 1
    %p170 = por %p168, %p169
    %p171 = scmp.ne.s32.totalorder %s162, %s163
    %p172 = scmp.eq.s32.totalorder %s28, 0
    %p173 = por %p171, %p172
    %p174 = scmp.ne.s32.totalorder %s162, %s163
    %p175 = scmp.eq.s32.totalorder %s29, 1
    %p176 = por %p174, %p175
    %p178 = scmp.ne.s32.totalorder %s163, %s177
    %p179 = scmp.eq.s32.totalorder %s29, 0
    %p180 = por %p178, %p179
    %s182 = sadd.s32 %s181, 1
    %p185 = scmp.eq.s32.totalorder %s23, 1
    %p186 = scmp.ne.s32.totalorder %s181, %s183
    %p187 = scmp.eq.s32.totalorder %s23, 0
    %p188 = por %p186, %p187
    %p189 = scmp.ne.s32.totalorder %s181, %s183
    %p190 = scmp.eq.s32.totalorder %s28, 1
    %p191 = por %p189, %p190
    %p192 = scmp.ne.s32.totalorder %s183, %s184
    %p193 = scmp.eq.s32.totalorder %s28, 0
    %p194 = por %p192, %p193
    %p195 = scmp.ne.s32.totalorder %s183, %s184
    %p196 = scmp.eq.s32.totalorder %s29, 1
    %p197 = por %p195, %p196
    %p199 = scmp.ne.s32.totalorder %s184, %s198
    %p200 = scmp.eq.s32.totalorder %s29, 0
    %p201 = por %p199, %p200
    %s203 = sadd.s32 %s202, 1
    %p206 = scmp.eq.s32.totalorder %s23, 1
    %p207 = scmp.ne.s32.totalorder %s202, %s204
    %p208 = scmp.eq.s32.totalorder %s23, 0
    %p209 = por %p207, %p208
    %p210 = scmp.ne.s32.totalorder %s202, %s204
    %p211 = scmp.eq.s32.totalorder %s28, 1
    %p212 = por %p210, %p211
    %p213 = scmp.ne.s32.totalorder %s204, %s205
    %p214 = scmp.eq.s32.totalorder %s28, 0
    %p215 = por %p213, %p214
    %p216 = scmp.ne.s32.totalorder %s204, %s205
    %p217 = scmp.eq.s32.totalorder %s29, 1
    %p218 = por %p216, %p217
    %p220 = scmp.ne.s32.totalorder %s205, %s219
    %p221 = scmp.eq.s32.totalorder %s29, 0
    %p222 = por %p220, %p221
    %s224 = sadd.s32 %s223, 1
    %p227 = scmp.eq.s32.totalorder %s23, 1
    %p228 = scmp.ne.s32.totalorder %s223, %s225
    %p229 = scmp.eq.s32.totalorder %s23, 0
    %p230 = por %p228, %p229
    %p231 = scmp.ne.s32.totalorder %s223, %s225
    %p232 = scmp.eq.s32.totalorder %s28, 1
    %p233 = por %p231, %p232
    %p234 = scmp.ne.s32.totalorder %s225, %s226
    %p235 = scmp.eq.s32.totalorder %s28, 0
    %p236 = por %p234, %p235
    %p237 = scmp.ne.s32.totalorder %s225, %s226
    %p238 = scmp.eq.s32.totalorder %s29, 1
    %p239 = por %p237, %p238
    %p241 = scmp.ne.s32.totalorder %s226, %s240
    %p242 = scmp.eq.s32.totalorder %s29, 0
    %p243 = por %p241, %p242
    %s245 = sadd.s32 %s244, 1
    %p248 = scmp.eq.s32.totalorder %s23, 1
    %p249 = scmp.ne.s32.totalorder %s244, %s246
    %p250 = scmp.eq.s32.totalorder %s23, 0
    %p251 = por %p249, %p250
    %p252 = scmp.ne.s32.totalorder %s244, %s246
    %p253 = scmp.eq.s32.totalorder %s28, 1
    %p254 = por %p252, %p253
    %p255 = scmp.ne.s32.totalorder %s246, %s247
    %p256 = scmp.eq.s32.totalorder %s28, 0
    %p257 = por %p255, %p256
    %p258 = scmp.ne.s32.totalorder %s246, %s247
    %p259 = scmp.eq.s32.totalorder %s29, 1
    %p260 = por %p258, %p259
    %p262 = scmp.ne.s32.totalorder %s247, %s261
    %p263 = scmp.eq.s32.totalorder %s29, 0
    %p264 = por %p262, %p263
    %s266 = sadd.s32 %s265, 1
    %p269 = scmp.eq.s32.totalorder %s23, 1
    %p270 = scmp.ne.s32.totalorder %s265, %s267
    %p271 = scmp.eq.s32.totalorder %s23, 0
    %p272 = por %p270, %p271
    %p273 = scmp.ne.s32.totalorder %s265, %s267
    %p274 = scmp.eq.s32.totalorder %s28, 1
    %p275 = por %p273, %p274
    %p276 = scmp.ne.s32.totalorder %s267, %s268
    %p277 = scmp.eq.s32.totalorder %s28, 0
    %p278 = por %p276, %p277
    %p279 = scmp.ne.s32.totalorder %s267, %s268
    %p280 = scmp.eq.s32.totalorder %s29, 1
    %p281 = por %p279, %p280
    %p283 = scmp.ne.s32.totalorder %s268, %s282
    %p284 = scmp.eq.s32.totalorder %s29, 0
    %p285 = por %p283, %p284
    %s287 = sadd.s32 %s286, 1
    %p290 = scmp.eq.s32.totalorder %s23, 1
    %p291 = scmp.ne.s32.totalorder %s286, %s288
    %p292 = scmp.eq.s32.totalorder %s23, 0
    %p293 = por %p291, %p292
    %p294 = scmp.ne.s32.totalorder %s286, %s288
    %p295 = scmp.eq.s32.totalorder %s28, 1
    %p296 = por %p294, %p295
    %p297 = scmp.ne.s32.totalorder %s288, %s289
    %p298 = scmp.eq.s32.totalorder %s28, 0
    %p299 = por %p297, %p298
    %p300 = scmp.ne.s32.totalorder %s288, %s289
    %p301 = scmp.eq.s32.totalorder %s29, 1
    %p302 = por %p300, %p301
    %p304 = scmp.ne.s32.totalorder %s289, %s303
    %p305 = scmp.eq.s32.totalorder %s29, 0
    %p306 = por %p304, %p305
    %s308 = sadd.s32 %s307, 1
    %p311 = scmp.eq.s32.totalorder %s23, 1
    %p312 = scmp.ne.s32.totalorder %s307, %s309
    %p313 = scmp.eq.s32.totalorder %s23, 0
    %p314 = por %p312, %p313
    %p315 = scmp.ne.s32.totalorder %s307, %s309
    %p316 = scmp.eq.s32.totalorder %s28, 1
    %p317 = por %p315, %p316
    %p318 = scmp.ne.s32.totalorder %s309, %s310
    %p319 = scmp.eq.s32.totalorder %s28, 0
    %p320 = por %p318, %p319
    %p321 = scmp.ne.s32.totalorder %s309, %s310
    %p322 = scmp.eq.s32.totalorder %s29, 1
    %p323 = por %p321, %p322
    %p325 = scmp.ne.s32.totalorder %s310, %s324
    %p326 = scmp.eq.s32.totalorder %s29, 0
    %p327 = por %p325, %p326
    %s329 = sadd.s32 %s328, 1
    %p332 = scmp.eq.s32.totalorder %s23, 1
    %p333 = scmp.ne.s32.totalorder %s328, %s330
    %p334 = scmp.eq.s32.totalorder %s23, 0
    %p335 = por %p333, %p334
    %p336 = scmp.ne.s32.totalorder %s328, %s330
    %p337 = scmp.eq.s32.totalorder %s28, 1
    %p338 = por %p336, %p337
    %p339 = scmp.ne.s32.totalorder %s330, %s331
    %p340 = scmp.eq.s32.totalorder %s28, 0
    %p341 = por %p339, %p340
    %p342 = scmp.ne.s32.totalorder %s330, %s331
    %p343 = scmp.eq.s32.totalorder %s29, 1
    %p344 = por %p342, %p343
    %p346 = scmp.ne.s32.totalorder %s331, %s345
    %p347 = scmp.eq.s32.totalorder %s29, 0
    %p348 = por %p346, %p347
    %s350 = sadd.s32 %s349, 1
    %p353 = scmp.eq.s32.totalorder %s23, 1
    %p354 = scmp.ne.s32.totalorder %s349, %s351
    %p355 = scmp.eq.s32.totalorder %s23, 0
    %p356 = por %p354, %p355
    %p357 = scmp.ne.s32.totalorder %s349, %s351
    %p358 = scmp.eq.s32.totalorder %s28, 1
    %p359 = por %p357, %p358
    %p360 = scmp.ne.s32.totalorder %s351, %s352
    %p361 = scmp.eq.s32.totalorder %s28, 0
    %p362 = por %p360, %p361
    %p363 = scmp.ne.s32.totalorder %s351, %s352
    %p364 = scmp.eq.s32.totalorder %s29, 1
    %p365 = por %p363, %p364
    %p367 = scmp.ne.s32.totalorder %s352, %s366
    %p368 = scmp.eq.s32.totalorder %s29, 0
    %p369 = por %p367, %p368
    %s371 = sadd.s32 %s370, 1
    %p374 = scmp.eq.s32.totalorder %s23, 1
    %p375 = scmp.ne.s32.totalorder %s370, %s372
    %p376 = scmp.eq.s32.totalorder %s23, 0
    %p377 = por %p375, %p376
    %p378 = scmp.ne.s32.totalorder %s370, %s372
    %p379 = scmp.eq.s32.totalorder %s28, 1
    %p380 = por %p378, %p379
    %p381 = scmp.ne.s32.totalorder %s372, %s373
    %p382 = scmp.eq.s32.totalorder %s28, 0
    %p383 = por %p381, %p382
    %p384 = scmp.ne.s32.totalorder %s372, %s373
    %p385 = scmp.eq.s32.totalorder %s29, 1
    %p386 = por %p384, %p385
    %p388 = scmp.ne.s32.totalorder %s373, %s387
    %p389 = scmp.eq.s32.totalorder %s29, 0
    %p390 = por %p388, %p389
    %s392 = sadd.s32 %s391, 1
    %p395 = scmp.eq.s32.totalorder %s23, 1
    %p396 = scmp.ne.s32.totalorder %s391, %s393
    %p397 = scmp.eq.s32.totalorder %s23, 0
    %p398 = por %p396, %p397
    %p399 = scmp.ne.s32.totalorder %s391, %s393
    %p400 = scmp.eq.s32.totalorder %s28, 1
    %p401 = por %p399, %p400
    %p402 = scmp.ne.s32.totalorder %s393, %s394
    %p403 = scmp.eq.s32.totalorder %s28, 0
    %p404 = por %p402, %p403
    %p405 = scmp.ne.s32.totalorder %s393, %s394
    %p406 = scmp.eq.s32.totalorder %s29, 1
    %p407 = por %p405, %p406
    %p409 = scmp.ne.s32.totalorder %s394, %s408
    %p410 = scmp.eq.s32.totalorder %s29, 0
    %p411 = por %p409, %p410
    %s412 = ssub.s32 %s30, %s42
    %s413 = ssub.s32 %s31, %s38
    %s414 = sor.u32 %s412, %s413
    %p415 = scmp.eq.s32.totalorder %s414, 0
    %s417 = sadd.s32 %s416, 1
    %s418 = scalar_select %p415, %s416, %s417
    %p421 = pneg %p415
    %p422 = scmp.eq.s32.totalorder %s23, 1
    %p423 = por %p421, %p422
    %p424 = scmp.ne.s32.totalorder %s416, %s419
    %p425 = scmp.eq.s32.totalorder %s23, 0
    %p426 = por %p424, %p425
    %p427 = scmp.ne.s32.totalorder %s416, %s419
    %p428 = scmp.eq.s32.totalorder %s28, 1
    %p429 = por %p427, %p428
    %p430 = scmp.ne.s32.totalorder %s419, %s420
    %p431 = scmp.eq.s32.totalorder %s28, 0
    %p432 = por %p430, %p431
    %p433 = scmp.ne.s32.totalorder %s419, %s420
    %p434 = scmp.eq.s32.totalorder %s29, 1
    %p435 = por %p433, %p434
    %p437 = scmp.ne.s32.totalorder %s420, %s436
    %p438 = scmp.eq.s32.totalorder %s29, 0
    %p439 = por %p437, %p438
    %p440 = scmp.le.s32.totalorder 1, %s23
    %p441 = scmp.lt.s32.totalorder %s23, 3
    %p442 = pnand %p440, %p441
    %p443 = pneg %p442
    // Predicated region
    $region9: #{fwd.4} parent=5 // pred_check
      _
    $region10: #{fwd.4} parent=5 // pred_check_branch
      %445 = sbr.rel (%p442) target = $region12
    $region11: #{fwd.4} parent=5 // pred_region
      %s446 = ssub.s32 %s23, 1
      // Predicated region
      $region13: #{fwd.4} parent=11 // pred_check
        %p447 = pneg %p110
      $region14: #{fwd.4} parent=11 // pred_check_branch
        %449 = sbr.rel (%p447) target = $region16
      $region15: #{fwd.4} parent=11 // pred_region
        _
      $region16: #{fwd.4} parent=11 // pred_fallthru
        _
      // Predicated region
      $region17: #{fwd.4} parent=11 // pred_check
        %p450 = pneg %p131
      $region18: #{fwd.4} parent=11 // pred_check_branch
        %452 = sbr.rel (%p450) target = $region20
      $region19: #{fwd.4} parent=11 // pred_region
        _
      $region20: #{fwd.4} parent=11 // pred_fallthru
        _
      // Predicated region
      $region21: #{fwd.4} parent=11 // pred_check
        %p453 = pneg %p152
      $region22: #{fwd.4} parent=11 // pred_check_branch
        %455 = sbr.rel (%p453) target = $region24
      $region23: #{fwd.4} parent=11 // pred_region
        _
      $region24: #{fwd.4} parent=11 // pred_fallthru
        _
      // Predicated region
      $region25: #{fwd.4} parent=11 // pred_check
        %p456 = pneg %p173
      $region26: #{fwd.4} parent=11 // pred_check_branch
        %458 = sbr.rel (%p456) target = $region28
      $region27: #{fwd.4} parent=11 // pred_region
        _
      $region28: #{fwd.4} parent=11 // pred_fallthru
        _
      // Predicated region
      $region29: #{fwd.4} parent=11 // pred_check
        %p459 = pneg %p194
      $region30: #{fwd.4} parent=11 // pred_check_branch
        %461 = sbr.rel (%p459) target = $region32
      $region31: #{fwd.4} parent=11 // pred_region
        _
      $region32: #{fwd.4} parent=11 // pred_fallthru
        _
      // Predicated region
      $region33: #{fwd.4} parent=11 // pred_check
        %p462 = pneg %p215
      $region34: #{fwd.4} parent=11 // pred_check_branch
        %464 = sbr.rel (%p462) target = $region36
      $region35: #{fwd.4} parent=11 // pred_region
        _
      $region36: #{fwd.4} parent=11 // pred_fallthru
        _
      // Predicated region
      $region37: #{fwd.4} parent=11 // pred_check
        %p465 = pneg %p236
      $region38: #{fwd.4} parent=11 // pred_check_branch
        %467 = sbr.rel (%p465) target = $region40
      $region39: #{fwd.4} parent=11 // pred_region
        _
      $region40: #{fwd.4} parent=11 // pred_fallthru
        _
      // Predicated region
      $region41: #{fwd.4} parent=11 // pred_check
        %p468 = pneg %p257
      $region42: #{fwd.4} parent=11 // pred_check_branch
        %470 = sbr.rel (%p468) target = $region44
      $region43: #{fwd.4} parent=11 // pred_region
        _
      $region44: #{fwd.4} parent=11 // pred_fallthru
        _
      // Predicated region
      $region45: #{fwd.4} parent=11 // pred_check
        %p471 = pneg %p278
      $region46: #{fwd.4} parent=11 // pred_check_branch
        %473 = sbr.rel (%p471) target = $region48
      $region47: #{fwd.4} parent=11 // pred_region
        _
      $region48: #{fwd.4} parent=11 // pred_fallthru
        _
      // Predicated region
      $region49: #{fwd.4} parent=11 // pred_check
        %p474 = pneg %p299
      $region50: #{fwd.4} parent=11 // pred_check_branch
        %476 = sbr.rel (%p474) target = $region52
      $region51: #{fwd.4} parent=11 // pred_region
        _
      $region52: #{fwd.4} parent=11 // pred_fallthru
        _
      // Predicated region
      $region53: #{fwd.4} parent=11 // pred_check
        %p477 = pneg %p320
      $region54: #{fwd.4} parent=11 // pred_check_branch
        %479 = sbr.rel (%p477) target = $region56
      $region55: #{fwd.4} parent=11 // pred_region
        _
      $region56: #{fwd.4} parent=11 // pred_fallthru
        _
      // Predicated region
      $region57: #{fwd.4} parent=11 // pred_check
        %p480 = pneg %p341
      $region58: #{fwd.4} parent=11 // pred_check_branch
        %482 = sbr.rel (%p480) target = $region60
      $region59: #{fwd.4} parent=11 // pred_region
        _
      $region60: #{fwd.4} parent=11 // pred_fallthru
        _
      // Predicated region
      $region61: #{fwd.4} parent=11 // pred_check
        %p483 = pneg %p362
      $region62: #{fwd.4} parent=11 // pred_check_branch
        %485 = sbr.rel (%p483) target = $region64
      $region63: #{fwd.4} parent=11 // pred_region
        _
      $region64: #{fwd.4} parent=11 // pred_fallthru
        _
      // Predicated region
      $region65: #{fwd.4} parent=11 // pred_check
        %p486 = pneg %p383
      $region66: #{fwd.4} parent=11 // pred_check_branch
        %488 = sbr.rel (%p486) target = $region68
      $region67: #{fwd.4} parent=11 // pred_region
        _
      $region68: #{fwd.4} parent=11 // pred_fallthru
        _
      // Predicated region
      $region69: #{fwd.4} parent=11 // pred_check
        %p489 = pneg %p404
      $region70: #{fwd.4} parent=11 // pred_check_branch
        %491 = sbr.rel (%p489) target = $region72
      $region71: #{fwd.4} parent=11 // pred_region
        _
      $region72: #{fwd.4} parent=11 // pred_fallthru
        _
    $region12: #{fwd.4} parent=5 // pred_fallthru
      _
    %p492 = scmp.lt.s32.totalorder %s23, 2
    // Predicated region
    $region73: #{fwd.4} parent=5 // pred_check
      %p493 = pneg %p492
    $region74: #{fwd.4} parent=5 // pred_check_branch
      %495 = sbr.rel (%p493) target = $region76
    $region75: #{fwd.4} parent=5 // pred_region
      // Predicated region
      $region77: #{fwd.4} parent=75 // pred_check
        %p496 = pneg %p57
      $region78: #{fwd.4} parent=75 // pred_check_branch
        %498 = sbr.rel (%p496) target = $region80
      $region79: #{fwd.4} parent=75 // pred_region
        %p499 = scmp.lt.s32.totalorder %s30, 1
        %s500 = scalar_select %p499, %s30, 1
        %p501 = scmp.lt.s32.totalorder %s31, 0
        %s502 = scalar_select %p501, %s31, 0
        %s503 = sadd.s32 %s502, %s500
        %s504 = smul.addr %s503, 8
        %s505 = scalar_lea.vmem %s0, %s504
      $region80: #{fwd.4} parent=75 // pred_fallthru
        _
      // Predicated region
      $region81: #{fwd.4} parent=75 // pred_check
        %p506 = pneg %p83
      $region82: #{fwd.4} parent=75 // pred_check_branch
        %508 = sbr.rel (%p506) target = $region84
      $region83: #{fwd.4} parent=75 // pred_region
        %p509 = scmp.lt.s32.totalorder %s30, 1
        %s510 = scalar_select %p509, %s30, 1
        %s511 = smul.addr %s510, 4
        %s512 = smul.addr %s511, 8
        %s513 = scalar_lea.vmem %s1, %s512
      $region84: #{fwd.4} parent=75 // pred_fallthru
        _
    $region76: #{fwd.4} parent=5 // pred_fallthru
      _
    %p514 = scmp.le.s32.totalorder 1, %s23
    %p515 = scmp.lt.s32.totalorder %s23, 3
    %p516 = pnand %p514, %p515
    %p517 = pneg %p516
    // Predicated region
    $region85: #{fwd.4} parent=5 // pred_check
      _
    $region86: #{fwd.4} parent=5 // pred_check_branch
      %519 = sbr.rel (%p516) target = $region88
    $region87: #{fwd.4} parent=5 // pred_region
      %s520 = ssub.s32 %s23, 1
      %p521 = scmp.lt.s32.totalorder %s32, 1
      %s522 = scalar_select %p521, %s32, 1
      %p523 = scmp.lt.s32.totalorder %s33, 0
      %s524 = scalar_select %p523, %s33, 0
      %s525 = sadd.s32 %s524, %s522
      %s526 = smul.addr %s525, 8
      %s527 = scalar_lea.vmem %s0, %s526
      %p528 = pneg %p63
      %p529 = pneg %p60
      %p530 = scmp.lt.s32.totalorder %s32, 1
      %s531 = scalar_select %p530, %s32, 1
      %s532 = smul.addr %s531, 4
      %s533 = smul.addr %s532, 8
      %s534 = scalar_lea.vmem %s1, %s533
      %p535 = pneg %p89
      %p536 = pneg %p86
      %p537 = pneg %p110
      %p538 = pneg %p107
      %p539 = pneg %p131
      %p540 = pneg %p128
      %p541 = pneg %p152
      %p542 = pneg %p149
      %p543 = pneg %p173
      %p544 = pneg %p170
      %p545 = pneg %p194
      %p546 = pneg %p191
      %p547 = pneg %p215
      %p548 = pneg %p212
      %p549 = pneg %p236
      %p550 = pneg %p233
      %p551 = pneg %p257
      %p552 = pneg %p254
      %p553 = pneg %p278
      %p554 = pneg %p275
      %p555 = pneg %p299
      %p556 = pneg %p296
      %p557 = pneg %p320
      %p558 = pneg %p317
      %p559 = pneg %p341
      %p560 = pneg %p338
      %p561 = pneg %p362
      %p562 = pneg %p359
      %p563 = pneg %p383
      %p564 = pneg %p380
      %p565 = pneg %p404
      %p566 = pneg %p401
      %p567 = pneg %p432
      %p568 = pneg %p429
      %p569 = scmp.lt.s32.totalorder %s32, 1
      %s570 = scalar_select %p569, %s32, 1
      %p571 = scmp.lt.s32.totalorder %s33, 0
      %s572 = scalar_select %p571, %s33, 0
      %s573 = sadd.s32 %s572, %s570
      %s574 = smul.addr %s573, 8
      %s575 = scalar_lea.vmem %s17, %s574
      %p576 = scmp.lt.s32.totalorder %s32, 1
      %s577 = scalar_select %p576, %s32, 1
      %p578 = scmp.lt.s32.totalorder %s33, 0
      %s579 = scalar_select %p578, %s33, 0
      %s580 = sadd.s32 %s579, %s577
      %s581 = smul.addr %s580, 8
      %s582 = scalar_lea.vmem %s0, %s581
      %p583 = scmp.lt.s32.totalorder %s32, 1
      %s584 = scalar_select %p583, %s32, 1
      %s585 = smul.addr %s584, 4
      %s586 = smul.addr %s585, 8
      %s587 = scalar_lea.vmem %s1, %s586
      %p588 = scmp.lt.s32.totalorder %s32, 1
      %s589 = scalar_select %p588, %s32, 1
      %p590 = scmp.lt.s32.totalorder %s33, 0
      %s591 = scalar_select %p590, %s33, 0
      %s592 = sadd.s32 %s591, %s589
      %s593 = smul.addr %s592, 8
      %s594 = scalar_lea.vmem %s17, %s593
      %v595 = vld [vmem:[%s582] sm:$0xff]
      %v596 = vld [vmem:[%s2] sm:$0xff]
      %v597 = vld [vmem:[%s2 + $0x8] sm:$0xff]
      %v598 = vld [vmem:[%s2 + $0x10] sm:$0xff]
      %v599 = vld [vmem:[%s2 + $0x18] sm:$0xff]
      %v600 = vld [vmem:[%s587] sm:$0xff]
      %v601 = vld [vmem:[%s587 + $0x8] sm:$0xff]
      %v602 = vld [vmem:[%s587 + $0x10] sm:$0xff]
      %v603 = vld [vmem:[%s587 + $0x18] sm:$0xff]
      %605 = vset.pattern.permute.xlu0 0
      %606 = vperm.xlu0 %605, %v600
      %v607 = vpop.permute.xlu0 %606
      %610 = vset.pattern.permute.xlu0 0
      %611 = vperm.xlu0 %610, %v601
      %v612 = vpop.permute.xlu0 %611
      %615 = vset.pattern.permute.xlu0 0
      %616 = vperm.xlu0 %615, %v602
      %v617 = vpop.permute.xlu0 %616
      %620 = vset.pattern.permute.xlu0 0
      %621 = vperm.xlu0 %620, %v603
      %v622 = vpop.permute.xlu0 %621
      %vm624 = vcmask 64512
      %v626 = vsel %vm624, %v596, 0
      %v629 = vsel %vm624, %v597, 0
      %v632 = vsel %vm624, %v598, 0
      %v635 = vsel %vm624, %v599, 0
      %637 = vmatprep.subr.mxu0 0.0
      %638 = vmatpush1.msra.mxu0 %v595
      %639 = vmatprep.subr.mxu0 0.0
      %640 = vmatpush1.msra.mxu0 0.0
      %641 = vmatprep.subr.mxu0 0.0
      %642 = vmatpush1.msra.mxu0 0.0
      %643 = vmatprep.subr.mxu0 0.0
      %644 = vmatpush1.msra.mxu0 0.0
      %645 = vmatprep.subr.mxu0 0.0
      %646 = vmatpush1.msra.mxu0 0.0
      %647 = vmatprep.subr.mxu0 0.0
      %648 = vmatpush1.msra.mxu0 0.0
      %649 = vmatprep.subr.mxu0 0.0
      %650 = vmatpush1.msra.mxu0 0.0
      %651 = vmatprep.subr.mxu0 0.0
      %652 = vmatpush1.msra.mxu0 0.0
      %653 = vmatprep.subr.mxu0 0.0
      %654 = vmatpush1.msra.mxu0 0.0
      %655 = vmatprep.subr.mxu0 0.0
      %656 = vmatpush1.msra.mxu0 0.0
      %657 = vmatprep.subr.mxu0 0.0
      %658 = vmatpush1.msra.mxu0 0.0
      %659 = vmatprep.subr.mxu0 0.0
      %660 = vmatpush1.msra.mxu0 0.0
      %661 = vmatprep.subr.mxu0 0.0
      %662 = vmatpush1.msra.mxu0 0.0
      %663 = vmatprep.subr.mxu0 0.0
      %664 = vmatpush1.msra.mxu0 0.0
      %665 = vmatprep.subr.mxu0 0.0
      %666 = vmatpush1.msra.mxu0 0.0
      %667 = vmatprep.subr.mxu0 0.0
      %668 = vmatpush1.msra.mxu0 0.0
      %669 = vmatprep.subr.mxu0 0.0
      %670 = vmatpush1.msra.mxu0 0.0
      %671 = vmatprep.subr.mxu0 0.0
      %672 = vmatpush1.msra.mxu0 0.0
      %673 = vmatprep.subr.mxu0 0.0
      %674 = vmatpush1.msra.mxu0 0.0
      %675 = vmatprep.subr.mxu0 0.0
      %676 = vmatpush1.msra.mxu0 0.0
      %677 = vmatprep.subr.mxu0 0.0
      %678 = vmatpush1.msra.mxu0 0.0
      %679 = vmatprep.subr.mxu0 0.0
      %680 = vmatpush1.msra.mxu0 0.0
      %681 = vmatprep.subr.mxu0 0.0
      %682 = vmatpush1.msra.mxu0 0.0
      %683 = vmatprep.subr.mxu0 0.0
      %684 = vmatpush1.msra.mxu0 0.0
      %685 = vmatprep.subr.mxu0 0.0
      %686 = vmatpush1.msra.mxu0 0.0
      %687 = vmatprep.subr.mxu0 0.0
      %688 = vmatpush1.msra.mxu0 0.0
      %689 = vmatprep.subr.mxu0 0.0
      %690 = vmatpush1.msra.mxu0 0.0
      %691 = vmatprep.subr.mxu0 0.0
      %692 = vmatpush1.msra.mxu0 0.0
      %693 = vmatprep.subr.mxu0 0.0
      %694 = vmatpush1.msra.mxu0 0.0
      %695 = vmatprep.subr.mxu0 0.0
      %696 = vmatpush1.msra.mxu0 0.0
      %697 = vmatprep.subr.mxu0 0.0
      %698 = vmatpush1.msra.mxu0 0.0
      %699 = vmatprep.subr.mxu0 0.0
      %700 = vmatpush1.msra.mxu0 0.0
      %701 = vmatprep.mubr.f32.mxu0 0.0
      %702 = vmatmul.mubr.f32.gmra.mrb[0].mxu0 %v626
      %v703 = vpop.f32.mrb[0].mxu0
      %v704 = vadd.f32 %v607, %v703
      %v705 = vpop.f32.mrb[0].mxu0
      %706 = vmatprep.mubr.f32.mxu0 0.0
      %707 = vmatmul.mubr.f32.gmra.mrb[0].mxu0 %v629
      %v708 = vpop.f32.mrb[0].mxu0
      %v709 = vadd.f32 %v612, %v708
      %v710 = vpop.f32.mrb[0].mxu0
      %711 = vmatprep.mubr.f32.mxu0 0.0
      %712 = vmatmul.mubr.f32.gmra.mrb[0].mxu0 %v632
      %v713 = vpop.f32.mrb[0].mxu0
      %v714 = vadd.f32 %v617, %v713
      %v715 = vpop.f32.mrb[0].mxu0
      %716 = vmatprep.mubr.f32.mxu0 0.0
      %717 = vmatmul.mubr.f32.gmra.mrb[0].mxu0 %v635
      %v718 = vpop.f32.mrb[0].mxu0
      %v719 = vadd.f32 %v622, %v718
      %v720 = vpop.f32.mrb[0].mxu0
      %721 = vdwg.mxu0
      %v722 = vmax.f32 %v704, 0.0
      %v723 = vmax.f32 %v709, 0.0
      %v724 = vmax.f32 %v714, 0.0
      %v725 = vmax.f32 %v719, 0.0
      %v726 = vld [vmem:[%s3] sm:$0xff]
      %v727 = vld [vmem:[%s3 + $0x8] sm:$0xff]
      %v728 = vld [vmem:[%s4] sm:$0xff]
      %v729 = vld [vmem:[%s4 + $0x8] sm:$0xff]
      %731 = vset.pattern.permute.xlu0 0
      %732 = vperm.xlu0 %731, %v728
      %v733 = vpop.permute.xlu0 %732
      %736 = vset.pattern.permute.xlu0 0
      %737 = vperm.xlu0 %736, %v729
      %v738 = vpop.permute.xlu0 %737
      %vm740 = vcmask 261120
      %v742 = vsel %vm740, %v726, 0
      %v745 = vsel %vm740, %v727, 0
      %747 = vmatprep.subr.mxu0 0.0
      %748 = vmatpush1.msra.mxu0 %v722
      %749 = vmatprep.subr.mxu0 0.0
      %750 = vmatpush1.msra.mxu0 %v723
      %751 = vmatprep.subr.mxu0 0.0
      %752 = vmatpush1.msra.mxu0 %v724
      %753 = vmatprep.subr.mxu0 0.0
      %754 = vmatpush1.msra.mxu0 %v725
      %755 = vmatprep.subr.mxu0 0.0
      %756 = vmatpush1.msra.mxu0 0.0
      %757 = vmatprep.subr.mxu0 0.0
      %758 = vmatpush1.msra.mxu0 0.0
      %759 = vmatprep.subr.mxu0 0.0
      %760 = vmatpush1.msra.mxu0 0.0
      %761 = vmatprep.subr.mxu0 0.0
      %762 = vmatpush1.msra.mxu0 0.0
      %763 = vmatprep.subr.mxu0 0.0
      %764 = vmatpush1.msra.mxu0 0.0
      %765 = vmatprep.subr.mxu0 0.0
      %766 = vmatpush1.msra.mxu0 0.0
      %767 = vmatprep.subr.mxu0 0.0
      %768 = vmatpush1.msra.mxu0 0.0
      %769 = vmatprep.subr.mxu0 0.0
      %770 = vmatpush1.msra.mxu0 0.0
      %771 = vmatprep.subr.mxu0 0.0
      %772 = vmatpush1.msra.mxu0 0.0
      %773 = vmatprep.subr.mxu0 0.0
      %774 = vmatpush1.msra.mxu0 0.0
      %775 = vmatprep.subr.mxu0 0.0
      %776 = vmatpush1.msra.mxu0 0.0
      %777 = vmatprep.subr.mxu0 0.0
      %778 = vmatpush1.msra.mxu0 0.0
      %779 = vmatprep.subr.mxu0 0.0
      %780 = vmatpush1.msra.mxu0 0.0
      %781 = vmatprep.subr.mxu0 0.0
      %782 = vmatpush1.msra.mxu0 0.0
      %783 = vmatprep.subr.mxu0 0.0
      %784 = vmatpush1.msra.mxu0 0.0
      %785 = vmatprep.subr.mxu0 0.0
      %786 = vmatpush1.msra.mxu0 0.0
      %787 = vmatprep.subr.mxu0 0.0
      %788 = vmatpush1.msra.mxu0 0.0
      %789 = vmatprep.subr.mxu0 0.0
      %790 = vmatpush1.msra.mxu0 0.0
      %791 = vmatprep.subr.mxu0 0.0
      %792 = vmatpush1.msra.mxu0 0.0
      %793 = vmatprep.subr.mxu0 0.0
      %794 = vmatpush1.msra.mxu0 0.0
      %795 = vmatprep.subr.mxu0 0.0
      %796 = vmatpush1.msra.mxu0 0.0
      %797 = vmatprep.subr.mxu0 0.0
      %798 = vmatpush1.msra.mxu0 0.0
      %799 = vmatprep.subr.mxu0 0.0
      %800 = vmatpush1.msra.mxu0 0.0
      %801 = vmatprep.subr.mxu0 0.0
      %802 = vmatpush1.msra.mxu0 0.0
      %803 = vmatprep.subr.mxu0 0.0
      %804 = vmatpush1.msra.mxu0 0.0
      %805 = vmatprep.subr.mxu0 0.0
      %806 = vmatpush1.msra.mxu0 0.0
      %807 = vmatprep.subr.mxu0 0.0
      %808 = vmatpush1.msra.mxu0 0.0
      %809 = vmatprep.subr.mxu0 0.0
      %810 = vmatpush1.msra.mxu0 0.0
      %811 = vmatprep.mubr.f32.mxu0 0.0
      %812 = vmatmul.mubr.f32.gmra.mrb[0].mxu0 %v742
      %v813 = vpop.f32.mrb[0].mxu0
      %v814 = vadd.f32 %v733, %v813
      %v815 = vpop.f32.mrb[0].mxu0
      %816 = vmatprep.mubr.f32.mxu0 0.0
      %817 = vmatmul.mubr.f32.gmra.mrb[0].mxu0 %v745
      %v818 = vpop.f32.mrb[0].mxu0
      %v819 = vadd.f32 %v738, %v818
      %v820 = vpop.f32.mrb[0].mxu0
      %821 = vdwg.mxu0
      %v822 = vld [vmem:[%s5] sm:$0xff]
      %v823 = vld [vmem:[%s5 + $0x8] sm:$0xff]
      %v824 = vld [vmem:[%s6] sm:$0xff]
      %v825 = vld [vmem:[%s6 + $0x8] sm:$0xff]
      %827 = vset.pattern.permute.xlu0 0
      %828 = vperm.xlu0 %827, %v824
      %v829 = vpop.permute.xlu0 %828
      %832 = vset.pattern.permute.xlu0 0
      %833 = vperm.xlu0 %832, %v825
      %v834 = vpop.permute.xlu0 %833
      %vm836 = vcmask 130048
      %v838 = vsel %vm836, %v822, 0
      %v841 = vsel %vm836, %v823, 0
      %843 = vmatprep.subr.mxu0 0.0
      %844 = vmatpush1.msra.mxu0 %v814
      %845 = vmatprep.subr.mxu0 0.0
      %846 = vmatpush1.msra.mxu0 %v819
      %847 = vmatprep.subr.mxu0 0.0
      %848 = vmatpush1.msra.mxu0 0.0
      %849 = vmatprep.subr.mxu0 0.0
      %850 = vmatpush1.msra.mxu0 0.0
      %851 = vmatprep.subr.mxu0 0.0
      %852 = vmatpush1.msra.mxu0 0.0
      %853 = vmatprep.subr.mxu0 0.0
      %854 = vmatpush1.msra.mxu0 0.0
      %855 = vmatprep.subr.mxu0 0.0
      %856 = vmatpush1.msra.mxu0 0.0
      %857 = vmatprep.subr.mxu0 0.0
      %858 = vmatpush1.msra.mxu0 0.0
      %859 = vmatprep.subr.mxu0 0.0
      %860 = vmatpush1.msra.mxu0 0.0
      %861 = vmatprep.subr.mxu0 0.0
      %862 = vmatpush1.msra.mxu0 0.0
      %863 = vmatprep.subr.mxu0 0.0
      %864 = vmatpush1.msra.mxu0 0.0
      %865 = vmatprep.subr.mxu0 0.0
      %866 = vmatpush1.msra.mxu0 0.0
      %867 = vmatprep.subr.mxu0 0.0
      %868 = vmatpush1.msra.mxu0 0.0
      %869 = vmatprep.subr.mxu0 0.0
      %870 = vmatpush1.msra.mxu0 0.0
      %871 = vmatprep.subr.mxu0 0.0
      %872 = vmatpush1.msra.mxu0 0.0
      %873 = vmatprep.subr.mxu0 0.0
      %874 = vmatpush1.msra.mxu0 0.0
      %875 = vmatprep.subr.mxu0 0.0
      %876 = vmatpush1.msra.mxu0 0.0
      %877 = vmatprep.subr.mxu0 0.0
      %878 = vmatpush1.msra.mxu0 0.0
      %879 = vmatprep.subr.mxu0 0.0
      %880 = vmatpush1.msra.mxu0 0.0
      %881 = vmatprep.subr.mxu0 0.0
      %882 = vmatpush1.msra.mxu0 0.0
      %883 = vmatprep.subr.mxu0 0.0
      %884 = vmatpush1.msra.mxu0 0.0
      %885 = vmatprep.subr.mxu0 0.0
      %886 = vmatpush1.msra.mxu0 0.0
      %887 = vmatprep.subr.mxu0 0.0
      %888 = vmatpush1.msra.mxu0 0.0
      %889 = vmatprep.subr.mxu0 0.0
      %890 = vmatpush1.msra.mxu0 0.0
      %891 = vmatprep.subr.mxu0 0.0
      %892 = vmatpush1.msra.mxu0 0.0
      %893 = vmatprep.subr.mxu0 0.0
      %894 = vmatpush1.msra.mxu0 0.0
      %895 = vmatprep.subr.mxu0 0.0
      %896 = vmatpush1.msra.mxu0 0.0
      %897 = vmatprep.subr.mxu0 0.0
      %898 = vmatpush1.msra.mxu0 0.0
      %899 = vmatprep.subr.mxu0 0.0
      %900 = vmatpush1.msra.mxu0 0.0
      %901 = vmatprep.subr.mxu0 0.0
      %902 = vmatpush1.msra.mxu0 0.0
      %903 = vmatprep.subr.mxu0 0.0
      %904 = vmatpush1.msra.mxu0 0.0
      %905 = vmatprep.subr.mxu0 0.0
      %906 = vmatpush1.msra.mxu0 0.0
      %907 = vmatprep.mubr.f32.mxu0 0.0
      %908 = vmatmul.mubr.f32.gmra.mrb[0].mxu0 %v838
      %v909 = vpop.f32.mrb[0].mxu0
      %v910 = vadd.f32 %v829, %v909
      %v911 = vpop.f32.mrb[0].mxu0
      %912 = vmatprep.mubr.f32.mxu0 0.0
      %913 = vmatmul.mubr.f32.gmra.mrb[0].mxu0 %v841
      %v914 = vpop.f32.mrb[0].mxu0
      %v915 = vadd.f32 %v834, %v914
      %v916 = vpop.f32.mrb[0].mxu0
      %917 = vdwg.mxu0
      %v918 = vmax.f32 %v910, 0.0
      %v919 = vmax.f32 %v915, 0.0
      %v920 = vld [vmem:[%s7] sm:$0xff]
      %v921 = vld [vmem:[%s7 + $0x8] sm:$0xff]
      %v922 = vld [vmem:[%s7 + $0x10] sm:$0xff]
      %v923 = vld [vmem:[%s7 + $0x18] sm:$0xff]
      %v924 = vld [vmem:[%s8] sm:$0xff]
      %v925 = vld [vmem:[%s8 + $0x8] sm:$0xff]
      %v926 = vld [vmem:[%s8 + $0x10] sm:$0xff]
      %v927 = vld [vmem:[%s8 + $0x18] sm:$0xff]
      %929 = vset.pattern.permute.xlu0 0
      %930 = vperm.xlu0 %929, %v924
      %v931 = vpop.permute.xlu0 %930
      %934 = vset.pattern.permute.xlu0 0
      %935 = vperm.xlu0 %934, %v925
      %v936 = vpop.permute.xlu0 %935
      %939 = vset.pattern.permute.xlu0 0
      %940 = vperm.xlu0 %939, %v926
      %v941 = vpop.permute.xlu0 %940
      %944 = vset.pattern.permute.xlu0 0
      %945 = vperm.xlu0 %944, %v927
      %v946 = vpop.permute.xlu0 %945
      %v949 = vsel %vm836, %v920, 0
      %v952 = vsel %vm836, %v921, 0
      %v955 = vsel %vm836, %v922, 0
      %v958 = vsel %vm836, %v923, 0
      %960 = vmatprep.subr.mxu0 0.0
      %961 = vmatpush1.msra.mxu0 %v918
      %962 = vmatprep.subr.mxu0 0.0
      %963 = vmatpush1.msra.mxu0 %v919
      %964 = vmatprep.subr.mxu0 0.0
      %965 = vmatpush1.msra.mxu0 0.0
      %966 = vmatprep.subr.mxu0 0.0
      %967 = vmatpush1.msra.mxu0 0.0
      %968 = vmatprep.subr.mxu0 0.0
      %969 = vmatpush1.msra.mxu0 0.0
      %970 = vmatprep.subr.mxu0 0.0
      %971 = vmatpush1.msra.mxu0 0.0
      %972 = vmatprep.subr.mxu0 0.0
      %973 = vmatpush1.msra.mxu0 0.0
      %974 = vmatprep.subr.mxu0 0.0
      %975 = vmatpush1.msra.mxu0 0.0
      %976 = vmatprep.subr.mxu0 0.0
      %977 = vmatpush1.msra.mxu0 0.0
      %978 = vmatprep.subr.mxu0 0.0
      %979 = vmatpush1.msra.mxu0 0.0
      %980 = vmatprep.subr.mxu0 0.0
      %981 = vmatpush1.msra.mxu0 0.0
      %982 = vmatprep.subr.mxu0 0.0
      %983 = vmatpush1.msra.mxu0 0.0
      %984 = vmatprep.subr.mxu0 0.0
      %985 = vmatpush1.msra.mxu0 0.0
      %986 = vmatprep.subr.mxu0 0.0
      %987 = vmatpush1.msra.mxu0 0.0
      %988 = vmatprep.subr.mxu0 0.0
      %989 = vmatpush1.msra.mxu0 0.0
      %990 = vmatprep.subr.mxu0 0.0
      %991 = vmatpush1.msra.mxu0 0.0
      %992 = vmatprep.subr.mxu0 0.0
      %993 = vmatpush1.msra.mxu0 0.0
      %994 = vmatprep.subr.mxu0 0.0
      %995 = vmatpush1.msra.mxu0 0.0
      %996 = vmatprep.subr.mxu0 0.0
      %997 = vmatpush1.msra.mxu0 0.0
      %998 = vmatprep.subr.mxu0 0.0
      %999 = vmatpush1.msra.mxu0 0.0
      %1000 = vmatprep.subr.mxu0 0.0
      %1001 = vmatpush1.msra.mxu0 0.0
      %1002 = vmatprep.subr.mxu0 0.0
      %1003 = vmatpush1.msra.mxu0 0.0
      %1004 = vmatprep.subr.mxu0 0.0
      %1005 = vmatpush1.msra.mxu0 0.0
      %1006 = vmatprep.subr.mxu0 0.0
      %1007 = vmatpush1.msra.mxu0 0.0
      %1008 = vmatprep.subr.mxu0 0.0
      %1009 = vmatpush1.msra.mxu0 0.0
      %1010 = vmatprep.subr.mxu0 0.0
      %1011 = vmatpush1.msra.mxu0 0.0
      %1012 = vmatprep.subr.mxu0 0.0
      %1013 = vmatpush1.msra.mxu0 0.0
      %1014 = vmatprep.subr.mxu0 0.0
      %1015 = vmatpush1.msra.mxu0 0.0
      %1016 = vmatprep.subr.mxu0 0.0
      %1017 = vmatpush1.msra.mxu0 0.0
      %1018 = vmatprep.subr.mxu0 0.0
      %1019 = vmatpush1.msra.mxu0 0.0
      %1020 = vmatprep.subr.mxu0 0.0
      %1021 = vmatpush1.msra.mxu0 0.0
      %1022 = vmatprep.subr.mxu0 0.0
      %1023 = vmatpush1.msra.mxu0 0.0
      %1024 = vmatprep.mubr.f32.mxu0 0.0
      %1025 = vmatmul.mubr.f32.gmra.mrb[0].mxu0 %v949
      %v1026 = vpop.f32.mrb[0].mxu0
      %v1027 = vadd.f32 %v931, %v1026
      %v1028 = vpop.f32.mrb[0].mxu0
      %1029 = vmatprep.mubr.f32.mxu0 0.0
      %1030 = vmatmul.mubr.f32.gmra.mrb[0].mxu0 %v952
      %v1031 = vpop.f32.mrb[0].mxu0
      %v1032 = vadd.f32 %v936, %v1031
      %v1033 = vpop.f32.mrb[0].mxu0
      %1034 = vmatprep.mubr.f32.mxu0 0.0
      %1035 = vmatmul.mubr.f32.gmra.mrb[0].mxu0 %v955
      %v1036 = vpop.f32.mrb[0].mxu0
      %v1037 = vadd.f32 %v941, %v1036
      %v1038 = vpop.f32.mrb[0].mxu0
      %1039 = vmatprep.mubr.f32.mxu0 0.0
      %1040 = vmatmul.mubr.f32.gmra.mrb[0].mxu0 %v958
      %v1041 = vpop.f32.mrb[0].mxu0
      %v1042 = vadd.f32 %v946, %v1041
      %v1043 = vpop.f32.mrb[0].mxu0
      %1044 = vdwg.mxu0
      %v1045 = vmax.f32 %v1027, 0.0
      %v1046 = vmax.f32 %v1032, 0.0
      %v1047 = vmax.f32 %v1037, 0.0
      %v1048 = vmax.f32 %v1042, 0.0
      %v1049 = vld [vmem:[%s9] sm:$0xff]
      %v1050 = vld [vmem:[%s9 + $0x8] sm:$0xff]
      %v1051 = vld [vmem:[%s10] sm:$0xff]
      %v1052 = vld [vmem:[%s10 + $0x8] sm:$0xff]
      %1054 = vset.pattern.permute.xlu0 0
      %1055 = vperm.xlu0 %1054, %v1051
      %v1056 = vpop.permute.xlu0 %1055
      %1059 = vset.pattern.permute.xlu0 0
      %1060 = vperm.xlu0 %1059, %v1052
      %v1061 = vpop.permute.xlu0 %1060
      %v1064 = vsel %vm740, %v1049, 0
      %v1067 = vsel %vm740, %v1050, 0
      %1069 = vmatprep.subr.mxu0 0.0
      %1070 = vmatpush1.msra.mxu0 %v1045
      %1071 = vmatprep.subr.mxu0 0.0
      %1072 = vmatpush1.msra.mxu0 %v1046
      %1073 = vmatprep.subr.mxu0 0.0
      %1074 = vmatpush1.msra.mxu0 %v1047
      %1075 = vmatprep.subr.mxu0 0.0
      %1076 = vmatpush1.msra.mxu0 %v1048
      %1077 = vmatprep.subr.mxu0 0.0
      %1078 = vmatpush1.msra.mxu0 0.0
      %1079 = vmatprep.subr.mxu0 0.0
      %1080 = vmatpush1.msra.mxu0 0.0
      %1081 = vmatprep.subr.mxu0 0.0
      %1082 = vmatpush1.msra.mxu0 0.0
      %1083 = vmatprep.subr.mxu0 0.0
      %1084 = vmatpush1.msra.mxu0 0.0
      %1085 = vmatprep.subr.mxu0 0.0
      %1086 = vmatpush1.msra.mxu0 0.0
      %1087 = vmatprep.subr.mxu0 0.0
      %1088 = vmatpush1.msra.mxu0 0.0
      %1089 = vmatprep.subr.mxu0 0.0
      %1090 = vmatpush1.msra.mxu0 0.0
      %1091 = vmatprep.subr.mxu0 0.0
      %1092 = vmatpush1.msra.mxu0 0.0
      %1093 = vmatprep.subr.mxu0 0.0
      %1094 = vmatpush1.msra.mxu0 0.0
      %1095 = vmatprep.subr.mxu0 0.0
      %1096 = vmatpush1.msra.mxu0 0.0
      %1097 = vmatprep.subr.mxu0 0.0
      %1098 = vmatpush1.msra.mxu0 0.0
      %1099 = vmatprep.subr.mxu0 0.0
      %1100 = vmatpush1.msra.mxu0 0.0
      %1101 = vmatprep.subr.mxu0 0.0
      %1102 = vmatpush1.msra.mxu0 0.0
      %1103 = vmatprep.subr.mxu0 0.0
      %1104 = vmatpush1.msra.mxu0 0.0
      %1105 = vmatprep.subr.mxu0 0.0
      %1106 = vmatpush1.msra.mxu0 0.0
      %1107 = vmatprep.subr.mxu0 0.0
      %1108 = vmatpush1.msra.mxu0 0.0
      %1109 = vmatprep.subr.mxu0 0.0
      %1110 = vmatpush1.msra.mxu0 0.0
      %1111 = vmatprep.subr.mxu0 0.0
      %1112 = vmatpush1.msra.mxu0 0.0
      %1113 = vmatprep.subr.mxu0 0.0
      %1114 = vmatpush1.msra.mxu0 0.0
      %1115 = vmatprep.subr.mxu0 0.0
      %1116 = vmatpush1.msra.mxu0 0.0
      %1117 = vmatprep.subr.mxu0 0.0
      %1118 = vmatpush1.msra.mxu0 0.0
      %1119 = vmatprep.subr.mxu0 0.0
      %1120 = vmatpush1.msra.mxu0 0.0
      %1121 = vmatprep.subr.mxu0 0.0
      %1122 = vmatpush1.msra.mxu0 0.0
      %1123 = vmatprep.subr.mxu0 0.0
      %1124 = vmatpush1.msra.mxu0 0.0
      %1125 = vmatprep.subr.mxu0 0.0
      %1126 = vmatpush1.msra.mxu0 0.0
      %1127 = vmatprep.subr.mxu0 0.0
      %1128 = vmatpush1.msra.mxu0 0.0
      %1129 = vmatprep.subr.mxu0 0.0
      %1130 = vmatpush1.msra.mxu0 0.0
      %1131 = vmatprep.subr.mxu0 0.0
      %1132 = vmatpush1.msra.mxu0 0.0
      %1133 = vmatprep.mubr.f32.mxu0 0.0
      %1134 = vmatmul.mubr.f32.gmra.mrb[0].mxu0 %v1064
      %v1135 = vpop.f32.mrb[0].mxu0
      %v1136 = vadd.f32 %v1056, %v1135
      %v1137 = vpop.f32.mrb[0].mxu0
      %1138 = vmatprep.mubr.f32.mxu0 0.0
      %1139 = vmatmul.mubr.f32.gmra.mrb[0].mxu0 %v1067
      %v1140 = vpop.f32.mrb[0].mxu0
      %v1141 = vadd.f32 %v1061, %v1140
      %v1142 = vpop.f32.mrb[0].mxu0
      %1143 = vdwg.mxu0
      %v1144 = vmax.f32 %v1136, 0.0
      %v1145 = vmax.f32 %v1141, 0.0
      %v1146 = vadd.f32 %v814, %v1144
      %v1147 = vadd.f32 %v819, %v1145
      %v1148 = vld [vmem:[%s11] sm:$0xff]
      %v1149 = vld [vmem:[%s11 + $0x8] sm:$0xff]
      %v1150 = vld [vmem:[%s11 + $0x10] sm:$0xff]
      %v1151 = vld [vmem:[%s11 + $0x18] sm:$0xff]
      %v1152 = vld [vmem:[%s12] sm:$0xff]
      %v1153 = vld [vmem:[%s12 + $0x8] sm:$0xff]
      %v1154 = vld [vmem:[%s12 + $0x10] sm:$0xff]
      %v1155 = vld [vmem:[%s12 + $0x18] sm:$0xff]
      %1157 = vset.pattern.permute.xlu0 0
      %1158 = vperm.xlu0 %1157, %v1152
      %v1159 = vpop.permute.xlu0 %1158
      %1162 = vset.pattern.permute.xlu0 0
      %1163 = vperm.xlu0 %1162, %v1153
      %v1164 = vpop.permute.xlu0 %1163
      %1167 = vset.pattern.permute.xlu0 0
      %1168 = vperm.xlu0 %1167, %v1154
      %v1169 = vpop.permute.xlu0 %1168
      %1172 = vset.pattern.permute.xlu0 0
      %1173 = vperm.xlu0 %1172, %v1155
      %v1174 = vpop.permute.xlu0 %1173
      %v1177 = vsel %vm836, %v1148, 0
      %v1180 = vsel %vm836, %v1149, 0
      %v1183 = vsel %vm836, %v1150, 0
      %v1186 = vsel %vm836, %v1151, 0
      %1188 = vmatprep.subr.mxu0 0.0
      %1189 = vmatpush1.msra.mxu0 %v1146
      %1190 = vmatprep.subr.mxu0 0.0
      %1191 = vmatpush1.msra.mxu0 %v1147
      %1192 = vmatprep.subr.mxu0 0.0
      %1193 = vmatpush1.msra.mxu0 0.0
      %1194 = vmatprep.subr.mxu0 0.0
      %1195 = vmatpush1.msra.mxu0 0.0
      %1196 = vmatprep.subr.mxu0 0.0
      %1197 = vmatpush1.msra.mxu0 0.0
      %1198 = vmatprep.subr.mxu0 0.0
      %1199 = vmatpush1.msra.mxu0 0.0
      %1200 = vmatprep.subr.mxu0 0.0
      %1201 = vmatpush1.msra.mxu0 0.0
      %1202 = vmatprep.subr.mxu0 0.0
      %1203 = vmatpush1.msra.mxu0 0.0
      %1204 = vmatprep.subr.mxu0 0.0
      %1205 = vmatpush1.msra.mxu0 0.0
      %1206 = vmatprep.subr.mxu0 0.0
      %1207 = vmatpush1.msra.mxu0 0.0
      %1208 = vmatprep.subr.mxu0 0.0
      %1209 = vmatpush1.msra.mxu0 0.0
      %1210 = vmatprep.subr.mxu0 0.0
      %1211 = vmatpush1.msra.mxu0 0.0
      %1212 = vmatprep.subr.mxu0 0.0
      %1213 = vmatpush1.msra.mxu0 0.0
      %1214 = vmatprep.subr.mxu0 0.0
      %1215 = vmatpush1.msra.mxu0 0.0
      %1216 = vmatprep.subr.mxu0 0.0
      %1217 = vmatpush1.msra.mxu0 0.0
      %1218 = vmatprep.subr.mxu0 0.0
      %1219 = vmatpush1.msra.mxu0 0.0
      %1220 = vmatprep.subr.mxu0 0.0
      %1221 = vmatpush1.msra.mxu0 0.0
      %1222 = vmatprep.subr.mxu0 0.0
      %1223 = vmatpush1.msra.mxu0 0.0
      %1224 = vmatprep.subr.mxu0 0.0
      %1225 = vmatpush1.msra.mxu0 0.0
      %1226 = vmatprep.subr.mxu0 0.0
      %1227 = vmatpush1.msra.mxu0 0.0
      %1228 = vmatprep.subr.mxu0 0.0
      %1229 = vmatpush1.msra.mxu0 0.0
      %1230 = vmatprep.subr.mxu0 0.0
      %1231 = vmatpush1.msra.mxu0 0.0
      %1232 = vmatprep.subr.mxu0 0.0
      %1233 = vmatpush1.msra.mxu0 0.0
      %1234 = vmatprep.subr.mxu0 0.0
      %1235 = vmatpush1.msra.mxu0 0.0
      %1236 = vmatprep.subr.mxu0 0.0
      %1237 = vmatpush1.msra.mxu0 0.0
      %1238 = vmatprep.subr.mxu0 0.0
      %1239 = vmatpush1.msra.mxu0 0.0
      %1240 = vmatprep.subr.mxu0 0.0
      %1241 = vmatpush1.msra.mxu0 0.0
      %1242 = vmatprep.subr.mxu0 0.0
      %1243 = vmatpush1.msra.mxu0 0.0
      %1244 = vmatprep.subr.mxu0 0.0
      %1245 = vmatpush1.msra.mxu0 0.0
      %1246 = vmatprep.subr.mxu0 0.0
      %1247 = vmatpush1.msra.mxu0 0.0
      %1248 = vmatprep.subr.mxu0 0.0
      %1249 = vmatpush1.msra.mxu0 0.0
      %1250 = vmatprep.subr.mxu0 0.0
      %1251 = vmatpush1.msra.mxu0 0.0
      %1252 = vmatprep.mubr.f32.mxu0 0.0
      %1253 = vmatmul.mubr.f32.gmra.mrb[0].mxu0 %v1177
      %v1254 = vpop.f32.mrb[0].mxu0
      %v1255 = vadd.f32 %v1159, %v1254
      %v1256 = vpop.f32.mrb[0].mxu0
      %1257 = vmatprep.mubr.f32.mxu0 0.0
      %1258 = vmatmul.mubr.f32.gmra.mrb[0].mxu0 %v1180
      %v1259 = vpop.f32.mrb[0].mxu0
      %v1260 = vadd.f32 %v1164, %v1259
      %v1261 = vpop.f32.mrb[0].mxu0
      %1262 = vmatprep.mubr.f32.mxu0 0.0
      %1263 = vmatmul.mubr.f32.gmra.mrb[0].mxu0 %v1183
      %v1264 = vpop.f32.mrb[0].mxu0
      %v1265 = vadd.f32 %v1169, %v1264
      %v1266 = vpop.f32.mrb[0].mxu0
      %1267 = vmatprep.mubr.f32.mxu0 0.0
      %1268 = vmatmul.mubr.f32.gmra.mrb[0].mxu0 %v1186
      %v1269 = vpop.f32.mrb[0].mxu0
      %v1270 = vadd.f32 %v1174, %v1269
      %v1271 = vpop.f32.mrb[0].mxu0
      %1272 = vdwg.mxu0
      %v1273 = vmax.f32 %v1255, 0.0
      %v1274 = vmax.f32 %v1260, 0.0
      %v1275 = vmax.f32 %v1265, 0.0
      %v1276 = vmax.f32 %v1270, 0.0
      %v1277 = vld [vmem:[%s13] sm:$0xff]
      %v1278 = vld [vmem:[%s13 + $0x8] sm:$0xff]
      %v1279 = vld [vmem:[%s13 + $0x10] sm:$0xff]
      %v1280 = vld [vmem:[%s13 + $0x18] sm:$0xff]
      %v1281 = vld [vmem:[%s14] sm:$0xff]
      %v1282 = vld [vmem:[%s14 + $0x8] sm:$0xff]
      %v1283 = vld [vmem:[%s14 + $0x10] sm:$0xff]
      %v1284 = vld [vmem:[%s14 + $0x18] sm:$0xff]
      %1286 = vset.pattern.permute.xlu0 0
      %1287 = vperm.xlu0 %1286, %v1281
      %v1288 = vpop.permute.xlu0 %1287
      %1291 = vset.pattern.permute.xlu0 0
      %1292 = vperm.xlu0 %1291, %v1282
      %v1293 = vpop.permute.xlu0 %1292
      %1296 = vset.pattern.permute.xlu0 0
      %1297 = vperm.xlu0 %1296, %v1283
      %v1298 = vpop.permute.xlu0 %1297
      %1301 = vset.pattern.permute.xlu0 0
      %1302 = vperm.xlu0 %1301, %v1284
      %v1303 = vpop.permute.xlu0 %1302
      %v1306 = vsel %vm740, %v1277, 0
      %v1309 = vsel %vm740, %v1278, 0
      %v1312 = vsel %vm740, %v1279, 0
      %v1315 = vsel %vm740, %v1280, 0
      %1317 = vmatprep.subr.mxu0 0.0
      %1318 = vmatpush1.msra.mxu0 %v1273
      %1319 = vmatprep.subr.mxu0 0.0
      %1320 = vmatpush1.msra.mxu0 %v1274
      %1321 = vmatprep.subr.mxu0 0.0
      %1322 = vmatpush1.msra.mxu0 %v1275
      %1323 = vmatprep.subr.mxu0 0.0
      %1324 = vmatpush1.msra.mxu0 %v1276
      %1325 = vmatprep.subr.mxu0 0.0
      %1326 = vmatpush1.msra.mxu0 0.0
      %1327 = vmatprep.subr.mxu0 0.0
      %1328 = vmatpush1.msra.mxu0 0.0
      %1329 = vmatprep.subr.mxu0 0.0
      %1330 = vmatpush1.msra.mxu0 0.0
      %1331 = vmatprep.subr.mxu0 0.0
      %1332 = vmatpush1.msra.mxu0 0.0
      %1333 = vmatprep.subr.mxu0 0.0
      %1334 = vmatpush1.msra.mxu0 0.0
      %1335 = vmatprep.subr.mxu0 0.0
      %1336 = vmatpush1.msra.mxu0 0.0
      %1337 = vmatprep.subr.mxu0 0.0
      %1338 = vmatpush1.msra.mxu0 0.0
      %1339 = vmatprep.subr.mxu0 0.0
      %1340 = vmatpush1.msra.mxu0 0.0
      %1341 = vmatprep.subr.mxu0 0.0
      %1342 = vmatpush1.msra.mxu0 0.0
      %1343 = vmatprep.subr.mxu0 0.0
      %1344 = vmatpush1.msra.mxu0 0.0
      %1345 = vmatprep.subr.mxu0 0.0
      %1346 = vmatpush1.msra.mxu0 0.0
      %1347 = vmatprep.subr.mxu0 0.0
      %1348 = vmatpush1.msra.mxu0 0.0
      %1349 = vmatprep.subr.mxu0 0.0
      %1350 = vmatpush1.msra.mxu0 0.0
      %1351 = vmatprep.subr.mxu0 0.0
      %1352 = vmatpush1.msra.mxu0 0.0
      %1353 = vmatprep.subr.mxu0 0.0
      %1354 = vmatpush1.msra.mxu0 0.0
      %1355 = vmatprep.subr.mxu0 0.0
      %1356 = vmatpush1.msra.mxu0 0.0
      %1357 = vmatprep.subr.mxu0 0.0
      %1358 = vmatpush1.msra.mxu0 0.0
      %1359 = vmatprep.subr.mxu0 0.0
      %1360 = vmatpush1.msra.mxu0 0.0
      %1361 = vmatprep.subr.mxu0 0.0
      %1362 = vmatpush1.msra.mxu0 0.0
      %1363 = vmatprep.subr.mxu0 0.0
      %1364 = vmatpush1.msra.mxu0 0.0
      %1365 = vmatprep.subr.mxu0 0.0
      %1366 = vmatpush1.msra.mxu0 0.0
      %1367 = vmatprep.subr.mxu0 0.0
      %1368 = vmatpush1.msra.mxu0 0.0
      %1369 = vmatprep.subr.mxu0 0.0
      %1370 = vmatpush1.msra.mxu0 0.0
      %1371 = vmatprep.subr.mxu0 0.0
      %1372 = vmatpush1.msra.mxu0 0.0
      %1373 = vmatprep.subr.mxu0 0.0
      %1374 = vmatpush1.msra.mxu0 0.0
      %1375 = vmatprep.subr.mxu0 0.0
      %1376 = vmatpush1.msra.mxu0 0.0
      %1377 = vmatprep.subr.mxu0 0.0
      %1378 = vmatpush1.msra.mxu0 0.0
      %1379 = vmatprep.subr.mxu0 0.0
      %1380 = vmatpush1.msra.mxu0 0.0
      %1381 = vmatprep.mubr.f32.mxu0 0.0
      %1382 = vmatmul.mubr.f32.gmra.mrb[0].mxu0 %v1306
      %v1383 = vpop.f32.mrb[0].mxu0
      %v1384 = vadd.f32 %v1288, %v1383
      %v1385 = vpop.f32.mrb[0].mxu0
      %1386 = vmatprep.mubr.f32.mxu0 0.0
      %1387 = vmatmul.mubr.f32.gmra.mrb[0].mxu0 %v1309
      %v1388 = vpop.f32.mrb[0].mxu0
      %v1389 = vadd.f32 %v1293, %v1388
      %v1390 = vpop.f32.mrb[0].mxu0
      %1391 = vmatprep.mubr.f32.mxu0 0.0
      %1392 = vmatmul.mubr.f32.gmra.mrb[0].mxu0 %v1312
      %v1393 = vpop.f32.mrb[0].mxu0
      %v1394 = vadd.f32 %v1298, %v1393
      %v1395 = vpop.f32.mrb[0].mxu0
      %1396 = vmatprep.mubr.f32.mxu0 0.0
      %1397 = vmatmul.mubr.f32.gmra.mrb[0].mxu0 %v1315
      %v1398 = vpop.f32.mrb[0].mxu0
      %v1399 = vadd.f32 %v1303, %v1398
      %v1400 = vpop.f32.mrb[0].mxu0
      %1401 = vdwg.mxu0
      %v1402 = vmax.f32 %v1384, 0.0
      %v1403 = vmax.f32 %v1389, 0.0
      %v1404 = vmax.f32 %v1394, 0.0
      %v1405 = vmax.f32 %v1399, 0.0
      %v1406 = vld [vmem:[%s15] sm:$0x3f]
      %v1407 = vld [vmem:[%s16] sm:$0x3f]
      %1409 = vset.pattern.permute.xlu0 0
      %1410 = vperm.xlu0 %1409, %v1407
      %v1411 = vpop.permute.xlu0 %1410
      %v1414 = vsel %vm740, %v1406, 0
      %1416 = vmatprep.subr.mxu0 0.0
      %1417 = vmatpush1.msra.mxu0 %v1402
      %1418 = vmatprep.subr.mxu0 0.0
      %1419 = vmatpush1.msra.mxu0 %v1403
      %1420 = vmatprep.subr.mxu0 0.0
      %1421 = vmatpush1.msra.mxu0 %v1404
      %1422 = vmatprep.subr.mxu0 0.0
      %1423 = vmatpush1.msra.mxu0 %v1405
      %1424 = vmatprep.subr.mxu0 0.0
      %1425 = vmatpush1.msra.mxu0 0.0
      %1426 = vmatprep.subr.mxu0 0.0
      %1427 = vmatpush1.msra.mxu0 0.0
      %1428 = vmatprep.subr.mxu0 0.0
      %1429 = vmatpush1.msra.mxu0 0.0
      %1430 = vmatprep.subr.mxu0 0.0
      %1431 = vmatpush1.msra.mxu0 0.0
      %1432 = vmatprep.subr.mxu0 0.0
      %1433 = vmatpush1.msra.mxu0 0.0
      %1434 = vmatprep.subr.mxu0 0.0
      %1435 = vmatpush1.msra.mxu0 0.0
      %1436 = vmatprep.subr.mxu0 0.0
      %1437 = vmatpush1.msra.mxu0 0.0
      %1438 = vmatprep.subr.mxu0 0.0
      %1439 = vmatpush1.msra.mxu0 0.0
      %1440 = vmatprep.subr.mxu0 0.0
      %1441 = vmatpush1.msra.mxu0 0.0
      %1442 = vmatprep.subr.mxu0 0.0
      %1443 = vmatpush1.msra.mxu0 0.0
      %1444 = vmatprep.subr.mxu0 0.0
      %1445 = vmatpush1.msra.mxu0 0.0
      %1446 = vmatprep.subr.mxu0 0.0
      %1447 = vmatpush1.msra.mxu0 0.0
      %1448 = vmatprep.subr.mxu0 0.0
      %1449 = vmatpush1.msra.mxu0 0.0
      %1450 = vmatprep.subr.mxu0 0.0
      %1451 = vmatpush1.msra.mxu0 0.0
      %1452 = vmatprep.subr.mxu0 0.0
      %1453 = vmatpush1.msra.mxu0 0.0
      %1454 = vmatprep.subr.mxu0 0.0
      %1455 = vmatpush1.msra.mxu0 0.0
      %1456 = vmatprep.subr.mxu0 0.0
      %1457 = vmatpush1.msra.mxu0 0.0
      %1458 = vmatprep.subr.mxu0 0.0
      %1459 = vmatpush1.msra.mxu0 0.0
      %1460 = vmatprep.subr.mxu0 0.0
      %1461 = vmatpush1.msra.mxu0 0.0
      %1462 = vmatprep.subr.mxu0 0.0
      %1463 = vmatpush1.msra.mxu0 0.0
      %1464 = vmatprep.subr.mxu0 0.0
      %1465 = vmatpush1.msra.mxu0 0.0
      %1466 = vmatprep.subr.mxu0 0.0
      %1467 = vmatpush1.msra.mxu0 0.0
      %1468 = vmatprep.subr.mxu0 0.0
      %1469 = vmatpush1.msra.mxu0 0.0
      %1470 = vmatprep.subr.mxu0 0.0
      %1471 = vmatpush1.msra.mxu0 0.0
      %1472 = vmatprep.subr.mxu0 0.0
      %1473 = vmatpush1.msra.mxu0 0.0
      %1474 = vmatprep.subr.mxu0 0.0
      %1475 = vmatpush1.msra.mxu0 0.0
      %1476 = vmatprep.subr.mxu0 0.0
      %1477 = vmatpush1.msra.mxu0 0.0
      %1478 = vmatprep.subr.mxu0 0.0
      %1479 = vmatpush1.msra.mxu0 0.0
      %1480 = vmatprep.mubr.f32.mxu0 0.0
      %1481 = vmatmul.mubr.f32.gmra.mrb[0].mxu0 %v1414
      %v1482 = vpop.f32.mrb[0].mxu0
      %v1483 = vadd.f32 %v1411, %v1482
      %v1484 = vpop.f32.mrb[0].mxu0
      %1485 = vdwg.mxu0
      %vm1486 = vcmask 259072
      %1487 = vst.msk [vmem:[%s594] sm:$0x3f] %vm1486, %v1483
      %p1488 = scmp.lt.s32.totalorder %s32, 1
      %s1489 = scalar_select %p1488, %s32, 1
      %p1490 = scmp.lt.s32.totalorder %s33, 0
      %s1491 = scalar_select %p1490, %s33, 0
      %s1492 = sadd.s32 %s1491, %s1489
      %s1493 = smul.addr %s1492, 8
      %s1494 = scalar_lea.vmem %s17, %s1493
      // Predicated region
      $region89: #{fwd.4} parent=87 // pred_check
        %p1495 = pneg %p429
      $region90: #{fwd.4} parent=87 // pred_check_branch
        %1497 = sbr.rel (%p1495) target = $region92
      $region91: #{fwd.4} parent=87 // pred_region
        _
      $region92: #{fwd.4} parent=87 // pred_fallthru
        _
    $region88: #{fwd.4} parent=5 // pred_fallthru
      _
    %p1498 = scmp.le.s32.totalorder 2, %s23
    // Predicated region
    $region93: #{fwd.4} parent=5 // pred_check
      %p1499 = pneg %p1498
    $region94: #{fwd.4} parent=5 // pred_check_branch
      %1501 = sbr.rel (%p1499) target = $region96
    $region95: #{fwd.4} parent=5 // pred_region
      %s1502 = ssub.s32 %s23, 2
      // Predicated region
      $region97: #{fwd.4} parent=95 // pred_check
        %p1503 = pneg %p435
      $region98: #{fwd.4} parent=95 // pred_check_branch
        %1505 = sbr.rel (%p1503) target = $region100
      $region99: #{fwd.4} parent=95 // pred_region
        %p1506 = scmp.lt.s32.totalorder %s34, 1
        %s1507 = scalar_select %p1506, %s34, 1
        %p1508 = scmp.lt.s32.totalorder %s35, 0
        %s1509 = scalar_select %p1508, %s35, 0
        %s1510 = sadd.s32 %s1509, %s1507
        %s1511 = smul.addr %s1510, 8
        %s1512 = scalar_lea.vmem %s17, %s1511
      $region100: #{fwd.4} parent=95 // pred_fallthru
        _
    $region96: #{fwd.4} parent=5 // pred_fallthru
      _
  $region6: #{fwd.4} parent=0 // loop_footer
    %s27 = sadd.s32 1, %s23
  $region7: #{fwd.4} parent=0 // loop_footer_branch
    %22 = sbr.rel target = $region3
  $region8: #{fwd.4} parent=0 // loop_exit
    _

</llo_original>
